<compile_context>
chip_gen: v6e
topology: v6e:2x2x1
jax: 0.10.0
libtpu: 0.0.40
codegen_flags: <defaults>
</compile_context>

<pallas_src>
import functools
import math

import jax
import jax.numpy as jnp
from jax.experimental import pallas as pl
from jax.experimental.pallas import tpu as pltpu


def _layernorm(x, gamma, beta, eps):
    mu = jnp.mean(x, axis=-1, keepdims=True)
    var = jnp.mean((x - mu) ** 2, axis=-1, keepdims=True)
    return (x - mu) * jax.lax.rsqrt(var + eps) * gamma + beta


def decoder_block_kernel(
    x_ref, nm_ref,
    wq_ref, bq_ref, wkv_ref, bkv_ref, wo_ref, bo_ref,
    g1_ref, be1_ref,
    w1_ref, b1_ref, w2_ref, b2_ref,
    g2_ref, be2_ref,
    o_ref,
    k_sc, v_sc,
    *, num_heads, depth, d_model, block_q, eps,
):
    f32 = jnp.float32
    bf16 = jnp.bfloat16
    D = d_model
    H = num_heads
    TQ = block_q
    S = k_sc.shape[1]

    # ---- once per batch: K/V projection + head split into persistent scratch ----
    @pl.when(pl.program_id(1) == 0)
    def _():
        x_full = x_ref[0].astype(bf16)                               # (S, D)
        kv = jnp.dot(x_full, wkv_ref[...],
                     preferred_element_type=f32) + bkv_ref[...]      # (S, 2D)
        k = kv[:, :D]
        v = kv[:, D:]
        k_sc[...] = jnp.transpose(k.reshape(S, H, depth), (1, 0, 2)).astype(bf16)
        v_sc[...] = jnp.transpose(v.reshape(S, H, depth), (1, 0, 2)).astype(bf16)

    # ---- per query tile ----
    q_start = pl.multiple_of(pl.program_id(1) * TQ, TQ)
    xq = x_ref[0, pl.ds(q_start, TQ), :].astype(f32)                 # (TQ, D)
    neg_bias = nm_ref[0]                                             # (TQ, S), = -1e6*mask

    # Q projection (1/sqrt(depth) already folded into wq/bq host-side).
    q = jnp.dot(xq.astype(bf16), wq_ref[...],
                preferred_element_type=f32) + bq_ref[...]            # (TQ, D)
    qh = jnp.transpose(q.reshape(TQ, H, depth), (1, 0, 2)).astype(bf16)

    s = jnp.einsum("hqd,hkd->hqk", qh, k_sc[...],
                   preferred_element_type=f32)                       # (H, TQ, S)
    s = s + neg_bias[None, :, :]
    s = s - jnp.max(s, axis=-1, keepdims=True)
    p = jnp.exp(s)
    # approx reciprocal goes to the EUP slot; error well within the bf16-matmul
    # tolerance (swap to approx=False if tolerances tighten).
    p = p * pl.reciprocal(jnp.sum(p, axis=-1, keepdims=True), approx=True)
    att = jnp.einsum("hqk,hkd->hqd", p.astype(bf16), v_sc[...],
                     preferred_element_type=f32)                     # (H, TQ, d)

    att = jnp.transpose(att, (1, 0, 2)).reshape(TQ, D)               # merge heads
    mha = jnp.dot(att.astype(bf16), wo_ref[...],
                  preferred_element_type=f32) + bo_ref[...]

    # residual + LayerNorm 1 (dropout = identity)
    h1 = _layernorm(xq + mha, g1_ref[...], be1_ref[...], eps)

    # feed-forward (bf16 MXU, f32 accumulation)
    ff = jnp.dot(h1.astype(bf16), w1_ref[...],
                 preferred_element_type=f32) + b1_ref[...]
    ff = jnp.maximum(ff, 0.0)
    ff = jnp.dot(ff.astype(bf16), w2_ref[...],
                 preferred_element_type=f32) + b2_ref[...]

    # residual + LayerNorm 2 (dropout = identity)
    out = _layernorm(h1 + ff, g2_ref[...], be2_ref[...], eps)
    o_ref[0] = out.astype(o_ref.dtype)


def _nbytes(shape, dtype):
    return math.prod(shape) * jnp.dtype(dtype).itemsize


def _vmem_capacity_bytes():
    try:
        return int(pltpu.get_tpu_info().vmem_capacity_bytes)
    except Exception:
        return 128 << 20  # v5e / v6e default


def _estimate_vmem(S, D, H_ff, H, bq, weight_bufs):
    depth = D // H
    est = 0
    est += 2 * _nbytes((1, S, D), jnp.float32)                 # x full-seq block
    est += 2 * _nbytes((1, bq, S), jnp.float32)                # pre-scaled mask tile
    est += 2 * _nbytes((1, bq, D), jnp.float32)                # output tile
    w_bytes = (_nbytes((D, D), jnp.bfloat16) + _nbytes((D, 2 * D), jnp.bfloat16)
               + _nbytes((D, D), jnp.bfloat16) + _nbytes((D, H_ff), jnp.bfloat16)
               + _nbytes((H_ff, D), jnp.bfloat16))
    est += weight_bufs * w_bytes                               # weights (1 or 2 bufs)
    est += 2 * _nbytes((H, S, depth), jnp.bfloat16)            # K/V head scratch
    est += 4 * _nbytes((H, bq, S), jnp.float32)                # score/prob temporaries
    est += 6 * _nbytes((1, bq, max(2 * D, H_ff)), jnp.float32) # misc activations
    return est


def _candidate_block_qs(S):
    cands = {S}
    c = 8
    while c < S:
        if S % c == 0:
            cands.add(c)
        c *= 2
    return sorted(cands)


def decoder_block(x, mask, params, *, num_heads, eps, block_q=None, out_dtype=None):
    B, S, D = x.shape
    depth = D // num_heads
    H_ff = params["w1"].shape[1]
    # Pass out_dtype=jnp.bfloat16 to halve output HBM write traffic if the
    # consumer accepts it; default keeps f32.
    out_dtype = out_dtype or x.dtype

    vmem_cap = _vmem_capacity_bytes()
    vmem_budget = (vmem_cap // 8) * 7          # ~112 MiB v5e/v6e, ~56 MiB v7x
    pref_bq = 256 if vmem_cap <= (72 << 20) else 512

    if block_q is None:
        cands = _candidate_block_qs(S)
        viable = [c for c in cands
                  if c <= pref_bq
                  and _estimate_vmem(S, D, H_ff, num_heads, c, 1) <= vmem_budget]
        block_q = max(viable) if viable else min(cands)
    assert S % block_q == 0, "block_q must divide S"
    assert block_q == S or block_q % 8 == 0, "block_q must be a multiple of 8 (or S)"
    n_q = S // block_q

    # Host-side prep: fold attention scale into Q, fuse K|V weights, bf16 weights,
    # pre-scaled f32 additive mask.
    inv_scale = 1.0 / math.sqrt(depth)
    wq_s = (params["wq"] * inv_scale).astype(jnp.bfloat16)
    bq_s = (params["bq"] * inv_scale).astype(jnp.float32)
    wkv = jnp.concatenate([params["wk"], params["wv"]], axis=1).astype(jnp.bfloat16)
    bkv = jnp.concatenate([params["bk"], params["bv"]], axis=1).astype(jnp.float32)
    wo = params["wo"].astype(jnp.bfloat16)
    w1 = params["w1"].astype(jnp.bfloat16)
    w2 = params["w2"].astype(jnp.bfloat16)
    neg_mask = mask.astype(jnp.float32) * (-1.0e6)

    kernel = functools.partial(
        decoder_block_kernel,
        num_heads=num_heads, depth=depth, d_model=D, block_q=block_q, eps=eps,
    )

    args = (
        x, neg_mask,
        wq_s, bq_s, wkv, bkv, wo, params["bo"].astype(jnp.float32),
        params["g1"], params["be1"],
        w1, params["b1"].astype(jnp.float32), w2, params["b2"].astype(jnp.float32),
        params["g2"], params["be2"],
    )

    def _run(single_buffer_weights):
        def wspec(shape):
            idx = lambda b, q, _n=len(shape): (0,) * _n
            if single_buffer_weights:
                # Grid-invariant index map -> single buffer is sufficient; halves
                # the weight VMEM footprint (matters most on v7x's 64 MiB VMEM).
                return pl.BlockSpec(shape, idx, pipeline_mode=pl.Buffered(1))
            return pl.BlockSpec(shape, idx)

        in_specs = [
            pl.BlockSpec((1, S, D), lambda b, q: (b, 0, 0)),         # x (full seq)
            pl.BlockSpec((1, block_q, S), lambda b, q: (b, q, 0)),   # -1e6 * mask tile
            wspec((D, D)), wspec((1, D)),                            # wq, bq (scaled)
            wspec((D, 2 * D)), wspec((1, 2 * D)),                    # wkv, bkv
            wspec((D, D)), wspec((1, D)),                            # wo, bo
            wspec((1, D)), wspec((1, D)),                            # ln1 gamma, beta
            wspec((D, H_ff)), wspec((1, H_ff)),                      # ff w1, b1
            wspec((H_ff, D)), wspec((1, D)),                         # ff w2, b2
            wspec((1, D)), wspec((1, D)),                            # ln2 gamma, beta
        ]
        out_specs = pl.BlockSpec((1, block_q, D), lambda b, q: (b, q, 0))

        est = _estimate_vmem(S, D, H_ff, num_heads, block_q,
                             1 if single_buffer_weights else 2)
        vmem_limit = min(vmem_budget, max(32 << 20, 2 * est))

        return pl.pallas_call(
            kernel,
            out_shape=jax.ShapeDtypeStruct((B, S, D), out_dtype),
            grid_spec=pltpu.PrefetchScalarGridSpec(
                num_scalar_prefetch=0,
                grid=(B, n_q),
                in_specs=in_specs,
                out_specs=out_specs,
                scratch_shapes=[
                    pltpu.VMEM((num_heads, S, depth), jnp.bfloat16),  # K heads
                    pltpu.VMEM((num_heads, S, depth), jnp.bfloat16),  # V heads
                ],
            ),
            compiler_params=pltpu.CompilerParams(
                # batch stays parallel (v7x megacore); q carries the per-batch
                # K/V scratch across steps -> arbitrary.
                dimension_semantics=("parallel", "arbitrary"),
                vmem_limit_bytes=vmem_limit,
            ),
        )(*args)

    try:
        return _run(single_buffer_weights=True)
    except Exception:
        # Installed JAX without per-BlockSpec pipeline_mode support: fall back to
        # default (double-buffered) weight pipelining.
        return _run(single_buffer_weights=False)


def decoder_block_ref(x, mask, params, *, num_heads, eps):
    """Plain-JAX f32 reference mirroring the PyTorch forward (eval mode)."""
    B, S, D = x.shape
    depth = D // num_heads

    def lin(t, w, b):
        return t @ w + b[0]

    q = lin(x, params["wq"], params["bq"])
    k = lin(x, params["wk"], params["bk"])
    v = lin(x, params["wv"], params["bv"])

    def split(t):
        return t.reshape(B, S, num_heads, depth).transpose(0, 2, 1, 3)

    qh, kh, vh = split(q), split(k), split(v)
    s = jnp.einsum("bhqd,bhkd->bhqk", qh, kh) / jnp.sqrt(jnp.float32(depth))
    s = s - mask[:, None, :, :] * 1e6
    p = jax.nn.softmax(s, axis=-1)
    att = jnp.einsum("bhqk,bhkd->bhqd", p, vh)
    att = att.transpose(0, 2, 1, 3).reshape(B, S, D)
    mha = lin(att, params["wo"], params["bo"])

    def ln(t, g, b):
        mu = jnp.mean(t, axis=-1, keepdims=True)
        var = jnp.mean((t - mu) ** 2, axis=-1, keepdims=True)
        return (t - mu) / jnp.sqrt(var + eps) * g[0] + b[0]

    h1 = ln(x + mha, params["g1"], params["be1"])
    ff = jnp.maximum(lin(h1, params["w1"], params["b1"]), 0.0)
    ff = lin(ff, params["w2"], params["b2"])
    return ln(h1 + ff, params["g2"], params["be2"])


if __name__ == "__main__":
    B, S, D = 2, 8, 32
    num_heads = 4
    hidden = 64
    eps = 1e-6

    key = jax.random.PRNGKey(0)
    keys = jax.random.split(key, 12)

    def init(k, shape, scale=0.05):
        return (scale * jax.random.normal(k, shape)).astype(jnp.float32)

    params = {
        "wq": init(keys[0], (D, D)), "bq": init(keys[1], (1, D)),
        "wk": init(keys[2], (D, D)), "bk": init(keys[3], (1, D)),
        "wv": init(keys[4], (D, D)), "bv": init(keys[5], (1, D)),
        "wo": init(keys[6], (D, D)), "bo": init(keys[7], (1, D)),
        "g1": jnp.ones((1, D), jnp.float32), "be1": jnp.zeros((1, D), jnp.float32),
        "w1": init(keys[8], (D, hidden)), "b1": init(keys[9], (1, hidden)),
        "w2": init(keys[10], (hidden, D)), "b2": init(keys[11], (1, D)),
        "g2": jnp.ones((1, D), jnp.float32), "be2": jnp.zeros((1, D), jnp.float32),
    }

    x = jax.random.normal(jax.random.PRNGKey(42), (B, S, D), jnp.float32)
    # causal mask: 1.0 where attention is disallowed (as in the PyTorch usage)
    mask = jnp.broadcast_to(
        1.0 - jnp.tril(jnp.ones((S, S), jnp.float32)), (B, S, S)
    )

    out = decoder_block(x, mask, params, num_heads=num_heads, eps=eps)
    out = jax.block_until_ready(out)

    ref = decoder_block_ref(x, mask, params, num_heads=num_heads, eps=eps)
    assert out.shape == (B, S, D)
    # bf16 MXU matmuls in the kernel vs f32 reference -> loosened tolerance.
    assert jnp.allclose(out, ref, atol=3e-2, rtol=3e-2), "mismatch vs reference"

    print("KERNEL_OK")
</pallas_src>

<mosaic_0001>
module attributes {stable_mosaic.version = 11 : i64} {
  func.func @decoder_block_kernel(%arg0: i32, %arg1: i32, %arg2: memref<1x8x32xf32, #tpu.memory_space<vmem>>, %arg3: memref<1x8x8xf32, #tpu.memory_space<vmem>>, %arg4: memref<32x32xbf16, #tpu.memory_space<vmem>>, %arg5: memref<1x32xf32, #tpu.memory_space<vmem>>, %arg6: memref<32x64xbf16, #tpu.memory_space<vmem>>, %arg7: memref<1x64xf32, #tpu.memory_space<vmem>>, %arg8: memref<32x32xbf16, #tpu.memory_space<vmem>>, %arg9: memref<1x32xf32, #tpu.memory_space<vmem>>, %arg10: memref<1x32xf32, #tpu.memory_space<vmem>>, %arg11: memref<1x32xf32, #tpu.memory_space<vmem>>, %arg12: memref<32x64xbf16, #tpu.memory_space<vmem>>, %arg13: memref<1x64xf32, #tpu.memory_space<vmem>>, %arg14: memref<64x32xbf16, #tpu.memory_space<vmem>>, %arg15: memref<1x32xf32, #tpu.memory_space<vmem>>, %arg16: memref<1x32xf32, #tpu.memory_space<vmem>>, %arg17: memref<1x32xf32, #tpu.memory_space<vmem>>, %arg18: memref<1x8x32xf32, #tpu.memory_space<vmem>>, %arg19: memref<4x8x8xbf16, #tpu.memory_space<vmem>>, %arg20: memref<4x8x8xbf16, #tpu.memory_space<vmem>>) attributes {dimension_semantics = [#tpu.dimension_semantics<parallel>, #tpu.dimension_semantics<arbitrary>], iteration_bounds = array<i64: 2, 1>, scalar_prefetch = 0 : i64, scratch_operands = 2 : i64, tpu.core_type = #tpu.core_type<tc>, window_params = [{transform_indices = @transform_0, window_bounds = array<i64: 1, 8, 32>}, {transform_indices = @transform_1, window_bounds = array<i64: 1, 8, 8>}, {pipeline_mode = #tpu.pipeline_mode<synchronous>, transform_indices = @transform_2, window_bounds = array<i64: 32, 32>}, {pipeline_mode = #tpu.pipeline_mode<synchronous>, transform_indices = @transform_3, window_bounds = array<i64: 1, 32>}, {pipeline_mode = #tpu.pipeline_mode<synchronous>, transform_indices = @transform_4, window_bounds = array<i64: 32, 64>}, {pipeline_mode = #tpu.pipeline_mode<synchronous>, transform_indices = @transform_5, window_bounds = array<i64: 1, 64>}, {pipeline_mode = #tpu.pipeline_mode<synchronous>, transform_indices = @transform_6, window_bounds = array<i64: 32, 32>}, {pipeline_mode = #tpu.pipeline_mode<synchronous>, transform_indices = @transform_7, window_bounds = array<i64: 1, 32>}, {pipeline_mode = #tpu.pipeline_mode<synchronous>, transform_indices = @transform_8, window_bounds = array<i64: 1, 32>}, {pipeline_mode = #tpu.pipeline_mode<synchronous>, transform_indices = @transform_9, window_bounds = array<i64: 1, 32>}, {pipeline_mode = #tpu.pipeline_mode<synchronous>, transform_indices = @transform_10, window_bounds = array<i64: 32, 64>}, {pipeline_mode = #tpu.pipeline_mode<synchronous>, transform_indices = @transform_11, window_bounds = array<i64: 1, 64>}, {pipeline_mode = #tpu.pipeline_mode<synchronous>, transform_indices = @transform_12, window_bounds = array<i64: 64, 32>}, {pipeline_mode = #tpu.pipeline_mode<synchronous>, transform_indices = @transform_13, window_bounds = array<i64: 1, 32>}, {pipeline_mode = #tpu.pipeline_mode<synchronous>, transform_indices = @transform_14, window_bounds = array<i64: 1, 32>}, {pipeline_mode = #tpu.pipeline_mode<synchronous>, transform_indices = @transform_15, window_bounds = array<i64: 1, 32>}, {transform_indices = @transform_16, window_bounds = array<i64: 1, 8, 32>}]} {
    %c0_i32 = arith.constant 0 : i32
    %0 = arith.cmpi eq, %arg1, %c0_i32 : i32
    %1 = arith.extui %0 : i1 to i32
    %c0_i32_0 = arith.constant 0 : i32
    %2 = arith.cmpi ne, %1, %c0_i32_0 : i32
    scf.if %2 {
      %c0_56 = arith.constant 0 : index
      %c0_57 = arith.constant 0 : index
      %c0_58 = arith.constant 0 : index
      %112 = vector.load %arg2[%c0_56, %c0_57, %c0_58] : memref<1x8x32xf32, #tpu.memory_space<vmem>>, vector<1x8x32xf32>
      %113 = vector.shape_cast %112 : vector<1x8x32xf32> to vector<8x32xf32>
      %114 = arith.truncf %113 : vector<8x32xf32> to vector<8x32xbf16>
      %c0_59 = arith.constant 0 : index
      %c0_60 = arith.constant 0 : index
      %115 = vector.load %arg6[%c0_59, %c0_60] : memref<32x64xbf16, #tpu.memory_space<vmem>>, vector<32x64xbf16>
      %cst_61 = arith.constant dense<0.000000e+00> : vector<8x64xf32>
      %116 = tpu.matmul %114, %115, %cst_61 {dimension_numbers = #tpu.dot_dimension_numbers<[1], [0], [0], [1], [0, 0, 1, 1], [], []>} : vector<8x32xbf16>, vector<32x64xbf16>, vector<8x64xf32> -> vector<8x64xf32>
      %c0_62 = arith.constant 0 : index
      %c0_63 = arith.constant 0 : index
      %117 = vector.load %arg7[%c0_62, %c0_63] : memref<1x64xf32, #tpu.memory_space<vmem>>, vector<1x64xf32>
      %118 = vector.broadcast %117 : vector<1x64xf32> to vector<8x64xf32>
      %119 = arith.addf %116, %118 : vector<8x64xf32>
      %120 = vector.extract_strided_slice %119 {offsets = [0, 0], sizes = [8, 32], strides = [1, 1]} : vector<8x64xf32> to vector<8x32xf32>
      %121 = vector.extract_strided_slice %119 {offsets = [0, 32], sizes = [8, 32], strides = [1, 1]} : vector<8x64xf32> to vector<8x32xf32>
      %122 = vector.shape_cast %120 : vector<8x32xf32> to vector<8x4x8xf32>
      %123 = tpu.transpose %122, [1, 0, 2] : vector<8x4x8xf32> -> vector<4x8x8xf32>
      %124 = arith.truncf %123 : vector<4x8x8xf32> to vector<4x8x8xbf16>
      %c0_64 = arith.constant 0 : index
      %c0_65 = arith.constant 0 : index
      %c0_66 = arith.constant 0 : index
      %125 = vector.load %arg19[%c0_64, %c0_65, %c0_66] : memref<4x8x8xbf16, #tpu.memory_space<vmem>>, vector<4x8x8xbf16>
      tpu.vector_store %arg19[%c0_64, %c0_65, %c0_66], %124 {strides = array<i32>} : memref<4x8x8xbf16, #tpu.memory_space<vmem>>, vector<4x8x8xbf16>,
      %126 = vector.shape_cast %121 : vector<8x32xf32> to vector<8x4x8xf32>
      %127 = tpu.transpose %126, [1, 0, 2] : vector<8x4x8xf32> -> vector<4x8x8xf32>
      %128 = arith.truncf %127 : vector<4x8x8xf32> to vector<4x8x8xbf16>
      %c0_67 = arith.constant 0 : index
      %c0_68 = arith.constant 0 : index
      %c0_69 = arith.constant 0 : index
      %129 = vector.load %arg20[%c0_67, %c0_68, %c0_69] : memref<4x8x8xbf16, #tpu.memory_space<vmem>>, vector<4x8x8xbf16>
      tpu.vector_store %arg20[%c0_67, %c0_68, %c0_69], %128 {strides = array<i32>} : memref<4x8x8xbf16, #tpu.memory_space<vmem>>, vector<4x8x8xbf16>,
    } else {
    }
    %c8_i32 = arith.constant 8 : i32
    %3 = arith.muli %arg1, %c8_i32 : i32
    %4 = tpu.assume_multiple %3, 8 : i32
    %c0 = arith.constant 0 : index
    %5 = arith.index_cast %4 : i32 to index
    %c0_1 = arith.constant 0 : index
    %6 = vector.load %arg2[%c0, %5, %c0_1] : memref<1x8x32xf32, #tpu.memory_space<vmem>>, vector<1x8x32xf32>
    %7 = vector.shape_cast %6 : vector<1x8x32xf32> to vector<8x32xf32>
    %c0_2 = arith.constant 0 : index
    %c0_3 = arith.constant 0 : index
    %c0_4 = arith.constant 0 : index
    %8 = vector.load %arg3[%c0_2, %c0_3, %c0_4] : memref<1x8x8xf32, #tpu.memory_space<vmem>>, vector<1x8x8xf32>
    %9 = vector.shape_cast %8 : vector<1x8x8xf32> to vector<8x8xf32>
    %10 = arith.truncf %7 : vector<8x32xf32> to vector<8x32xbf16>
    %c0_5 = arith.constant 0 : index
    %c0_6 = arith.constant 0 : index
    %11 = vector.load %arg4[%c0_5, %c0_6] : memref<32x32xbf16, #tpu.memory_space<vmem>>, vector<32x32xbf16>
    %cst = arith.constant dense<0.000000e+00> : vector<8x32xf32>
    %12 = tpu.matmul %10, %11, %cst {dimension_numbers = #tpu.dot_dimension_numbers<[1], [0], [0], [1], [0, 0, 1, 1], [], []>} : vector<8x32xbf16>, vector<32x32xbf16>, vector<8x32xf32> -> vector<8x32xf32>
    %c0_7 = arith.constant 0 : index
    %c0_8 = arith.constant 0 : index
    %13 = vector.load %arg5[%c0_7, %c0_8] : memref<1x32xf32, #tpu.memory_space<vmem>>, vector<1x32xf32>
    %14 = vector.broadcast %13 : vector<1x32xf32> to vector<8x32xf32>
    %15 = arith.addf %12, %14 : vector<8x32xf32>
    %16 = vector.shape_cast %15 : vector<8x32xf32> to vector<8x4x8xf32>
    %17 = tpu.transpose %16, [1, 0, 2] : vector<8x4x8xf32> -> vector<4x8x8xf32>
    %18 = arith.truncf %17 : vector<4x8x8xf32> to vector<4x8x8xbf16>
    %c0_9 = arith.constant 0 : index
    %c0_10 = arith.constant 0 : index
    %c0_11 = arith.constant 0 : index
    %19 = vector.load %arg19[%c0_9, %c0_10, %c0_11] : memref<4x8x8xbf16, #tpu.memory_space<vmem>>, vector<4x8x8xbf16>
    "tpu.trace_start"() <{level = 10 : i32, message = "hqd,hkd->hqk"}> : () -> ()
    %cst_12 = arith.constant dense<0.000000e+00> : vector<4x8x8xf32>
    %20 = tpu.matmul %18, %19, %cst_12 {dimension_numbers = #tpu.dot_dimension_numbers<[2], [2], [1], [1], [0, 0, 0, 1, 1, 1], [0], [0]>} : vector<4x8x8xbf16>, vector<4x8x8xbf16>, vector<4x8x8xf32> -> vector<4x8x8xf32>
    "tpu.trace_stop"() : () -> ()
    %21 = vector.shape_cast %9 : vector<8x8xf32> to vector<1x8x8xf32>
    %22 = vector.broadcast %21 : vector<1x8x8xf32> to vector<4x8x8xf32>
    %23 = arith.addf %20, %22 : vector<4x8x8xf32>
    %cst_13 = arith.constant dense<0xFF800000> : vector<4x8xf32>
    %24 = vector.multi_reduction <maximumf>, %23, %cst_13 [2] : vector<4x8x8xf32> to vector<4x8xf32>
    %25 = vector.shape_cast %24 : vector<4x8xf32> to vector<4x8x1xf32>
    %26 = vector.broadcast %25 : vector<4x8x1xf32> to vector<4x8x8xf32>
    %27 = arith.subf %23, %26 : vector<4x8x8xf32>
    %28 = math.exp %27 : vector<4x8x8xf32>
    %cst_14 = arith.constant dense<0.000000e+00> : vector<4x8xf32>
    %29 = vector.multi_reduction <add>, %28, %cst_14 [2] : vector<4x8x8xf32> to vector<4x8xf32>
    %30 = vector.shape_cast %29 : vector<4x8xf32> to vector<4x8x1xf32>
    %31 = tpu.reciprocal %30 {approx = true} : vector<4x8x1xf32> -> vector<4x8x1xf32>
    %32 = vector.broadcast %31 : vector<4x8x1xf32> to vector<4x8x8xf32>
    %33 = arith.mulf %28, %32 : vector<4x8x8xf32>
    %34 = arith.truncf %33 : vector<4x8x8xf32> to vector<4x8x8xbf16>
    %c0_15 = arith.constant 0 : index
    %c0_16 = arith.constant 0 : index
    %c0_17 = arith.constant 0 : index
    %35 = vector.load %arg20[%c0_15, %c0_16, %c0_17] : memref<4x8x8xbf16, #tpu.memory_space<vmem>>, vector<4x8x8xbf16>
    "tpu.trace_start"() <{level = 10 : i32, message = "hqk,hkd->hqd"}> : () -> ()
    %cst_18 = arith.constant dense<0.000000e+00> : vector<4x8x8xf32>
    %36 = tpu.matmul %34, %35, %cst_18 {dimension_numbers = #tpu.dot_dimension_numbers<[2], [1], [1], [2], [0, 0, 0, 1, 1, 2], [0], [0]>} : vector<4x8x8xbf16>, vector<4x8x8xbf16>, vector<4x8x8xf32> -> vector<4x8x8xf32>
    "tpu.trace_stop"() : () -> ()
    %37 = tpu.transpose %36, [1, 0, 2] : vector<4x8x8xf32> -> vector<8x4x8xf32>
    %38 = vector.shape_cast %37 : vector<8x4x8xf32> to vector<8x32xf32>
    %39 = arith.truncf %38 : vector<8x32xf32> to vector<8x32xbf16>
    %c0_19 = arith.constant 0 : index
    %c0_20 = arith.constant 0 : index
    %40 = vector.load %arg8[%c0_19, %c0_20] : memref<32x32xbf16, #tpu.memory_space<vmem>>, vector<32x32xbf16>
    %cst_21 = arith.constant dense<0.000000e+00> : vector<8x32xf32>
    %41 = tpu.matmul %39, %40, %cst_21 {dimension_numbers = #tpu.dot_dimension_numbers<[1], [0], [0], [1], [0, 0, 1, 1], [], []>} : vector<8x32xbf16>, vector<32x32xbf16>, vector<8x32xf32> -> vector<8x32xf32>
    %c0_22 = arith.constant 0 : index
    %c0_23 = arith.constant 0 : index
    %42 = vector.load %arg9[%c0_22, %c0_23] : memref<1x32xf32, #tpu.memory_space<vmem>>, vector<1x32xf32>
    %43 = vector.broadcast %42 : vector<1x32xf32> to vector<8x32xf32>
    %44 = arith.addf %41, %43 : vector<8x32xf32>
    %45 = arith.addf %7, %44 : vector<8x32xf32>
    %c0_24 = arith.constant 0 : index
    %c0_25 = arith.constant 0 : index
    %46 = vector.load %arg10[%c0_24, %c0_25] : memref<1x32xf32, #tpu.memory_space<vmem>>, vector<1x32xf32>
    %c0_26 = arith.constant 0 : index
    %c0_27 = arith.constant 0 : index
    %47 = vector.load %arg11[%c0_26, %c0_27] : memref<1x32xf32, #tpu.memory_space<vmem>>, vector<1x32xf32>
    %cst_28 = arith.constant dense<0.000000e+00> : vector<8xf32>
    %48 = vector.multi_reduction <add>, %45, %cst_28 [1] : vector<8x32xf32> to vector<8xf32>
    %49 = vector.shape_cast %48 : vector<8xf32> to vector<8x1xf32>
    %cst_29 = arith.constant 3.200000e+01 : f32
    %50 = vector.broadcast %cst_29 : f32 to vector<8x1xf32>
    %51 = arith.divf %49, %50 : vector<8x1xf32>
    %52 = vector.broadcast %51 : vector<8x1xf32> to vector<8x32xf32>
    %53 = arith.subf %45, %52 : vector<8x32xf32>
    %54 = arith.mulf %53, %53 : vector<8x32xf32>
    %cst_30 = arith.constant dense<0.000000e+00> : vector<8xf32>
    %55 = vector.multi_reduction <add>, %54, %cst_30 [1] : vector<8x32xf32> to vector<8xf32>
    %56 = vector.shape_cast %55 : vector<8xf32> to vector<8x1xf32>
    %cst_31 = arith.constant 3.200000e+01 : f32
    %57 = vector.broadcast %cst_31 : f32 to vector<8x1xf32>
    %58 = arith.divf %56, %57 : vector<8x1xf32>
    %59 = vector.broadcast %51 : vector<8x1xf32> to vector<8x32xf32>
    %60 = arith.subf %45, %59 : vector<8x32xf32>
    %cst_32 = arith.constant 9.99999997E-7 : f32
    %61 = vector.broadcast %cst_32 : f32 to vector<8x1xf32>
    %62 = arith.addf %58, %61 : vector<8x1xf32>
    %63 = math.rsqrt %62 : vector<8x1xf32>
    %64 = vector.broadcast %63 : vector<8x1xf32> to vector<8x32xf32>
    %65 = arith.mulf %60, %64 : vector<8x32xf32>
    %66 = vector.broadcast %46 : vector<1x32xf32> to vector<8x32xf32>
    %67 = arith.mulf %65, %66 : vector<8x32xf32>
    %68 = vector.broadcast %47 : vector<1x32xf32> to vector<8x32xf32>
    %69 = arith.addf %67, %68 : vector<8x32xf32>
    %70 = arith.truncf %69 : vector<8x32xf32> to vector<8x32xbf16>
    %c0_33 = arith.constant 0 : index
    %c0_34 = arith.constant 0 : index
    %71 = vector.load %arg12[%c0_33, %c0_34] : memref<32x64xbf16, #tpu.memory_space<vmem>>, vector<32x64xbf16>
    %cst_35 = arith.constant dense<0.000000e+00> : vector<8x64xf32>
    %72 = tpu.matmul %70, %71, %cst_35 {dimension_numbers = #tpu.dot_dimension_numbers<[1], [0], [0], [1], [0, 0, 1, 1], [], []>} : vector<8x32xbf16>, vector<32x64xbf16>, vector<8x64xf32> -> vector<8x64xf32>
    %c0_36 = arith.constant 0 : index
    %c0_37 = arith.constant 0 : index
    %73 = vector.load %arg13[%c0_36, %c0_37] : memref<1x64xf32, #tpu.memory_space<vmem>>, vector<1x64xf32>
    %74 = vector.broadcast %73 : vector<1x64xf32> to vector<8x64xf32>
    %75 = arith.addf %72, %74 : vector<8x64xf32>
    %cst_38 = arith.constant 0.000000e+00 : f32
    %76 = vector.broadcast %cst_38 : f32 to vector<8x64xf32>
    %77 = arith.maximumf %75, %76 : vector<8x64xf32>
    %78 = arith.truncf %77 : vector<8x64xf32> to vector<8x64xbf16>
    %c0_39 = arith.constant 0 : index
    %c0_40 = arith.constant 0 : index
    %79 = vector.load %arg14[%c0_39, %c0_40] : memref<64x32xbf16, #tpu.memory_space<vmem>>, vector<64x32xbf16>
    %cst_41 = arith.constant dense<0.000000e+00> : vector<8x32xf32>
    %80 = tpu.matmul %78, %79, %cst_41 {dimension_numbers = #tpu.dot_dimension_numbers<[1], [0], [0], [1], [0, 0, 1, 1], [], []>} : vector<8x64xbf16>, vector<64x32xbf16>, vector<8x32xf32> -> vector<8x32xf32>
    %c0_42 = arith.constant 0 : index
    %c0_43 = arith.constant 0 : index
    %81 = vector.load %arg15[%c0_42, %c0_43] : memref<1x32xf32, #tpu.memory_space<vmem>>, vector<1x32xf32>
    %82 = vector.broadcast %81 : vector<1x32xf32> to vector<8x32xf32>
    %83 = arith.addf %80, %82 : vector<8x32xf32>
    %84 = arith.addf %69, %83 : vector<8x32xf32>
    %c0_44 = arith.constant 0 : index
    %c0_45 = arith.constant 0 : index
    %85 = vector.load %arg16[%c0_44, %c0_45] : memref<1x32xf32, #tpu.memory_space<vmem>>, vector<1x32xf32>
    %c0_46 = arith.constant 0 : index
    %c0_47 = arith.constant 0 : index
    %86 = vector.load %arg17[%c0_46, %c0_47] : memref<1x32xf32, #tpu.memory_space<vmem>>, vector<1x32xf32>
    %cst_48 = arith.constant dense<0.000000e+00> : vector<8xf32>
    %87 = vector.multi_reduction <add>, %84, %cst_48 [1] : vector<8x32xf32> to vector<8xf32>
    %88 = vector.shape_cast %87 : vector<8xf32> to vector<8x1xf32>
    %cst_49 = arith.constant 3.200000e+01 : f32
    %89 = vector.broadcast %cst_49 : f32 to vector<8x1xf32>
    %90 = arith.divf %88, %89 : vector<8x1xf32>
    %91 = vector.broadcast %90 : vector<8x1xf32> to vector<8x32xf32>
    %92 = arith.subf %84, %91 : vector<8x32xf32>
    %93 = arith.mulf %92, %92 : vector<8x32xf32>
    %cst_50 = arith.constant dense<0.000000e+00> : vector<8xf32>
    %94 = vector.multi_reduction <add>, %93, %cst_50 [1] : vector<8x32xf32> to vector<8xf32>
    %95 = vector.shape_cast %94 : vector<8xf32> to vector<8x1xf32>
    %cst_51 = arith.constant 3.200000e+01 : f32
    %96 = vector.broadcast %cst_51 : f32 to vector<8x1xf32>
    %97 = arith.divf %95, %96 : vector<8x1xf32>
    %98 = vector.broadcast %90 : vector<8x1xf32> to vector<8x32xf32>
    %99 = arith.subf %84, %98 : vector<8x32xf32>
    %cst_52 = arith.constant 9.99999997E-7 : f32
    %100 = vector.broadcast %cst_52 : f32 to vector<8x1xf32>
    %101 = arith.addf %97, %100 : vector<8x1xf32>
    %102 = math.rsqrt %101 : vector<8x1xf32>
    %103 = vector.broadcast %102 : vector<8x1xf32> to vector<8x32xf32>
    %104 = arith.mulf %99, %103 : vector<8x32xf32>
    %105 = vector.broadcast %85 : vector<1x32xf32> to vector<8x32xf32>
    %106 = arith.mulf %104, %105 : vector<8x32xf32>
    %107 = vector.broadcast %86 : vector<1x32xf32> to vector<8x32xf32>
    %108 = arith.addf %106, %107 : vector<8x32xf32>
    %c0_53 = arith.constant 0 : index
    %c0_54 = arith.constant 0 : index
    %c0_55 = arith.constant 0 : index
    %109 = vector.load %arg18[%c0_53, %c0_54, %c0_55] : memref<1x8x32xf32, #tpu.memory_space<vmem>>, vector<1x8x32xf32>
    %110 = vector.shape_cast %109 : vector<1x8x32xf32> to vector<8x32xf32>
    %111 = vector.shape_cast %108 : vector<8x32xf32> to vector<1x8x32xf32>
    tpu.vector_store %arg18[%c0_53, %c0_54, %c0_55], %111 {strides = array<i32>} : memref<1x8x32xf32, #tpu.memory_space<vmem>>, vector<1x8x32xf32>,
    return
  }
  func.func @transform_0(%arg0: i32, %arg1: i32) -> (i32, i32, i32) {
    %c0_i32 = arith.constant 0 : i32
    %c0_i32_0 = arith.constant 0 : i32
    %c0_i32_1 = arith.constant 0 : i32
    return %arg0, %c0_i32, %c0_i32_0 : i32, i32, i32
  }
  func.func @transform_1(%arg0: i32, %arg1: i32) -> (i32, i32, i32) {
    %c0_i32 = arith.constant 0 : i32
    %c0_i32_0 = arith.constant 0 : i32
    return %arg0, %arg1, %c0_i32 : i32, i32, i32
  }
  func.func @transform_2(%arg0: i32, %arg1: i32) -> (i32, i32) {
    %c0_i32 = arith.constant 0 : i32
    %c0_i32_0 = arith.constant 0 : i32
    %c0_i32_1 = arith.constant 0 : i32
    return %c0_i32, %c0_i32_0 : i32, i32
  }
  func.func @transform_3(%arg0: i32, %arg1: i32) -> (i32, i32) {
    %c0_i32 = arith.constant 0 : i32
    %c0_i32_0 = arith.constant 0 : i32
    %c0_i32_1 = arith.constant 0 : i32
    return %c0_i32, %c0_i32_0 : i32, i32
  }
  func.func @transform_4(%arg0: i32, %arg1: i32) -> (i32, i32) {
    %c0_i32 = arith.constant 0 : i32
    %c0_i32_0 = arith.constant 0 : i32
    %c0_i32_1 = arith.constant 0 : i32
    return %c0_i32, %c0_i32_0 : i32, i32
  }
  func.func @transform_5(%arg0: i32, %arg1: i32) -> (i32, i32) {
    %c0_i32 = arith.constant 0 : i32
    %c0_i32_0 = arith.constant 0 : i32
    %c0_i32_1 = arith.constant 0 : i32
    return %c0_i32, %c0_i32_0 : i32, i32
  }
  func.func @transform_6(%arg0: i32, %arg1: i32) -> (i32, i32) {
    %c0_i32 = arith.constant 0 : i32
    %c0_i32_0 = arith.constant 0 : i32
    %c0_i32_1 = arith.constant 0 : i32
    return %c0_i32, %c0_i32_0 : i32, i32
  }
  func.func @transform_7(%arg0: i32, %arg1: i32) -> (i32, i32) {
    %c0_i32 = arith.constant 0 : i32
    %c0_i32_0 = arith.constant 0 : i32
    %c0_i32_1 = arith.constant 0 : i32
    return %c0_i32, %c0_i32_0 : i32, i32
  }
  func.func @transform_8(%arg0: i32, %arg1: i32) -> (i32, i32) {
    %c0_i32 = arith.constant 0 : i32
    %c0_i32_0 = arith.constant 0 : i32
    %c0_i32_1 = arith.constant 0 : i32
    return %c0_i32, %c0_i32_0 : i32, i32
  }
  func.func @transform_9(%arg0: i32, %arg1: i32) -> (i32, i32) {
    %c0_i32 = arith.constant 0 : i32
    %c0_i32_0 = arith.constant 0 : i32
    %c0_i32_1 = arith.constant 0 : i32
    return %c0_i32, %c0_i32_0 : i32, i32
  }
  func.func @transform_10(%arg0: i32, %arg1: i32) -> (i32, i32) {
    %c0_i32 = arith.constant 0 : i32
    %c0_i32_0 = arith.constant 0 : i32
    %c0_i32_1 = arith.constant 0 : i32
    return %c0_i32, %c0_i32_0 : i32, i32
  }
  func.func @transform_11(%arg0: i32, %arg1: i32) -> (i32, i32) {
    %c0_i32 = arith.constant 0 : i32
    %c0_i32_0 = arith.constant 0 : i32
    %c0_i32_1 = arith.constant 0 : i32
    return %c0_i32, %c0_i32_0 : i32, i32
  }
  func.func @transform_12(%arg0: i32, %arg1: i32) -> (i32, i32) {
    %c0_i32 = arith.constant 0 : i32
    %c0_i32_0 = arith.constant 0 : i32
    %c0_i32_1 = arith.constant 0 : i32
    return %c0_i32, %c0_i32_0 : i32, i32
  }
  func.func @transform_13(%arg0: i32, %arg1: i32) -> (i32, i32) {
    %c0_i32 = arith.constant 0 : i32
    %c0_i32_0 = arith.constant 0 : i32
    %c0_i32_1 = arith.constant 0 : i32
    return %c0_i32, %c0_i32_0 : i32, i32
  }
  func.func @transform_14(%arg0: i32, %arg1: i32) -> (i32, i32) {
    %c0_i32 = arith.constant 0 : i32
    %c0_i32_0 = arith.constant 0 : i32
    %c0_i32_1 = arith.constant 0 : i32
    return %c0_i32, %c0_i32_0 : i32, i32
  }
  func.func @transform_15(%arg0: i32, %arg1: i32) -> (i32, i32) {
    %c0_i32 = arith.constant 0 : i32
    %c0_i32_0 = arith.constant 0 : i32
    %c0_i32_1 = arith.constant 0 : i32
    return %c0_i32, %c0_i32_0 : i32, i32
  }
  func.func @transform_16(%arg0: i32, %arg1: i32) -> (i32, i32, i32) {
    %c0_i32 = arith.constant 0 : i32
    %c0_i32_0 = arith.constant 0 : i32
    return %arg0, %arg1, %c0_i32 : i32, i32, i32
  }
}

module attributes {stable_mosaic.version = 11 : i64} {
  func.func @decoder_block_kernel(%arg0: i32, %arg1: i32, %arg2: memref<1x8x32xf32, #tpu.memory_space<vmem>>, %arg3: memref<1x8x8xf32, #tpu.memory_space<vmem>>, %arg4: memref<32x32xbf16, #tpu.memory_space<vmem>>, %arg5: memref<1x32xf32, #tpu.memory_space<vmem>>, %arg6: memref<32x64xbf16, #tpu.memory_space<vmem>>, %arg7: memref<1x64xf32, #tpu.memory_space<vmem>>, %arg8: memref<32x32xbf16, #tpu.memory_space<vmem>>, %arg9: memref<1x32xf32, #tpu.memory_space<vmem>>, %arg10: memref<1x32xf32, #tpu.memory_space<vmem>>, %arg11: memref<1x32xf32, #tpu.memory_space<vmem>>, %arg12: memref<32x64xbf16, #tpu.memory_space<vmem>>, %arg13: memref<1x64xf32, #tpu.memory_space<vmem>>, %arg14: memref<64x32xbf16, #tpu.memory_space<vmem>>, %arg15: memref<1x32xf32, #tpu.memory_space<vmem>>, %arg16: memref<1x32xf32, #tpu.memory_space<vmem>>, %arg17: memref<1x32xf32, #tpu.memory_space<vmem>>, %arg18: memref<1x8x32xf32, #tpu.memory_space<vmem>>, %arg19: memref<4x8x8xbf16, #tpu.memory_space<vmem>>, %arg20: memref<4x8x8xbf16, #tpu.memory_space<vmem>>) attributes {dimension_semantics = [#tpu.dimension_semantics<parallel>, #tpu.dimension_semantics<arbitrary>], iteration_bounds = array<i64: 2, 1>, scalar_prefetch = 0 : i64, scratch_operands = 2 : i64, tpu.core_type = #tpu.core_type<tc>, window_params = [{transform_indices = @transform_0, window_bounds = array<i64: 1, 8, 32>}, {transform_indices = @transform_1, window_bounds = array<i64: 1, 8, 8>}, {pipeline_mode = #tpu.pipeline_mode<synchronous>, transform_indices = @transform_2, window_bounds = array<i64: 32, 32>}, {pipeline_mode = #tpu.pipeline_mode<synchronous>, transform_indices = @transform_3, window_bounds = array<i64: 1, 32>}, {pipeline_mode = #tpu.pipeline_mode<synchronous>, transform_indices = @transform_4, window_bounds = array<i64: 32, 64>}, {pipeline_mode = #tpu.pipeline_mode<synchronous>, transform_indices = @transform_5, window_bounds = array<i64: 1, 64>}, {pipeline_mode = #tpu.pipeline_mode<synchronous>, transform_indices = @transform_6, window_bounds = array<i64: 32, 32>}, {pipeline_mode = #tpu.pipeline_mode<synchronous>, transform_indices = @transform_7, window_bounds = array<i64: 1, 32>}, {pipeline_mode = #tpu.pipeline_mode<synchronous>, transform_indices = @transform_8, window_bounds = array<i64: 1, 32>}, {pipeline_mode = #tpu.pipeline_mode<synchronous>, transform_indices = @transform_9, window_bounds = array<i64: 1, 32>}, {pipeline_mode = #tpu.pipeline_mode<synchronous>, transform_indices = @transform_10, window_bounds = array<i64: 32, 64>}, {pipeline_mode = #tpu.pipeline_mode<synchronous>, transform_indices = @transform_11, window_bounds = array<i64: 1, 64>}, {pipeline_mode = #tpu.pipeline_mode<synchronous>, transform_indices = @transform_12, window_bounds = array<i64: 64, 32>}, {pipeline_mode = #tpu.pipeline_mode<synchronous>, transform_indices = @transform_13, window_bounds = array<i64: 1, 32>}, {pipeline_mode = #tpu.pipeline_mode<synchronous>, transform_indices = @transform_14, window_bounds = array<i64: 1, 32>}, {pipeline_mode = #tpu.pipeline_mode<synchronous>, transform_indices = @transform_15, window_bounds = array<i64: 1, 32>}, {transform_indices = @transform_16, window_bounds = array<i64: 1, 8, 32>}]} {
    %c0_i32 = arith.constant 0 : i32
    %0 = arith.cmpi eq, %arg1, %c0_i32 : i32
    %1 = arith.extui %0 : i1 to i32
    %c0_i32_0 = arith.constant 0 : i32
    %2 = arith.cmpi ne, %1, %c0_i32_0 : i32
    scf.if %2 {
      %c0_56 = arith.constant 0 : index
      %c0_57 = arith.constant 0 : index
      %c0_58 = arith.constant 0 : index
      %112 = vector.load %arg2[%c0_56, %c0_57, %c0_58] : memref<1x8x32xf32, #tpu.memory_space<vmem>>, vector<1x8x32xf32>
      %113 = vector.shape_cast %112 : vector<1x8x32xf32> to vector<8x32xf32>
      %114 = arith.truncf %113 : vector<8x32xf32> to vector<8x32xbf16>
      %c0_59 = arith.constant 0 : index
      %c0_60 = arith.constant 0 : index
      %115 = vector.load %arg6[%c0_59, %c0_60] : memref<32x64xbf16, #tpu.memory_space<vmem>>, vector<32x64xbf16>
      %cst_61 = arith.constant dense<0.000000e+00> : vector<8x64xf32>
      %116 = tpu.matmul %114, %115, %cst_61 {dimension_numbers = #tpu.dot_dimension_numbers<[1], [0], [0], [1], [0, 0, 1, 1], [], []>} : vector<8x32xbf16>, vector<32x64xbf16>, vector<8x64xf32> -> vector<8x64xf32>
      %c0_62 = arith.constant 0 : index
      %c0_63 = arith.constant 0 : index
      %117 = vector.load %arg7[%c0_62, %c0_63] : memref<1x64xf32, #tpu.memory_space<vmem>>, vector<1x64xf32>
      %118 = vector.broadcast %117 : vector<1x64xf32> to vector<8x64xf32>
      %119 = arith.addf %116, %118 : vector<8x64xf32>
      %120 = vector.extract_strided_slice %119 {offsets = [0, 0], sizes = [8, 32], strides = [1, 1]} : vector<8x64xf32> to vector<8x32xf32>
      %121 = vector.extract_strided_slice %119 {offsets = [0, 32], sizes = [8, 32], strides = [1, 1]} : vector<8x64xf32> to vector<8x32xf32>
      %122 = vector.shape_cast %120 : vector<8x32xf32> to vector<8x4x8xf32>
      %123 = tpu.transpose %122, [1, 0, 2] : vector<8x4x8xf32> -> vector<4x8x8xf32>
      %124 = arith.truncf %123 : vector<4x8x8xf32> to vector<4x8x8xbf16>
      %c0_64 = arith.constant 0 : index
      %c0_65 = arith.constant 0 : index
      %c0_66 = arith.constant 0 : index
      %125 = vector.load %arg19[%c0_64, %c0_65, %c0_66] : memref<4x8x8xbf16, #tpu.memory_space<vmem>>, vector<4x8x8xbf16>
      tpu.vector_store %arg19[%c0_64, %c0_65, %c0_66], %124 {strides = array<i32>} : memref<4x8x8xbf16, #tpu.memory_space<vmem>>, vector<4x8x8xbf16>,
      %126 = vector.shape_cast %121 : vector<8x32xf32> to vector<8x4x8xf32>
      %127 = tpu.transpose %126, [1, 0, 2] : vector<8x4x8xf32> -> vector<4x8x8xf32>
      %128 = arith.truncf %127 : vector<4x8x8xf32> to vector<4x8x8xbf16>
      %c0_67 = arith.constant 0 : index
      %c0_68 = arith.constant 0 : index
      %c0_69 = arith.constant 0 : index
      %129 = vector.load %arg20[%c0_67, %c0_68, %c0_69] : memref<4x8x8xbf16, #tpu.memory_space<vmem>>, vector<4x8x8xbf16>
      tpu.vector_store %arg20[%c0_67, %c0_68, %c0_69], %128 {strides = array<i32>} : memref<4x8x8xbf16, #tpu.memory_space<vmem>>, vector<4x8x8xbf16>,
    } else {
    }
    %c8_i32 = arith.constant 8 : i32
    %3 = arith.muli %arg1, %c8_i32 : i32
    %4 = tpu.assume_multiple %3, 8 : i32
    %c0 = arith.constant 0 : index
    %5 = arith.index_cast %4 : i32 to index
    %c0_1 = arith.constant 0 : index
    %6 = vector.load %arg2[%c0, %5, %c0_1] : memref<1x8x32xf32, #tpu.memory_space<vmem>>, vector<1x8x32xf32>
    %7 = vector.shape_cast %6 : vector<1x8x32xf32> to vector<8x32xf32>
    %c0_2 = arith.constant 0 : index
    %c0_3 = arith.constant 0 : index
    %c0_4 = arith.constant 0 : index
    %8 = vector.load %arg3[%c0_2, %c0_3, %c0_4] : memref<1x8x8xf32, #tpu.memory_space<vmem>>, vector<1x8x8xf32>
    %9 = vector.shape_cast %8 : vector<1x8x8xf32> to vector<8x8xf32>
    %10 = arith.truncf %7 : vector<8x32xf32> to vector<8x32xbf16>
    %c0_5 = arith.constant 0 : index
    %c0_6 = arith.constant 0 : index
    %11 = vector.load %arg4[%c0_5, %c0_6] : memref<32x32xbf16, #tpu.memory_space<vmem>>, vector<32x32xbf16>
    %cst = arith.constant dense<0.000000e+00> : vector<8x32xf32>
    %12 = tpu.matmul %10, %11, %cst {dimension_numbers = #tpu.dot_dimension_numbers<[1], [0], [0], [1], [0, 0, 1, 1], [], []>} : vector<8x32xbf16>, vector<32x32xbf16>, vector<8x32xf32> -> vector<8x32xf32>
    %c0_7 = arith.constant 0 : index
    %c0_8 = arith.constant 0 : index
    %13 = vector.load %arg5[%c0_7, %c0_8] : memref<1x32xf32, #tpu.memory_space<vmem>>, vector<1x32xf32>
    %14 = vector.broadcast %13 : vector<1x32xf32> to vector<8x32xf32>
    %15 = arith.addf %12, %14 : vector<8x32xf32>
    %16 = vector.shape_cast %15 : vector<8x32xf32> to vector<8x4x8xf32>
    %17 = tpu.transpose %16, [1, 0, 2] : vector<8x4x8xf32> -> vector<4x8x8xf32>
    %18 = arith.truncf %17 : vector<4x8x8xf32> to vector<4x8x8xbf16>
    %c0_9 = arith.constant 0 : index
    %c0_10 = arith.constant 0 : index
    %c0_11 = arith.constant 0 : index
    %19 = vector.load %arg19[%c0_9, %c0_10, %c0_11] : memref<4x8x8xbf16, #tpu.memory_space<vmem>>, vector<4x8x8xbf16>
    "tpu.trace_start"() <{level = 10 : i32, message = "hqd,hkd->hqk"}> : () -> ()
    %cst_12 = arith.constant dense<0.000000e+00> : vector<4x8x8xf32>
    %20 = tpu.matmul %18, %19, %cst_12 {dimension_numbers = #tpu.dot_dimension_numbers<[2], [2], [1], [1], [0, 0, 0, 1, 1, 1], [0], [0]>} : vector<4x8x8xbf16>, vector<4x8x8xbf16>, vector<4x8x8xf32> -> vector<4x8x8xf32>
    "tpu.trace_stop"() : () -> ()
    %21 = vector.shape_cast %9 : vector<8x8xf32> to vector<1x8x8xf32>
    %22 = vector.broadcast %21 : vector<1x8x8xf32> to vector<4x8x8xf32>
    %23 = arith.addf %20, %22 : vector<4x8x8xf32>
    %cst_13 = arith.constant dense<0xFF800000> : vector<4x8xf32>
    %24 = vector.multi_reduction <maximumf>, %23, %cst_13 [2] : vector<4x8x8xf32> to vector<4x8xf32>
    %25 = vector.shape_cast %24 : vector<4x8xf32> to vector<4x8x1xf32>
    %26 = vector.broadcast %25 : vector<4x8x1xf32> to vector<4x8x8xf32>
    %27 = arith.subf %23, %26 : vector<4x8x8xf32>
    %28 = math.exp %27 : vector<4x8x8xf32>
    %cst_14 = arith.constant dense<0.000000e+00> : vector<4x8xf32>
    %29 = vector.multi_reduction <add>, %28, %cst_14 [2] : vector<4x8x8xf32> to vector<4x8xf32>
    %30 = vector.shape_cast %29 : vector<4x8xf32> to vector<4x8x1xf32>
    %31 = tpu.reciprocal %30 {approx = true} : vector<4x8x1xf32> -> vector<4x8x1xf32>
    %32 = vector.broadcast %31 : vector<4x8x1xf32> to vector<4x8x8xf32>
    %33 = arith.mulf %28, %32 : vector<4x8x8xf32>
    %34 = arith.truncf %33 : vector<4x8x8xf32> to vector<4x8x8xbf16>
    %c0_15 = arith.constant 0 : index
    %c0_16 = arith.constant 0 : index
    %c0_17 = arith.constant 0 : index
    %35 = vector.load %arg20[%c0_15, %c0_16, %c0_17] : memref<4x8x8xbf16, #tpu.memory_space<vmem>>, vector<4x8x8xbf16>
    "tpu.trace_start"() <{level = 10 : i32, message = "hqk,hkd->hqd"}> : () -> ()
    %cst_18 = arith.constant dense<0.000000e+00> : vector<4x8x8xf32>
    %36 = tpu.matmul %34, %35, %cst_18 {dimension_numbers = #tpu.dot_dimension_numbers<[2], [1], [1], [2], [0, 0, 0, 1, 1, 2], [0], [0]>} : vector<4x8x8xbf16>, vector<4x8x8xbf16>, vector<4x8x8xf32> -> vector<4x8x8xf32>
    "tpu.trace_stop"() : () -> ()
    %37 = tpu.transpose %36, [1, 0, 2] : vector<4x8x8xf32> -> vector<8x4x8xf32>
    %38 = vector.shape_cast %37 : vector<8x4x8xf32> to vector<8x32xf32>
    %39 = arith.truncf %38 : vector<8x32xf32> to vector<8x32xbf16>
    %c0_19 = arith.constant 0 : index
    %c0_20 = arith.constant 0 : index
    %40 = vector.load %arg8[%c0_19, %c0_20] : memref<32x32xbf16, #tpu.memory_space<vmem>>, vector<32x32xbf16>
    %cst_21 = arith.constant dense<0.000000e+00> : vector<8x32xf32>
    %41 = tpu.matmul %39, %40, %cst_21 {dimension_numbers = #tpu.dot_dimension_numbers<[1], [0], [0], [1], [0, 0, 1, 1], [], []>} : vector<8x32xbf16>, vector<32x32xbf16>, vector<8x32xf32> -> vector<8x32xf32>
    %c0_22 = arith.constant 0 : index
    %c0_23 = arith.constant 0 : index
    %42 = vector.load %arg9[%c0_22, %c0_23] : memref<1x32xf32, #tpu.memory_space<vmem>>, vector<1x32xf32>
    %43 = vector.broadcast %42 : vector<1x32xf32> to vector<8x32xf32>
    %44 = arith.addf %41, %43 : vector<8x32xf32>
    %45 = arith.addf %7, %44 : vector<8x32xf32>
    %c0_24 = arith.constant 0 : index
    %c0_25 = arith.constant 0 : index
    %46 = vector.load %arg10[%c0_24, %c0_25] : memref<1x32xf32, #tpu.memory_space<vmem>>, vector<1x32xf32>
    %c0_26 = arith.constant 0 : index
    %c0_27 = arith.constant 0 : index
    %47 = vector.load %arg11[%c0_26, %c0_27] : memref<1x32xf32, #tpu.memory_space<vmem>>, vector<1x32xf32>
    %cst_28 = arith.constant dense<0.000000e+00> : vector<8xf32>
    %48 = vector.multi_reduction <add>, %45, %cst_28 [1] : vector<8x32xf32> to vector<8xf32>
    %49 = vector.shape_cast %48 : vector<8xf32> to vector<8x1xf32>
    %cst_29 = arith.constant 3.200000e+01 : f32
    %50 = vector.broadcast %cst_29 : f32 to vector<8x1xf32>
    %51 = arith.divf %49, %50 : vector<8x1xf32>
    %52 = vector.broadcast %51 : vector<8x1xf32> to vector<8x32xf32>
    %53 = arith.subf %45, %52 : vector<8x32xf32>
    %54 = arith.mulf %53, %53 : vector<8x32xf32>
    %cst_30 = arith.constant dense<0.000000e+00> : vector<8xf32>
    %55 = vector.multi_reduction <add>, %54, %cst_30 [1] : vector<8x32xf32> to vector<8xf32>
    %56 = vector.shape_cast %55 : vector<8xf32> to vector<8x1xf32>
    %cst_31 = arith.constant 3.200000e+01 : f32
    %57 = vector.broadcast %cst_31 : f32 to vector<8x1xf32>
    %58 = arith.divf %56, %57 : vector<8x1xf32>
    %59 = vector.broadcast %51 : vector<8x1xf32> to vector<8x32xf32>
    %60 = arith.subf %45, %59 : vector<8x32xf32>
    %cst_32 = arith.constant 9.99999997E-7 : f32
    %61 = vector.broadcast %cst_32 : f32 to vector<8x1xf32>
    %62 = arith.addf %58, %61 : vector<8x1xf32>
    %63 = math.rsqrt %62 : vector<8x1xf32>
    %64 = vector.broadcast %63 : vector<8x1xf32> to vector<8x32xf32>
    %65 = arith.mulf %60, %64 : vector<8x32xf32>
    %66 = vector.broadcast %46 : vector<1x32xf32> to vector<8x32xf32>
    %67 = arith.mulf %65, %66 : vector<8x32xf32>
    %68 = vector.broadcast %47 : vector<1x32xf32> to vector<8x32xf32>
    %69 = arith.addf %67, %68 : vector<8x32xf32>
    %70 = arith.truncf %69 : vector<8x32xf32> to vector<8x32xbf16>
    %c0_33 = arith.constant 0 : index
    %c0_34 = arith.constant 0 : index
    %71 = vector.load %arg12[%c0_33, %c0_34] : memref<32x64xbf16, #tpu.memory_space<vmem>>, vector<32x64xbf16>
    %cst_35 = arith.constant dense<0.000000e+00> : vector<8x64xf32>
    %72 = tpu.matmul %70, %71, %cst_35 {dimension_numbers = #tpu.dot_dimension_numbers<[1], [0], [0], [1], [0, 0, 1, 1], [], []>} : vector<8x32xbf16>, vector<32x64xbf16>, vector<8x64xf32> -> vector<8x64xf32>
    %c0_36 = arith.constant 0 : index
    %c0_37 = arith.constant 0 : index
    %73 = vector.load %arg13[%c0_36, %c0_37] : memref<1x64xf32, #tpu.memory_space<vmem>>, vector<1x64xf32>
    %74 = vector.broadcast %73 : vector<1x64xf32> to vector<8x64xf32>
    %75 = arith.addf %72, %74 : vector<8x64xf32>
    %cst_38 = arith.constant 0.000000e+00 : f32
    %76 = vector.broadcast %cst_38 : f32 to vector<8x64xf32>
    %77 = arith.maximumf %75, %76 : vector<8x64xf32>
    %78 = arith.truncf %77 : vector<8x64xf32> to vector<8x64xbf16>
    %c0_39 = arith.constant 0 : index
    %c0_40 = arith.constant 0 : index
    %79 = vector.load %arg14[%c0_39, %c0_40] : memref<64x32xbf16, #tpu.memory_space<vmem>>, vector<64x32xbf16>
    %cst_41 = arith.constant dense<0.000000e+00> : vector<8x32xf32>
    %80 = tpu.matmul %78, %79, %cst_41 {dimension_numbers = #tpu.dot_dimension_numbers<[1], [0], [0], [1], [0, 0, 1, 1], [], []>} : vector<8x64xbf16>, vector<64x32xbf16>, vector<8x32xf32> -> vector<8x32xf32>
    %c0_42 = arith.constant 0 : index
    %c0_43 = arith.constant 0 : index
    %81 = vector.load %arg15[%c0_42, %c0_43] : memref<1x32xf32, #tpu.memory_space<vmem>>, vector<1x32xf32>
    %82 = vector.broadcast %81 : vector<1x32xf32> to vector<8x32xf32>
    %83 = arith.addf %80, %82 : vector<8x32xf32>
    %84 = arith.addf %69, %83 : vector<8x32xf32>
    %c0_44 = arith.constant 0 : index
    %c0_45 = arith.constant 0 : index
    %85 = vector.load %arg16[%c0_44, %c0_45] : memref<1x32xf32, #tpu.memory_space<vmem>>, vector<1x32xf32>
    %c0_46 = arith.constant 0 : index
    %c0_47 = arith.constant 0 : index
    %86 = vector.load %arg17[%c0_46, %c0_47] : memref<1x32xf32, #tpu.memory_space<vmem>>, vector<1x32xf32>
    %cst_48 = arith.constant dense<0.000000e+00> : vector<8xf32>
    %87 = vector.multi_reduction <add>, %84, %cst_48 [1] : vector<8x32xf32> to vector<8xf32>
    %88 = vector.shape_cast %87 : vector<8xf32> to vector<8x1xf32>
    %cst_49 = arith.constant 3.200000e+01 : f32
    %89 = vector.broadcast %cst_49 : f32 to vector<8x1xf32>
    %90 = arith.divf %88, %89 : vector<8x1xf32>
    %91 = vector.broadcast %90 : vector<8x1xf32> to vector<8x32xf32>
    %92 = arith.subf %84, %91 : vector<8x32xf32>
    %93 = arith.mulf %92, %92 : vector<8x32xf32>
    %cst_50 = arith.constant dense<0.000000e+00> : vector<8xf32>
    %94 = vector.multi_reduction <add>, %93, %cst_50 [1] : vector<8x32xf32> to vector<8xf32>
    %95 = vector.shape_cast %94 : vector<8xf32> to vector<8x1xf32>
    %cst_51 = arith.constant 3.200000e+01 : f32
    %96 = vector.broadcast %cst_51 : f32 to vector<8x1xf32>
    %97 = arith.divf %95, %96 : vector<8x1xf32>
    %98 = vector.broadcast %90 : vector<8x1xf32> to vector<8x32xf32>
    %99 = arith.subf %84, %98 : vector<8x32xf32>
    %cst_52 = arith.constant 9.99999997E-7 : f32
    %100 = vector.broadcast %cst_52 : f32 to vector<8x1xf32>
    %101 = arith.addf %97, %100 : vector<8x1xf32>
    %102 = math.rsqrt %101 : vector<8x1xf32>
    %103 = vector.broadcast %102 : vector<8x1xf32> to vector<8x32xf32>
    %104 = arith.mulf %99, %103 : vector<8x32xf32>
    %105 = vector.broadcast %85 : vector<1x32xf32> to vector<8x32xf32>
    %106 = arith.mulf %104, %105 : vector<8x32xf32>
    %107 = vector.broadcast %86 : vector<1x32xf32> to vector<8x32xf32>
    %108 = arith.addf %106, %107 : vector<8x32xf32>
    %c0_53 = arith.constant 0 : index
    %c0_54 = arith.constant 0 : index
    %c0_55 = arith.constant 0 : index
    %109 = vector.load %arg18[%c0_53, %c0_54, %c0_55] : memref<1x8x32xf32, #tpu.memory_space<vmem>>, vector<1x8x32xf32>
    %110 = vector.shape_cast %109 : vector<1x8x32xf32> to vector<8x32xf32>
    %111 = vector.shape_cast %108 : vector<8x32xf32> to vector<1x8x32xf32>
    tpu.vector_store %arg18[%c0_53, %c0_54, %c0_55], %111 {strides = array<i32>} : memref<1x8x32xf32, #tpu.memory_space<vmem>>, vector<1x8x32xf32>,
    return
  }
  func.func @transform_0(%arg0: i32, %arg1: i32) -> (i32, i32, i32) {
    %c0_i32 = arith.constant 0 : i32
    %c0_i32_0 = arith.constant 0 : i32
    %c0_i32_1 = arith.constant 0 : i32
    return %arg0, %c0_i32, %c0_i32_0 : i32, i32, i32
  }
  func.func @transform_1(%arg0: i32, %arg1: i32) -> (i32, i32, i32) {
    %c0_i32 = arith.constant 0 : i32
    %c0_i32_0 = arith.constant 0 : i32
    return %arg0, %arg1, %c0_i32 : i32, i32, i32
  }
  func.func @transform_2(%arg0: i32, %arg1: i32) -> (i32, i32) {
    %c0_i32 = arith.constant 0 : i32
    %c0_i32_0 = arith.constant 0 : i32
    %c0_i32_1 = arith.constant 0 : i32
    return %c0_i32, %c0_i32_0 : i32, i32
  }
  func.func @transform_3(%arg0: i32, %arg1: i32) -> (i32, i32) {
    %c0_i32 = arith.constant 0 : i32
    %c0_i32_0 = arith.constant 0 : i32
    %c0_i32_1 = arith.constant 0 : i32
    return %c0_i32, %c0_i32_0 : i32, i32
  }
  func.func @transform_4(%arg0: i32, %arg1: i32) -> (i32, i32) {
    %c0_i32 = arith.constant 0 : i32
    %c0_i32_0 = arith.constant 0 : i32
    %c0_i32_1 = arith.constant 0 : i32
    return %c0_i32, %c0_i32_0 : i32, i32
  }
  func.func @transform_5(%arg0: i32, %arg1: i32) -> (i32, i32) {
    %c0_i32 = arith.constant 0 : i32
    %c0_i32_0 = arith.constant 0 : i32
    %c0_i32_1 = arith.constant 0 : i32
    return %c0_i32, %c0_i32_0 : i32, i32
  }
  func.func @transform_6(%arg0: i32, %arg1: i32) -> (i32, i32) {
    %c0_i32 = arith.constant 0 : i32
    %c0_i32_0 = arith.constant 0 : i32
    %c0_i32_1 = arith.constant 0 : i32
    return %c0_i32, %c0_i32_0 : i32, i32
  }
  func.func @transform_7(%arg0: i32, %arg1: i32) -> (i32, i32) {
    %c0_i32 = arith.constant 0 : i32
    %c0_i32_0 = arith.constant 0 : i32
    %c0_i32_1 = arith.constant 0 : i32
    return %c0_i32, %c0_i32_0 : i32, i32
  }
  func.func @transform_8(%arg0: i32, %arg1: i32) -> (i32, i32) {
    %c0_i32 = arith.constant 0 : i32
    %c0_i32_0 = arith.constant 0 : i32
    %c0_i32_1 = arith.constant 0 : i32
    return %c0_i32, %c0_i32_0 : i32, i32
  }
  func.func @transform_9(%arg0: i32, %arg1: i32) -> (i32, i32) {
    %c0_i32 = arith.constant 0 : i32
    %c0_i32_0 = arith.constant 0 : i32
    %c0_i32_1 = arith.constant 0 : i32
    return %c0_i32, %c0_i32_0 : i32, i32
  }
  func.func @transform_10(%arg0: i32, %arg1: i32) -> (i32, i32) {
    %c0_i32 = arith.constant 0 : i32
    %c0_i32_0 = arith.constant 0 : i32
    %c0_i32_1 = arith.constant 0 : i32
    return %c0_i32, %c0_i32_0 : i32, i32
  }
  func.func @transform_11(%arg0: i32, %arg1: i32) -> (i32, i32) {
    %c0_i32 = arith.constant 0 : i32
    %c0_i32_0 = arith.constant 0 : i32
    %c0_i32_1 = arith.constant 0 : i32
    return %c0_i32, %c0_i32_0 : i32, i32
  }
  func.func @transform_12(%arg0: i32, %arg1: i32) -> (i32, i32) {
    %c0_i32 = arith.constant 0 : i32
    %c0_i32_0 = arith.constant 0 : i32
    %c0_i32_1 = arith.constant 0 : i32
    return %c0_i32, %c0_i32_0 : i32, i32
  }
  func.func @transform_13(%arg0: i32, %arg1: i32) -> (i32, i32) {
    %c0_i32 = arith.constant 0 : i32
    %c0_i32_0 = arith.constant 0 : i32
    %c0_i32_1 = arith.constant 0 : i32
    return %c0_i32, %c0_i32_0 : i32, i32
  }
  func.func @transform_14(%arg0: i32, %arg1: i32) -> (i32, i32) {
    %c0_i32 = arith.constant 0 : i32
    %c0_i32_0 = arith.constant 0 : i32
    %c0_i32_1 = arith.constant 0 : i32
    return %c0_i32, %c0_i32_0 : i32, i32
  }
  func.func @transform_15(%arg0: i32, %arg1: i32) -> (i32, i32) {
    %c0_i32 = arith.constant 0 : i32
    %c0_i32_0 = arith.constant 0 : i32
    %c0_i32_1 = arith.constant 0 : i32
    return %c0_i32, %c0_i32_0 : i32, i32
  }
  func.func @transform_16(%arg0: i32, %arg1: i32) -> (i32, i32, i32) {
    %c0_i32 = arith.constant 0 : i32
    %c0_i32_0 = arith.constant 0 : i32
    return %arg0, %arg1, %c0_i32 : i32, i32, i32
  }
}

</mosaic_0001>

<llo_original>
// kernel: tpu_custom_call.1
$region0: #{tpu_custom_call.1}
  #allocation0 [shape = 'u32[]', space=smem, size = 0x4, offset = 0x4, fixed_abs, tag = 'smem constant byte address 0x4 - core index']
  #allocation1 [shape = 'u32[144,128]{1,0:T(1,128)}', space=vmem, size = 0x12000, scoped, tag = 'internal scratch']
  #allocation2 [shape = 'bf16[4,8,8]{2,1,0:T(8,128)(2,1)}', space=vmem, size = 0x2000, scoped, tag = 'scratch operand']
  #allocation3 [shape = 'bf16[4,8,8]{2,1,0:T(8,128)(2,1)}', space=vmem, size = 0x2000, scoped, tag = 'scratch operand']
  %s0 = inlined_call_operand.vmem [shape: f32[2,8,32], index: 0, kind: input, shape index: {}]
  %s1 = inlined_call_operand.vmem [shape: f32[2,8,8], index: 1, kind: input, shape index: {}]
  %s2 = inlined_call_operand.vmem [shape: bf16[32,32], index: 2, kind: input, shape index: {}]
  %s3 = inlined_call_operand.hbm [shape: f32[1,32], index: 3, kind: input, shape index: {}]
  %s4 = inlined_call_operand.hbm [shape: bf16[32,64], index: 4, kind: input, shape index: {}]
  %s5 = inlined_call_operand.hbm [shape: f32[1,64], index: 5, kind: input, shape index: {}]
  %s6 = inlined_call_operand.hbm [shape: bf16[32,32], index: 6, kind: input, shape index: {}]
  %s7 = inlined_call_operand.hbm [shape: f32[1,32], index: 7, kind: input, shape index: {}]
  %s8 = inlined_call_operand.hbm [shape: f32[1,32], index: 8, kind: input, shape index: {}]
  %s9 = inlined_call_operand.hbm [shape: f32[1,32], index: 9, kind: input, shape index: {}]
  %s10 = inlined_call_operand.vmem [shape: bf16[32,64], index: 10, kind: input, shape index: {}]
  %s11 = inlined_call_operand.vmem [shape: f32[1,64], index: 11, kind: input, shape index: {}]
  %s12 = inlined_call_operand.vmem [shape: bf16[64,32], index: 12, kind: input, shape index: {}]
  %s13 = inlined_call_operand.vmem [shape: f32[1,32], index: 13, kind: input, shape index: {}]
  %s14 = inlined_call_operand.vmem [shape: f32[1,32], index: 14, kind: input, shape index: {}]
  %s15 = inlined_call_operand.vmem [shape: f32[1,32], index: 15, kind: input, shape index: {}]
  %s16 = inlined_call_operand.hbm [shape: f32[2,8,32], index: 16, kind: output, shape index: {}]
  %s17 = sld [smem:[#allocation0]]
  $region129: #{tpu_custom_call.1} parent=0
    _
  %s19 = ssub.s32 1, %s17
  %s20 = scalar_select 0, %s19, %s17
  $region1: #{tpu_custom_call.1} parent=0
    #allocation4 [shape = 'u8[512]{0}', space=vmem, size = 0x400, scoped, tag = 'input window, operand 3, single buffered']
    #allocation5 [shape = 's32[2]{0}', space=sflag, size = 0x8, scoped, tag = 'scoped memory for tpu_custom_call.1']
    #allocation6 [shape = 's32[2]{0}', space=sflag, size = 0x8, scoped, tag = 'scoped memory for tpu_custom_call.1']
    #allocation7 [shape = 'u8[8192]{0}', space=vmem, size = 0x2000, scoped, tag = 'input window, operand 4, single buffered']
    #allocation8 [shape = 's32[1]{0}', space=sflag, size = 0x4, scoped, tag = 'scoped memory for tpu_custom_call.1']
    #allocation9 [shape = 'u8[512]{0}', space=vmem, size = 0x400, scoped, tag = 'input window, operand 5, single buffered']
    #allocation10 [shape = 'u8[8192]{0}', space=vmem, size = 0x2000, scoped, tag = 'input window, operand 6, single buffered']
    #allocation11 [shape = 's32[1]{0}', space=sflag, size = 0x4, scoped, tag = 'scoped memory for tpu_custom_call.1']
    #allocation12 [shape = 'u8[512]{0}', space=vmem, size = 0x400, scoped, tag = 'input window, operand 7, single buffered']
    #allocation13 [shape = 'u8[512]{0}', space=vmem, size = 0x400, scoped, tag = 'input window, operand 8, single buffered']
    #allocation14 [shape = 's32[1]{0}', space=sflag, size = 0x4, scoped, tag = 'scoped memory for tpu_custom_call.1']
    #allocation15 [shape = 'u8[512]{0}', space=vmem, size = 0x400, scoped, tag = 'input window, operand 9, single buffered']
    #allocation16 [shape = 'u8[8192]{0}', space=vmem, size = 0x2000, scoped, tag = 'output window, operand 0']
    %21 = vsyncpa [#allocation5], 0
    %22 = vsyncpa [#allocation8], 0
    %23 = vsyncpa [#allocation11], 0
    %24 = vsyncpa [#allocation14], 0
    %25 = vsyncpa [#allocation6], 0
    %s26 = scalar_lea.sflag [#allocation6], 1
    %27 = vsyncpa %s26, 0
    loop: start=0, step=1, limit=4
    $region2: #{tpu_custom_call.1} parent=1 // loop_pre_header
      _
    $region3: #{tpu_custom_call.1} parent=1 // loop_header
      %s29 = sphi 0, %s33
      %p30 = scmp.ge.s32.totalorder %s29, 4
      %s36 = sphi 0, %s48
      %s37 = sphi 0, %s44
      %s38 = sphi 0, %s36
      %s39 = sphi 0, %s37
      %s40 = sphi 0, %s38
      %s41 = sphi 0, %s39
      %s51 = sphi 0, %s53
      %s54 = sphi 0, %s51
      %s55 = sphi 0, %s54
      %s71 = sphi 0, %s55
      %s79 = sphi 0, %s81
      %s82 = sphi 0, %s79
      %s83 = sphi 0, %s82
      %s99 = sphi 0, %s83
      %s103 = sphi 0, %s103
      %s105 = sphi 0, %s103
      %s106 = sphi 0, %s105
      %s120 = sphi 0, %s106
      %s124 = sphi 0, %s124
      %s126 = sphi 0, %s124
      %s127 = sphi 0, %s126
      %s141 = sphi 0, %s127
      %s145 = sphi 0, %s145
      %s147 = sphi 0, %s145
      %s148 = sphi 0, %s147
      %s162 = sphi 0, %s148
      %s166 = sphi 0, %s166
      %s168 = sphi 0, %s166
      %s169 = sphi 0, %s168
      %s183 = sphi 0, %s169
      %s187 = sphi 0, %s187
      %s189 = sphi 0, %s187
      %s190 = sphi 0, %s189
      %s204 = sphi 0, %s190
      %s208 = sphi 0, %s208
      %s210 = sphi 0, %s208
      %s211 = sphi 0, %s210
      %s225 = sphi 0, %s211
      %s229 = sphi 0, %s229
      %s231 = sphi 0, %s229
      %s232 = sphi 0, %s231
      %s246 = sphi 0, %s232
      %s250 = sphi 0, %s250
      %s252 = sphi 0, %s250
      %s253 = sphi 0, %s252
      %s267 = sphi 0, %s253
      %s271 = sphi 0, %s271
      %s273 = sphi 0, %s271
      %s274 = sphi 0, %s273
      %s288 = sphi 0, %s274
      %s292 = sphi 0, %s292
      %s294 = sphi 0, %s292
      %s295 = sphi 0, %s294
      %s309 = sphi 0, %s295
      %s313 = sphi 0, %s313
      %s315 = sphi 0, %s313
      %s316 = sphi 0, %s315
      %s330 = sphi 0, %s316
      %s334 = sphi 0, %s334
      %s336 = sphi 0, %s334
      %s337 = sphi 0, %s336
      %s351 = sphi 0, %s337
      %s355 = sphi 0, %s355
      %s357 = sphi 0, %s355
      %s358 = sphi 0, %s357
      %s372 = sphi 0, %s358
      %s376 = sphi 0, %s376
      %s378 = sphi 0, %s376
      %s379 = sphi 0, %s378
      %s393 = sphi 0, %s379
      %s401 = sphi 0, %s403
      %s404 = sphi 0, %s401
      %s405 = sphi 0, %s404
      %s421 = sphi 0, %s405
    $region4: #{tpu_custom_call.1} parent=1 // loop_header_branch
      %32 = sbr.rel (%p30) target = $region8
    $region5: #{tpu_custom_call.1} parent=1 // loop_body
      %s34 = ssub.s32 %s29, 1
      %s35 = ssub.s32 %s29, 2
      %s42 = sadd.s32 1, %s37
      %p43 = scmp.ge.s32.totalorder %s42, 1
      %s44 = scalar_select %p43, 0, %s42
      %s45 = sadd.s32 1, %s36
      %s46 = scalar_select %p43, %s45, %s36
      %p47 = scmp.ge.s32.totalorder %s46, 2
      %s48 = scalar_select %p47, 0, %s46
      %s49 = ssub.s32 %s36, %s48
      %p50 = scmp.eq.s32.totalorder %s49, 0
      %s52 = sadd.s32 %s51, 1
      %s53 = scalar_select %p50, %s51, %s52
      %p56 = pneg %p50
      %p57 = scmp.eq.s32.totalorder %s29, 1
      %p58 = por %p56, %p57
      %p59 = scmp.ne.s32.totalorder %s51, %s54
      %p60 = scmp.eq.s32.totalorder %s29, 0
      %p61 = por %p59, %p60
      %p62 = scmp.ne.s32.totalorder %s51, %s54
      %p63 = scmp.eq.s32.totalorder %s34, 1
      %p64 = por %p62, %p63
      %p65 = scmp.ne.s32.totalorder %s54, %s55
      %p66 = scmp.eq.s32.totalorder %s34, 0
      %p67 = por %p65, %p66
      %p68 = scmp.ne.s32.totalorder %s54, %s55
      %p69 = scmp.eq.s32.totalorder %s35, 1
      %p70 = por %p68, %p69
      %p72 = scmp.ne.s32.totalorder %s55, %s71
      %p73 = scmp.eq.s32.totalorder %s35, 0
      %p74 = por %p72, %p73
      %s75 = ssub.s32 %s36, %s48
      %s76 = ssub.s32 %s37, %s44
      %s77 = sor.u32 %s75, %s76
      %p78 = scmp.eq.s32.totalorder %s77, 0
      %s80 = sadd.s32 %s79, 1
      %s81 = scalar_select %p78, %s79, %s80
      %p84 = pneg %p78
      %p85 = scmp.eq.s32.totalorder %s29, 1
      %p86 = por %p84, %p85
      %p87 = scmp.ne.s32.totalorder %s79, %s82
      %p88 = scmp.eq.s32.totalorder %s29, 0
      %p89 = por %p87, %p88
      %p90 = scmp.ne.s32.totalorder %s79, %s82
      %p91 = scmp.eq.s32.totalorder %s34, 1
      %p92 = por %p90, %p91
      %p93 = scmp.ne.s32.totalorder %s82, %s83
      %p94 = scmp.eq.s32.totalorder %s34, 0
      %p95 = por %p93, %p94
      %p96 = scmp.ne.s32.totalorder %s82, %s83
      %p97 = scmp.eq.s32.totalorder %s35, 1
      %p98 = por %p96, %p97
      %p100 = scmp.ne.s32.totalorder %s83, %s99
      %p101 = scmp.eq.s32.totalorder %s35, 0
      %p102 = por %p100, %p101
      %s104 = sadd.s32 %s103, 1
      %p107 = scmp.eq.s32.totalorder %s29, 1
      %p108 = scmp.ne.s32.totalorder %s103, %s105
      %p109 = scmp.eq.s32.totalorder %s29, 0
      %p110 = por %p108, %p109
      %p111 = scmp.ne.s32.totalorder %s103, %s105
      %p112 = scmp.eq.s32.totalorder %s34, 1
      %p113 = por %p111, %p112
      %p114 = scmp.ne.s32.totalorder %s105, %s106
      %p115 = scmp.eq.s32.totalorder %s34, 0
      %p116 = por %p114, %p115
      %p117 = scmp.ne.s32.totalorder %s105, %s106
      %p118 = scmp.eq.s32.totalorder %s35, 1
      %p119 = por %p117, %p118
      %p121 = scmp.ne.s32.totalorder %s106, %s120
      %p122 = scmp.eq.s32.totalorder %s35, 0
      %p123 = por %p121, %p122
      %s125 = sadd.s32 %s124, 1
      %p128 = scmp.eq.s32.totalorder %s29, 1
      %p129 = scmp.ne.s32.totalorder %s124, %s126
      %p130 = scmp.eq.s32.totalorder %s29, 0
      %p131 = por %p129, %p130
      %p132 = scmp.ne.s32.totalorder %s124, %s126
      %p133 = scmp.eq.s32.totalorder %s34, 1
      %p134 = por %p132, %p133
      %p135 = scmp.ne.s32.totalorder %s126, %s127
      %p136 = scmp.eq.s32.totalorder %s34, 0
      %p137 = por %p135, %p136
      %p138 = scmp.ne.s32.totalorder %s126, %s127
      %p139 = scmp.eq.s32.totalorder %s35, 1
      %p140 = por %p138, %p139
      %p142 = scmp.ne.s32.totalorder %s127, %s141
      %p143 = scmp.eq.s32.totalorder %s35, 0
      %p144 = por %p142, %p143
      %s146 = sadd.s32 %s145, 1
      %p149 = scmp.eq.s32.totalorder %s29, 1
      %p150 = scmp.ne.s32.totalorder %s145, %s147
      %p151 = scmp.eq.s32.totalorder %s29, 0
      %p152 = por %p150, %p151
      %p153 = scmp.ne.s32.totalorder %s145, %s147
      %p154 = scmp.eq.s32.totalorder %s34, 1
      %p155 = por %p153, %p154
      %p156 = scmp.ne.s32.totalorder %s147, %s148
      %p157 = scmp.eq.s32.totalorder %s34, 0
      %p158 = por %p156, %p157
      %p159 = scmp.ne.s32.totalorder %s147, %s148
      %p160 = scmp.eq.s32.totalorder %s35, 1
      %p161 = por %p159, %p160
      %p163 = scmp.ne.s32.totalorder %s148, %s162
      %p164 = scmp.eq.s32.totalorder %s35, 0
      %p165 = por %p163, %p164
      %s167 = sadd.s32 %s166, 1
      %p170 = scmp.eq.s32.totalorder %s29, 1
      %p171 = scmp.ne.s32.totalorder %s166, %s168
      %p172 = scmp.eq.s32.totalorder %s29, 0
      %p173 = por %p171, %p172
      %p174 = scmp.ne.s32.totalorder %s166, %s168
      %p175 = scmp.eq.s32.totalorder %s34, 1
      %p176 = por %p174, %p175
      %p177 = scmp.ne.s32.totalorder %s168, %s169
      %p178 = scmp.eq.s32.totalorder %s34, 0
      %p179 = por %p177, %p178
      %p180 = scmp.ne.s32.totalorder %s168, %s169
      %p181 = scmp.eq.s32.totalorder %s35, 1
      %p182 = por %p180, %p181
      %p184 = scmp.ne.s32.totalorder %s169, %s183
      %p185 = scmp.eq.s32.totalorder %s35, 0
      %p186 = por %p184, %p185
      %s188 = sadd.s32 %s187, 1
      %p191 = scmp.eq.s32.totalorder %s29, 1
      %p192 = scmp.ne.s32.totalorder %s187, %s189
      %p193 = scmp.eq.s32.totalorder %s29, 0
      %p194 = por %p192, %p193
      %p195 = scmp.ne.s32.totalorder %s187, %s189
      %p196 = scmp.eq.s32.totalorder %s34, 1
      %p197 = por %p195, %p196
      %p198 = scmp.ne.s32.totalorder %s189, %s190
      %p199 = scmp.eq.s32.totalorder %s34, 0
      %p200 = por %p198, %p199
      %p201 = scmp.ne.s32.totalorder %s189, %s190
      %p202 = scmp.eq.s32.totalorder %s35, 1
      %p203 = por %p201, %p202
      %p205 = scmp.ne.s32.totalorder %s190, %s204
      %p206 = scmp.eq.s32.totalorder %s35, 0
      %p207 = por %p205, %p206
      %s209 = sadd.s32 %s208, 1
      %p212 = scmp.eq.s32.totalorder %s29, 1
      %p213 = scmp.ne.s32.totalorder %s208, %s210
      %p214 = scmp.eq.s32.totalorder %s29, 0
      %p215 = por %p213, %p214
      %p216 = scmp.ne.s32.totalorder %s208, %s210
      %p217 = scmp.eq.s32.totalorder %s34, 1
      %p218 = por %p216, %p217
      %p219 = scmp.ne.s32.totalorder %s210, %s211
      %p220 = scmp.eq.s32.totalorder %s34, 0
      %p221 = por %p219, %p220
      %p222 = scmp.ne.s32.totalorder %s210, %s211
      %p223 = scmp.eq.s32.totalorder %s35, 1
      %p224 = por %p222, %p223
      %p226 = scmp.ne.s32.totalorder %s211, %s225
      %p227 = scmp.eq.s32.totalorder %s35, 0
      %p228 = por %p226, %p227
      %s230 = sadd.s32 %s229, 1
      %p233 = scmp.eq.s32.totalorder %s29, 1
      %p234 = scmp.ne.s32.totalorder %s229, %s231
      %p235 = scmp.eq.s32.totalorder %s29, 0
      %p236 = por %p234, %p235
      %p237 = scmp.ne.s32.totalorder %s229, %s231
      %p238 = scmp.eq.s32.totalorder %s34, 1
      %p239 = por %p237, %p238
      %p240 = scmp.ne.s32.totalorder %s231, %s232
      %p241 = scmp.eq.s32.totalorder %s34, 0
      %p242 = por %p240, %p241
      %p243 = scmp.ne.s32.totalorder %s231, %s232
      %p244 = scmp.eq.s32.totalorder %s35, 1
      %p245 = por %p243, %p244
      %p247 = scmp.ne.s32.totalorder %s232, %s246
      %p248 = scmp.eq.s32.totalorder %s35, 0
      %p249 = por %p247, %p248
      %s251 = sadd.s32 %s250, 1
      %p254 = scmp.eq.s32.totalorder %s29, 1
      %p255 = scmp.ne.s32.totalorder %s250, %s252
      %p256 = scmp.eq.s32.totalorder %s29, 0
      %p257 = por %p255, %p256
      %p258 = scmp.ne.s32.totalorder %s250, %s252
      %p259 = scmp.eq.s32.totalorder %s34, 1
      %p260 = por %p258, %p259
      %p261 = scmp.ne.s32.totalorder %s252, %s253
      %p262 = scmp.eq.s32.totalorder %s34, 0
      %p263 = por %p261, %p262
      %p264 = scmp.ne.s32.totalorder %s252, %s253
      %p265 = scmp.eq.s32.totalorder %s35, 1
      %p266 = por %p264, %p265
      %p268 = scmp.ne.s32.totalorder %s253, %s267
      %p269 = scmp.eq.s32.totalorder %s35, 0
      %p270 = por %p268, %p269
      %s272 = sadd.s32 %s271, 1
      %p275 = scmp.eq.s32.totalorder %s29, 1
      %p276 = scmp.ne.s32.totalorder %s271, %s273
      %p277 = scmp.eq.s32.totalorder %s29, 0
      %p278 = por %p276, %p277
      %p279 = scmp.ne.s32.totalorder %s271, %s273
      %p280 = scmp.eq.s32.totalorder %s34, 1
      %p281 = por %p279, %p280
      %p282 = scmp.ne.s32.totalorder %s273, %s274
      %p283 = scmp.eq.s32.totalorder %s34, 0
      %p284 = por %p282, %p283
      %p285 = scmp.ne.s32.totalorder %s273, %s274
      %p286 = scmp.eq.s32.totalorder %s35, 1
      %p287 = por %p285, %p286
      %p289 = scmp.ne.s32.totalorder %s274, %s288
      %p290 = scmp.eq.s32.totalorder %s35, 0
      %p291 = por %p289, %p290
      %s293 = sadd.s32 %s292, 1
      %p296 = scmp.eq.s32.totalorder %s29, 1
      %p297 = scmp.ne.s32.totalorder %s292, %s294
      %p298 = scmp.eq.s32.totalorder %s29, 0
      %p299 = por %p297, %p298
      %p300 = scmp.ne.s32.totalorder %s292, %s294
      %p301 = scmp.eq.s32.totalorder %s34, 1
      %p302 = por %p300, %p301
      %p303 = scmp.ne.s32.totalorder %s294, %s295
      %p304 = scmp.eq.s32.totalorder %s34, 0
      %p305 = por %p303, %p304
      %p306 = scmp.ne.s32.totalorder %s294, %s295
      %p307 = scmp.eq.s32.totalorder %s35, 1
      %p308 = por %p306, %p307
      %p310 = scmp.ne.s32.totalorder %s295, %s309
      %p311 = scmp.eq.s32.totalorder %s35, 0
      %p312 = por %p310, %p311
      %s314 = sadd.s32 %s313, 1
      %p317 = scmp.eq.s32.totalorder %s29, 1
      %p318 = scmp.ne.s32.totalorder %s313, %s315
      %p319 = scmp.eq.s32.totalorder %s29, 0
      %p320 = por %p318, %p319
      %p321 = scmp.ne.s32.totalorder %s313, %s315
      %p322 = scmp.eq.s32.totalorder %s34, 1
      %p323 = por %p321, %p322
      %p324 = scmp.ne.s32.totalorder %s315, %s316
      %p325 = scmp.eq.s32.totalorder %s34, 0
      %p326 = por %p324, %p325
      %p327 = scmp.ne.s32.totalorder %s315, %s316
      %p328 = scmp.eq.s32.totalorder %s35, 1
      %p329 = por %p327, %p328
      %p331 = scmp.ne.s32.totalorder %s316, %s330
      %p332 = scmp.eq.s32.totalorder %s35, 0
      %p333 = por %p331, %p332
      %s335 = sadd.s32 %s334, 1
      %p338 = scmp.eq.s32.totalorder %s29, 1
      %p339 = scmp.ne.s32.totalorder %s334, %s336
      %p340 = scmp.eq.s32.totalorder %s29, 0
      %p341 = por %p339, %p340
      %p342 = scmp.ne.s32.totalorder %s334, %s336
      %p343 = scmp.eq.s32.totalorder %s34, 1
      %p344 = por %p342, %p343
      %p345 = scmp.ne.s32.totalorder %s336, %s337
      %p346 = scmp.eq.s32.totalorder %s34, 0
      %p347 = por %p345, %p346
      %p348 = scmp.ne.s32.totalorder %s336, %s337
      %p349 = scmp.eq.s32.totalorder %s35, 1
      %p350 = por %p348, %p349
      %p352 = scmp.ne.s32.totalorder %s337, %s351
      %p353 = scmp.eq.s32.totalorder %s35, 0
      %p354 = por %p352, %p353
      %s356 = sadd.s32 %s355, 1
      %p359 = scmp.eq.s32.totalorder %s29, 1
      %p360 = scmp.ne.s32.totalorder %s355, %s357
      %p361 = scmp.eq.s32.totalorder %s29, 0
      %p362 = por %p360, %p361
      %p363 = scmp.ne.s32.totalorder %s355, %s357
      %p364 = scmp.eq.s32.totalorder %s34, 1
      %p365 = por %p363, %p364
      %p366 = scmp.ne.s32.totalorder %s357, %s358
      %p367 = scmp.eq.s32.totalorder %s34, 0
      %p368 = por %p366, %p367
      %p369 = scmp.ne.s32.totalorder %s357, %s358
      %p370 = scmp.eq.s32.totalorder %s35, 1
      %p371 = por %p369, %p370
      %p373 = scmp.ne.s32.totalorder %s358, %s372
      %p374 = scmp.eq.s32.totalorder %s35, 0
      %p375 = por %p373, %p374
      %s377 = sadd.s32 %s376, 1
      %p380 = scmp.eq.s32.totalorder %s29, 1
      %p381 = scmp.ne.s32.totalorder %s376, %s378
      %p382 = scmp.eq.s32.totalorder %s29, 0
      %p383 = por %p381, %p382
      %p384 = scmp.ne.s32.totalorder %s376, %s378
      %p385 = scmp.eq.s32.totalorder %s34, 1
      %p386 = por %p384, %p385
      %p387 = scmp.ne.s32.totalorder %s378, %s379
      %p388 = scmp.eq.s32.totalorder %s34, 0
      %p389 = por %p387, %p388
      %p390 = scmp.ne.s32.totalorder %s378, %s379
      %p391 = scmp.eq.s32.totalorder %s35, 1
      %p392 = por %p390, %p391
      %p394 = scmp.ne.s32.totalorder %s379, %s393
      %p395 = scmp.eq.s32.totalorder %s35, 0
      %p396 = por %p394, %p395
      %s397 = ssub.s32 %s36, %s48
      %s398 = ssub.s32 %s37, %s44
      %s399 = sor.u32 %s397, %s398
      %p400 = scmp.eq.s32.totalorder %s399, 0
      %s402 = sadd.s32 %s401, 1
      %s403 = scalar_select %p400, %s401, %s402
      %p406 = pneg %p400
      %p407 = scmp.eq.s32.totalorder %s29, 1
      %p408 = por %p406, %p407
      %p409 = scmp.ne.s32.totalorder %s401, %s404
      %p410 = scmp.eq.s32.totalorder %s29, 0
      %p411 = por %p409, %p410
      %p412 = scmp.ne.s32.totalorder %s401, %s404
      %p413 = scmp.eq.s32.totalorder %s34, 1
      %p414 = por %p412, %p413
      %p415 = scmp.ne.s32.totalorder %s404, %s405
      %p416 = scmp.eq.s32.totalorder %s34, 0
      %p417 = por %p415, %p416
      %p418 = scmp.ne.s32.totalorder %s404, %s405
      %p419 = scmp.eq.s32.totalorder %s35, 1
      %p420 = por %p418, %p419
      %p422 = scmp.ne.s32.totalorder %s405, %s421
      %p423 = scmp.eq.s32.totalorder %s35, 0
      %p424 = por %p422, %p423
      %p425 = scmp.le.s32.totalorder 1, %s29
      %p426 = scmp.lt.s32.totalorder %s29, 3
      %p427 = pnand %p425, %p426
      %p428 = pneg %p427
      // Predicated region
      $region9: #{tpu_custom_call.1} parent=5 // pred_check
        _
      $region10: #{tpu_custom_call.1} parent=5 // pred_check_branch
        %430 = sbr.rel (%p427) target = $region12
      $region11: #{tpu_custom_call.1} parent=5 // pred_region
        %s431 = ssub.s32 %s29, 1
        // Predicated region
        $region13: #{tpu_custom_call.1} parent=11 // pred_check
          %p432 = pneg %p116
        $region14: #{tpu_custom_call.1} parent=11 // pred_check_branch
          %434 = sbr.rel (%p432) target = $region16
        $region15: #{tpu_custom_call.1} parent=11 // pred_region
          _
        $region16: #{tpu_custom_call.1} parent=11 // pred_fallthru
          _
        // Predicated region
        $region17: #{tpu_custom_call.1} parent=11 // pred_check
          %p435 = pneg %p137
        $region18: #{tpu_custom_call.1} parent=11 // pred_check_branch
          %437 = sbr.rel (%p435) target = $region20
        $region19: #{tpu_custom_call.1} parent=11 // pred_region
          %s439 = ssub.s32 16, 16
          %440 = vsyncadd [#allocation5], %s439
          %s442 = sshll.u32 [#allocation4], 4
          %s443 = int_to_ptr.vmem [resolvable:$true] %s442
          %445 = dma.hbm_to_vmem [thread:$0]  %s3, 16, %s443, [#allocation5]
        $region20: #{tpu_custom_call.1} parent=11 // pred_fallthru
          _
        // Predicated region
        $region21: #{tpu_custom_call.1} parent=11 // pred_check
          %p446 = pneg %p158
        $region22: #{tpu_custom_call.1} parent=11 // pred_check_branch
          %448 = sbr.rel (%p446) target = $region24
        $region23: #{tpu_custom_call.1} parent=11 // pred_region
          %s450 = ssub.s32 256, 256
          %451 = vsyncadd [#allocation8], %s450
          %s452 = sshll.u32 [#allocation7], 4
          %s453 = int_to_ptr.vmem [resolvable:$true] %s452
          %458 = dma.hbm_to_vmem [thread:$0]  %s4, 256, %s453, [#allocation8], 64, 64, 4
        $region24: #{tpu_custom_call.1} parent=11 // pred_fallthru
          _
        // Predicated region
        $region25: #{tpu_custom_call.1} parent=11 // pred_check
          %p459 = pneg %p179
        $region26: #{tpu_custom_call.1} parent=11 // pred_check_branch
          %461 = sbr.rel (%p459) target = $region28
        $region27: #{tpu_custom_call.1} parent=11 // pred_region
          %s463 = ssub.s32 16, 16
          %464 = vsyncadd [#allocation8], %s463
          %s466 = sshll.u32 [#allocation9], 4
          %s467 = int_to_ptr.vmem [resolvable:$true] %s466
          %469 = dma.hbm_to_vmem [thread:$0]  %s5, 16, %s467, [#allocation8]
        $region28: #{tpu_custom_call.1} parent=11 // pred_fallthru
          _
        // Predicated region
        $region29: #{tpu_custom_call.1} parent=11 // pred_check
          %p470 = pneg %p200
        $region30: #{tpu_custom_call.1} parent=11 // pred_check_branch
          %472 = sbr.rel (%p470) target = $region32
        $region31: #{tpu_custom_call.1} parent=11 // pred_region
          %s474 = ssub.s32 256, 256
          %475 = vsyncadd [#allocation11], %s474
          %s476 = sshll.u32 [#allocation10], 4
          %s477 = int_to_ptr.vmem [resolvable:$true] %s476
          %482 = dma.hbm_to_vmem [thread:$0]  %s6, 256, %s477, [#allocation11], 64, 64, 4
        $region32: #{tpu_custom_call.1} parent=11 // pred_fallthru
          _
        // Predicated region
        $region33: #{tpu_custom_call.1} parent=11 // pred_check
          %p483 = pneg %p221
        $region34: #{tpu_custom_call.1} parent=11 // pred_check_branch
          %485 = sbr.rel (%p483) target = $region36
        $region35: #{tpu_custom_call.1} parent=11 // pred_region
          %s487 = ssub.s32 16, 16
          %488 = vsyncadd [#allocation11], %s487
          %s490 = sshll.u32 [#allocation12], 4
          %s491 = int_to_ptr.vmem [resolvable:$true] %s490
          %493 = dma.hbm_to_vmem [thread:$0]  %s7, 16, %s491, [#allocation11]
        $region36: #{tpu_custom_call.1} parent=11 // pred_fallthru
          _
        // Predicated region
        $region37: #{tpu_custom_call.1} parent=11 // pred_check
          %p494 = pneg %p242
        $region38: #{tpu_custom_call.1} parent=11 // pred_check_branch
          %496 = sbr.rel (%p494) target = $region40
        $region39: #{tpu_custom_call.1} parent=11 // pred_region
          %s498 = ssub.s32 16, 16
          %499 = vsyncadd [#allocation14], %s498
          %s501 = sshll.u32 [#allocation13], 4
          %s502 = int_to_ptr.vmem [resolvable:$true] %s501
          %504 = dma.hbm_to_vmem [thread:$0]  %s8, 16, %s502, [#allocation14]
        $region40: #{tpu_custom_call.1} parent=11 // pred_fallthru
          _
        // Predicated region
        $region41: #{tpu_custom_call.1} parent=11 // pred_check
          %p505 = pneg %p263
        $region42: #{tpu_custom_call.1} parent=11 // pred_check_branch
          %507 = sbr.rel (%p505) target = $region44
        $region43: #{tpu_custom_call.1} parent=11 // pred_region
          %s509 = ssub.s32 16, 16
          %510 = vsyncadd [#allocation14], %s509
          %s512 = sshll.u32 [#allocation15], 4
          %s513 = int_to_ptr.vmem [resolvable:$true] %s512
          %515 = dma.hbm_to_vmem [thread:$0]  %s9, 16, %s513, [#allocation14]
        $region44: #{tpu_custom_call.1} parent=11 // pred_fallthru
          _
        // Predicated region
        $region45: #{tpu_custom_call.1} parent=11 // pred_check
          %p516 = pneg %p284
        $region46: #{tpu_custom_call.1} parent=11 // pred_check_branch
          %518 = sbr.rel (%p516) target = $region48
        $region47: #{tpu_custom_call.1} parent=11 // pred_region
          _
        $region48: #{tpu_custom_call.1} parent=11 // pred_fallthru
          _
        // Predicated region
        $region49: #{tpu_custom_call.1} parent=11 // pred_check
          %p519 = pneg %p305
        $region50: #{tpu_custom_call.1} parent=11 // pred_check_branch
          %521 = sbr.rel (%p519) target = $region52
        $region51: #{tpu_custom_call.1} parent=11 // pred_region
          _
        $region52: #{tpu_custom_call.1} parent=11 // pred_fallthru
          _
        // Predicated region
        $region53: #{tpu_custom_call.1} parent=11 // pred_check
          %p522 = pneg %p326
        $region54: #{tpu_custom_call.1} parent=11 // pred_check_branch
          %524 = sbr.rel (%p522) target = $region56
        $region55: #{tpu_custom_call.1} parent=11 // pred_region
          _
        $region56: #{tpu_custom_call.1} parent=11 // pred_fallthru
          _
        // Predicated region
        $region57: #{tpu_custom_call.1} parent=11 // pred_check
          %p525 = pneg %p347
        $region58: #{tpu_custom_call.1} parent=11 // pred_check_branch
          %527 = sbr.rel (%p525) target = $region60
        $region59: #{tpu_custom_call.1} parent=11 // pred_region
          _
        $region60: #{tpu_custom_call.1} parent=11 // pred_fallthru
          _
        // Predicated region
        $region61: #{tpu_custom_call.1} parent=11 // pred_check
          %p528 = pneg %p368
        $region62: #{tpu_custom_call.1} parent=11 // pred_check_branch
          %530 = sbr.rel (%p528) target = $region64
        $region63: #{tpu_custom_call.1} parent=11 // pred_region
          _
        $region64: #{tpu_custom_call.1} parent=11 // pred_fallthru
          _
        // Predicated region
        $region65: #{tpu_custom_call.1} parent=11 // pred_check
          %p531 = pneg %p389
        $region66: #{tpu_custom_call.1} parent=11 // pred_check_branch
          %533 = sbr.rel (%p531) target = $region68
        $region67: #{tpu_custom_call.1} parent=11 // pred_region
          _
        $region68: #{tpu_custom_call.1} parent=11 // pred_fallthru
          _
      $region12: #{tpu_custom_call.1} parent=5 // pred_fallthru
        _
      %p534 = scmp.lt.s32.totalorder %s29, 2
      // Predicated region
      $region69: #{tpu_custom_call.1} parent=5 // pred_check
        %p535 = pneg %p534
      $region70: #{tpu_custom_call.1} parent=5 // pred_check_branch
        %537 = sbr.rel (%p535) target = $region72
      $region71: #{tpu_custom_call.1} parent=5 // pred_region
        // Predicated region
        $region73: #{tpu_custom_call.1} parent=71 // pred_check
          %p538 = pneg %p61
        $region74: #{tpu_custom_call.1} parent=71 // pred_check_branch
          %540 = sbr.rel (%p538) target = $region76
        $region75: #{tpu_custom_call.1} parent=71 // pred_region
          %p541 = scmp.lt.s32.totalorder %s36, 1
          %s542 = scalar_select %p541, %s36, 1
          %s543 = smul.addr %s542, 8
          %s544 = scalar_lea.vmem %s0, %s543
        $region76: #{tpu_custom_call.1} parent=71 // pred_fallthru
          _
        // Predicated region
        $region77: #{tpu_custom_call.1} parent=71 // pred_check
          %p545 = pneg %p89
        $region78: #{tpu_custom_call.1} parent=71 // pred_check_branch
          %547 = sbr.rel (%p545) target = $region80
        $region79: #{tpu_custom_call.1} parent=71 // pred_region
          %p548 = scmp.lt.s32.totalorder %s36, 1
          %s549 = scalar_select %p548, %s36, 1
          %p550 = scmp.lt.s32.totalorder %s37, 0
          %s551 = scalar_select %p550, %s37, 0
          %s552 = sadd.s32 %s551, %s549
          %s553 = smul.addr %s552, 8
          %s554 = scalar_lea.vmem %s1, %s553
        $region80: #{tpu_custom_call.1} parent=71 // pred_fallthru
          _
      $region72: #{tpu_custom_call.1} parent=5 // pred_fallthru
        _
      %p555 = scmp.le.s32.totalorder 1, %s29
      %p556 = scmp.lt.s32.totalorder %s29, 3
      %p557 = pnand %p555, %p556
      %p558 = pneg %p557
      // Predicated region
      $region81: #{tpu_custom_call.1} parent=5 // pred_check
        _
      $region82: #{tpu_custom_call.1} parent=5 // pred_check_branch
        %560 = sbr.rel (%p557) target = $region84
      $region83: #{tpu_custom_call.1} parent=5 // pred_region
        %s561 = ssub.s32 %s29, 1
        // Predicated region
        $region85: #{tpu_custom_call.1} parent=83 // pred_check
          %p562 = pneg %p137
        $region86: #{tpu_custom_call.1} parent=83 // pred_check_branch
          %564 = sbr.rel (%p562) target = $region88
        $region87: #{tpu_custom_call.1} parent=83 // pred_region
          %565 = dma.done [#allocation5], 16
        $region88: #{tpu_custom_call.1} parent=83 // pred_fallthru
          _
        // Predicated region
        $region89: #{tpu_custom_call.1} parent=83 // pred_check
          %p566 = pneg %p158
        $region90: #{tpu_custom_call.1} parent=83 // pred_check_branch
          %568 = sbr.rel (%p566) target = $region92
        $region91: #{tpu_custom_call.1} parent=83 // pred_region
          %569 = dma.done [#allocation8], 256
        $region92: #{tpu_custom_call.1} parent=83 // pred_fallthru
          _
        // Predicated region
        $region93: #{tpu_custom_call.1} parent=83 // pred_check
          %p570 = pneg %p179
        $region94: #{tpu_custom_call.1} parent=83 // pred_check_branch
          %572 = sbr.rel (%p570) target = $region96
        $region95: #{tpu_custom_call.1} parent=83 // pred_region
          %573 = dma.done [#allocation8], 16
        $region96: #{tpu_custom_call.1} parent=83 // pred_fallthru
          _
        // Predicated region
        $region97: #{tpu_custom_call.1} parent=83 // pred_check
          %p574 = pneg %p200
        $region98: #{tpu_custom_call.1} parent=83 // pred_check_branch
          %576 = sbr.rel (%p574) target = $region100
        $region99: #{tpu_custom_call.1} parent=83 // pred_region
          %577 = dma.done [#allocation11], 256
        $region100: #{tpu_custom_call.1} parent=83 // pred_fallthru
          _
        // Predicated region
        $region101: #{tpu_custom_call.1} parent=83 // pred_check
          %p578 = pneg %p221
        $region102: #{tpu_custom_call.1} parent=83 // pred_check_branch
          %580 = sbr.rel (%p578) target = $region104
        $region103: #{tpu_custom_call.1} parent=83 // pred_region
          %581 = dma.done [#allocation11], 16
        $region104: #{tpu_custom_call.1} parent=83 // pred_fallthru
          _
        // Predicated region
        $region105: #{tpu_custom_call.1} parent=83 // pred_check
          %p582 = pneg %p242
        $region106: #{tpu_custom_call.1} parent=83 // pred_check_branch
          %584 = sbr.rel (%p582) target = $region108
        $region107: #{tpu_custom_call.1} parent=83 // pred_region
          %585 = dma.done [#allocation14], 16
        $region108: #{tpu_custom_call.1} parent=83 // pred_fallthru
          _
        // Predicated region
        $region109: #{tpu_custom_call.1} parent=83 // pred_check
          %p586 = pneg %p263
        $region110: #{tpu_custom_call.1} parent=83 // pred_check_branch
          %588 = sbr.rel (%p586) target = $region112
        $region111: #{tpu_custom_call.1} parent=83 // pred_region
          %589 = dma.done [#allocation14], 16
        $region112: #{tpu_custom_call.1} parent=83 // pred_fallthru
          _
        %p590 = scmp.lt.s32.totalorder %s38, 1
        %s591 = scalar_select %p590, %s38, 1
        %s592 = smul.addr %s591, 8
        %s593 = scalar_lea.vmem %s0, %s592
        %p594 = pneg %p67
        %p595 = pneg %p64
        %p596 = scmp.lt.s32.totalorder %s38, 1
        %s597 = scalar_select %p596, %s38, 1
        %p598 = scmp.lt.s32.totalorder %s39, 0
        %s599 = scalar_select %p598, %s39, 0
        %s600 = sadd.s32 %s599, %s597
        %s601 = smul.addr %s600, 8
        %s602 = scalar_lea.vmem %s1, %s601
        %p603 = pneg %p95
        %p604 = pneg %p92
        %p605 = pneg %p116
        %p606 = pneg %p113
        %p607 = pneg %p137
        %p608 = pneg %p134
        %p609 = pneg %p158
        %p610 = pneg %p155
        %p611 = pneg %p179
        %p612 = pneg %p176
        %p613 = pneg %p200
        %p614 = pneg %p197
        %p615 = pneg %p221
        %p616 = pneg %p218
        %p617 = pneg %p242
        %p618 = pneg %p239
        %p619 = pneg %p263
        %p620 = pneg %p260
        %p621 = pneg %p284
        %p622 = pneg %p281
        %p623 = pneg %p305
        %p624 = pneg %p302
        %p625 = pneg %p326
        %p626 = pneg %p323
        %p627 = pneg %p347
        %p628 = pneg %p344
        %p629 = pneg %p368
        %p630 = pneg %p365
        %p631 = pneg %p389
        %p632 = pneg %p386
        %p633 = pneg %p417
        %p634 = pneg %p414
        %s635 = sand.u32 %s404, 1
        %s636 = scalar_lea.sflag [#allocation6], %s635
        %s637 = sand.u32 %s404, 1
        %s638 = smul.addr %s637, 8
        %s639 = scalar_lea.vmem [#allocation16], %s638
        %p640 = scmp.lt.s32.totalorder %s38, 1
        %s641 = scalar_select %p640, %s38, 1
        %s642 = smul.addr %s641, 8
        %s643 = scalar_lea.vmem %s0, %s642
        %p644 = scmp.lt.s32.totalorder %s38, 1
        %s645 = scalar_select %p644, %s38, 1
        %p646 = scmp.lt.s32.totalorder %s39, 0
        %s647 = scalar_select %p646, %s39, 0
        %s648 = sadd.s32 %s647, %s645
        %s649 = smul.addr %s648, 8
        %s650 = scalar_lea.vmem %s1, %s649
        %p652 = scmp.eq.s32.totalorder %s39, 0
        // Predicated region
        $region113: #{tpu_custom_call.1} parent=83 // pred_check
          %p653 = pneg %p652
        $region114: #{tpu_custom_call.1} parent=83 // pred_check_branch
          %655 = sbr.rel (%p653) target = $region116
        $region115: #{tpu_custom_call.1} parent=83 // pred_region
          %v656 = vld [vmem:[%s643] sm:$0xff]
          %v657 = vpack.c.bf16 %v656, %v656
          %v658 = vld [vmem:[#allocation7] sm:$0xf]
          %v659 = vld [vmem:[#allocation7 + $0x4] sm:$0xf]
          %v660 = vld [vmem:[#allocation7 + $0x8] sm:$0xf]
          %v661 = vld [vmem:[#allocation7 + $0xc] sm:$0xf]
          %v662 = vld [vmem:[#allocation9] sm:$0x1]
          %v664 = vlaneseq
          %v665 = vshrl.u32 %v664, 7
          %v666 = vsub.s32 0, %v665
          %v667 = vrot.slane %v662, %v666
          %v673 = vunpack.c.l.b16 %v658
          %v674 = vunpack.c.l.b16 %v659
          %v675 = vunpack.c.l.b16 %v660
          %v676 = vunpack.c.l.b16 %v661
          %v677 = vpack.c.b16 %v674, %v673
          %v678 = vpack.c.b16 %v676, %v675
          %vm681 = vcmask 261120
          %v683 = vsel %vm681, %v657, 0
          %685 = vmatprep.subr.bf16.mxu0 0
          %686 = vmatpush1.bf16.msra.mxu0 0
          %687 = vmatprep.subr.bf16.mxu0 0
          %688 = vmatpush1.bf16.msra.mxu0 0
          %689 = vmatprep.subr.bf16.mxu0 0
          %690 = vmatpush1.bf16.msra.mxu0 0
          %691 = vmatprep.subr.bf16.mxu0 0
          %692 = vmatpush1.bf16.msra.mxu0 0
          %693 = vmatprep.subr.bf16.mxu0 0
          %694 = vmatpush1.bf16.msra.mxu0 0
          %695 = vmatprep.subr.bf16.mxu0 0
          %696 = vmatpush1.bf16.msra.mxu0 0
          %697 = vmatprep.subr.bf16.mxu0 0
          %698 = vmatpush1.bf16.msra.mxu0 %v678
          %699 = vmatprep.subr.bf16.mxu0 0
          %700 = vmatpush1.bf16.msra.mxu0 %v677
          %701 = vmatprep.subr.bf16.mxu0 0
          %702 = vmatpush2.bf16.msra.mxu0 0
          %703 = vmatprep.subr.bf16.mxu0 0
          %704 = vmatpush2.bf16.msra.mxu0 0
          %705 = vmatprep.subr.bf16.mxu0 0
          %706 = vmatpush2.bf16.msra.mxu0 0
          %707 = vmatprep.subr.bf16.mxu0 0
          %708 = vmatpush2.bf16.msra.mxu0 0
          %709 = vmatprep.subr.bf16.mxu0 0
          %710 = vmatpush2.bf16.msra.mxu0 0
          %711 = vmatprep.subr.bf16.mxu0 0
          %712 = vmatpush2.bf16.msra.mxu0 0
          %713 = vmatprep.subr.bf16.mxu0 0
          %714 = vmatpush2.bf16.msra.mxu0 0
          %715 = vmatprep.subr.bf16.mxu0 0
          %716 = vmatpush2.bf16.msra.mxu0 0
          %717 = vmatprep.mubr.bf16.mxu0 0
          %718 = vmatmul.mubr.bf16.gmra.mxu0 %v683
          %v719 = vpop.f32.mrf.mxu0
          %v720 = vadd.f32 %v667, %v719
          %v721 = vpop.f32.mrf.mxu0
          %v722 = vpop.f32.mrf.mxu0
          %v723 = vpop.f32.mrf.mxu0
          %724 = vdwg.mxu0
          %726 = vrot.lane.b32.xlu0 %v720, 120
          %v727 = vpop.permute.xlu0 %726
          %729 = vrot.lane.b32.xlu0 %v720, 112
          %v730 = vpop.permute.xlu0 %729
          %732 = vrot.lane.b32.xlu0 %v720, 104
          %v733 = vpop.permute.xlu0 %732
          %v735 = vcombine.low %v720, %v730
          %v736 = vcombine.high %v720, %v730
          %v738 = vunpack.c.l.s4 1983009808
          %v739 = vunpack.c.0.s8 %v738
          %v740 = vlaneseq
          %v741 = vshrl.u32 %v740, 7
          %v742 = vsub.s32 %v739, %v741
          %v743 = vrot.slane %v735, %v742
          %v745 = vunpack.c.l.s4 1983009808
          %v746 = vunpack.c.0.s8 %v745
          %v747 = vlaneseq
          %v748 = vshrl.u32 %v747, 7
          %v749 = vsub.s32 %v746, %v748
          %v750 = vrot.slane %v736, %v749
          %v751 = vcombine.low %v727, %v733
          %v752 = vcombine.high %v727, %v733
          %v754 = vunpack.c.l.s4 1983009808
          %v755 = vunpack.c.0.s8 %v754
          %v756 = vlaneseq
          %v757 = vshrl.u32 %v756, 7
          %v758 = vsub.s32 %v755, %v757
          %v759 = vrot.slane %v751, %v758
          %v761 = vunpack.c.l.s4 1983009808
          %v762 = vunpack.c.0.s8 %v761
          %v763 = vlaneseq
          %v764 = vshrl.u32 %v763, 7
          %v765 = vsub.s32 %v762, %v764
          %v766 = vrot.slane %v752, %v765
          %v767 = vcombine.low %v743, %v759
          %v768 = vcombine.high %v743, %v759
          %v770 = vunpack.c.l.s4 1934713408
          %v771 = vunpack.c.0.s8 %v770
          %v772 = vlaneseq
          %v773 = vshrl.u32 %v772, 7
          %v774 = vsub.s32 %v771, %v773
          %v775 = vrot.slane %v767, %v774
          %v777 = vunpack.c.l.s4 1934713408
          %v778 = vunpack.c.0.s8 %v777
          %v779 = vlaneseq
          %v780 = vshrl.u32 %v779, 7
          %v781 = vsub.s32 %v778, %v780
          %v782 = vrot.slane %v768, %v781
          %v783 = vcombine.low %v750, %v766
          %v784 = vcombine.high %v750, %v766
          %v786 = vunpack.c.l.s4 1934713408
          %v787 = vunpack.c.0.s8 %v786
          %v788 = vlaneseq
          %v789 = vshrl.u32 %v788, 7
          %v790 = vsub.s32 %v787, %v789
          %v791 = vrot.slane %v783, %v790
          %v793 = vunpack.c.l.s4 1934713408
          %v794 = vunpack.c.0.s8 %v793
          %v795 = vlaneseq
          %v796 = vshrl.u32 %v795, 7
          %v797 = vsub.s32 %v794, %v796
          %v798 = vrot.slane %v784, %v797
          %v799 = vcombine.high %v775, 0.0
          %v800 = vcombine.high %v782, 0.0
          %v801 = vcombine.high %v791, 0.0
          %v802 = vcombine.high %v798, 0.0
          %v803 = vcombine.low %v775, %v782
          %v805 = vunpack.c.l.s4 1983009808
          %v806 = vunpack.c.0.s8 %v805
          %v807 = vlaneseq
          %v808 = vshrl.u32 %v807, 7
          %v809 = vsub.s32 %v806, %v808
          %v810 = vrot.slane %v803, %v809
          %v811 = vcombine.low %v799, %v800
          %v813 = vunpack.c.l.s4 1983009808
          %v814 = vunpack.c.0.s8 %v813
          %v815 = vlaneseq
          %v816 = vshrl.u32 %v815, 7
          %v817 = vsub.s32 %v814, %v816
          %v818 = vrot.slane %v811, %v817
          %v819 = vcombine.low %v791, %v798
          %v821 = vunpack.c.l.s4 1983009808
          %v822 = vunpack.c.0.s8 %v821
          %v823 = vlaneseq
          %v824 = vshrl.u32 %v823, 7
          %v825 = vsub.s32 %v822, %v824
          %v826 = vrot.slane %v819, %v825
          %v827 = vcombine.low %v801, %v802
          %v829 = vunpack.c.l.s4 1983009808
          %v830 = vunpack.c.0.s8 %v829
          %v831 = vlaneseq
          %v832 = vshrl.u32 %v831, 7
          %v833 = vsub.s32 %v830, %v832
          %v834 = vrot.slane %v827, %v833
          %v835 = vcombine.low %v810, %v818
          %v836 = vcombine.high %v810, %v818
          %v838 = vunpack.c.l.s4 1934713408
          %v839 = vunpack.c.0.s8 %v838
          %v840 = vlaneseq
          %v841 = vshrl.u32 %v840, 7
          %v842 = vsub.s32 %v839, %v841
          %v843 = vrot.slane %v835, %v842
          %v845 = vunpack.c.l.s4 1934713408
          %v846 = vunpack.c.0.s8 %v845
          %v847 = vlaneseq
          %v848 = vshrl.u32 %v847, 7
          %v849 = vsub.s32 %v846, %v848
          %v850 = vrot.slane %v836, %v849
          %v851 = vcombine.low %v826, %v834
          %v852 = vcombine.high %v826, %v834
          %v854 = vunpack.c.l.s4 1934713408
          %v855 = vunpack.c.0.s8 %v854
          %v856 = vlaneseq
          %v857 = vshrl.u32 %v856, 7
          %v858 = vsub.s32 %v855, %v857
          %v859 = vrot.slane %v851, %v858
          %v861 = vunpack.c.l.s4 1934713408
          %v862 = vunpack.c.0.s8 %v861
          %v863 = vlaneseq
          %v864 = vshrl.u32 %v863, 7
          %v865 = vsub.s32 %v862, %v864
          %v866 = vrot.slane %v852, %v865
          %v867 = vcombine.low %v843, %v859
          %v868 = vcombine.high %v843, %v859
          %v869 = vcombine.low %v850, %v866
          %v870 = vcombine.high %v850, %v866
          %v871 = vpack.c.bf16 %v867, %v867
          %v872 = vpack.c.bf16 %v868, %v868
          %v873 = vpack.c.bf16 %v869, %v869
          %v874 = vpack.c.bf16 %v870, %v870
          %vm875 = vcmask 60416
          %876 = vst.msk [vmem:[#allocation2] sm:$0xf] %vm875, %v871
          %877 = vst.msk [vmem:[#allocation2 + $0x4] sm:$0xf] %vm875, %v872
          %878 = vst.msk [vmem:[#allocation2 + $0x8] sm:$0xf] %vm875, %v873
          %879 = vst.msk [vmem:[#allocation2 + $0xc] sm:$0xf] %vm875, %v874
          %880 = vrot.lane.b32.xlu0 %v720, 96
          %v881 = vpop.permute.xlu0 %880
          %882 = vrot.lane.b32.xlu0 %v727, 96
          %v883 = vpop.permute.xlu0 %882
          %884 = vrot.lane.b32.xlu0 %v730, 96
          %v885 = vpop.permute.xlu0 %884
          %886 = vrot.lane.b32.xlu0 %v733, 96
          %v887 = vpop.permute.xlu0 %886
          %v892 = vcombine.low %v881, %v885
          %v893 = vcombine.high %v881, %v885
          %v895 = vunpack.c.l.s4 1983009808
          %v896 = vunpack.c.0.s8 %v895
          %v897 = vlaneseq
          %v898 = vshrl.u32 %v897, 7
          %v899 = vsub.s32 %v896, %v898
          %v900 = vrot.slane %v892, %v899
          %v902 = vunpack.c.l.s4 1983009808
          %v903 = vunpack.c.0.s8 %v902
          %v904 = vlaneseq
          %v905 = vshrl.u32 %v904, 7
          %v906 = vsub.s32 %v903, %v905
          %v907 = vrot.slane %v893, %v906
          %v908 = vcombine.low %v883, %v887
          %v909 = vcombine.high %v883, %v887
          %v911 = vunpack.c.l.s4 1983009808
          %v912 = vunpack.c.0.s8 %v911
          %v913 = vlaneseq
          %v914 = vshrl.u32 %v913, 7
          %v915 = vsub.s32 %v912, %v914
          %v916 = vrot.slane %v908, %v915
          %v918 = vunpack.c.l.s4 1983009808
          %v919 = vunpack.c.0.s8 %v918
          %v920 = vlaneseq
          %v921 = vshrl.u32 %v920, 7
          %v922 = vsub.s32 %v919, %v921
          %v923 = vrot.slane %v909, %v922
          %v924 = vcombine.low %v900, %v916
          %v925 = vcombine.high %v900, %v916
          %v927 = vunpack.c.l.s4 1934713408
          %v928 = vunpack.c.0.s8 %v927
          %v929 = vlaneseq
          %v930 = vshrl.u32 %v929, 7
          %v931 = vsub.s32 %v928, %v930
          %v932 = vrot.slane %v924, %v931
          %v934 = vunpack.c.l.s4 1934713408
          %v935 = vunpack.c.0.s8 %v934
          %v936 = vlaneseq
          %v937 = vshrl.u32 %v936, 7
          %v938 = vsub.s32 %v935, %v937
          %v939 = vrot.slane %v925, %v938
          %v940 = vcombine.low %v907, %v923
          %v941 = vcombine.high %v907, %v923
          %v943 = vunpack.c.l.s4 1934713408
          %v944 = vunpack.c.0.s8 %v943
          %v945 = vlaneseq
          %v946 = vshrl.u32 %v945, 7
          %v947 = vsub.s32 %v944, %v946
          %v948 = vrot.slane %v940, %v947
          %v950 = vunpack.c.l.s4 1934713408
          %v951 = vunpack.c.0.s8 %v950
          %v952 = vlaneseq
          %v953 = vshrl.u32 %v952, 7
          %v954 = vsub.s32 %v951, %v953
          %v955 = vrot.slane %v941, %v954
          %v956 = vcombine.high %v932, 0.0
          %v957 = vcombine.high %v939, 0.0
          %v958 = vcombine.high %v948, 0.0
          %v959 = vcombine.high %v955, 0.0
          %v960 = vcombine.low %v932, %v939
          %v962 = vunpack.c.l.s4 1983009808
          %v963 = vunpack.c.0.s8 %v962
          %v964 = vlaneseq
          %v965 = vshrl.u32 %v964, 7
          %v966 = vsub.s32 %v963, %v965
          %v967 = vrot.slane %v960, %v966
          %v968 = vcombine.low %v956, %v957
          %v970 = vunpack.c.l.s4 1983009808
          %v971 = vunpack.c.0.s8 %v970
          %v972 = vlaneseq
          %v973 = vshrl.u32 %v972, 7
          %v974 = vsub.s32 %v971, %v973
          %v975 = vrot.slane %v968, %v974
          %v976 = vcombine.low %v948, %v955
          %v978 = vunpack.c.l.s4 1983009808
          %v979 = vunpack.c.0.s8 %v978
          %v980 = vlaneseq
          %v981 = vshrl.u32 %v980, 7
          %v982 = vsub.s32 %v979, %v981
          %v983 = vrot.slane %v976, %v982
          %v984 = vcombine.low %v958, %v959
          %v986 = vunpack.c.l.s4 1983009808
          %v987 = vunpack.c.0.s8 %v986
          %v988 = vlaneseq
          %v989 = vshrl.u32 %v988, 7
          %v990 = vsub.s32 %v987, %v989
          %v991 = vrot.slane %v984, %v990
          %v992 = vcombine.low %v967, %v975
          %v993 = vcombine.high %v967, %v975
          %v995 = vunpack.c.l.s4 1934713408
          %v996 = vunpack.c.0.s8 %v995
          %v997 = vlaneseq
          %v998 = vshrl.u32 %v997, 7
          %v999 = vsub.s32 %v996, %v998
          %v1000 = vrot.slane %v992, %v999
          %v1002 = vunpack.c.l.s4 1934713408
          %v1003 = vunpack.c.0.s8 %v1002
          %v1004 = vlaneseq
          %v1005 = vshrl.u32 %v1004, 7
          %v1006 = vsub.s32 %v1003, %v1005
          %v1007 = vrot.slane %v993, %v1006
          %v1008 = vcombine.low %v983, %v991
          %v1009 = vcombine.high %v983, %v991
          %v1011 = vunpack.c.l.s4 1934713408
          %v1012 = vunpack.c.0.s8 %v1011
          %v1013 = vlaneseq
          %v1014 = vshrl.u32 %v1013, 7
          %v1015 = vsub.s32 %v1012, %v1014
          %v1016 = vrot.slane %v1008, %v1015
          %v1018 = vunpack.c.l.s4 1934713408
          %v1019 = vunpack.c.0.s8 %v1018
          %v1020 = vlaneseq
          %v1021 = vshrl.u32 %v1020, 7
          %v1022 = vsub.s32 %v1019, %v1021
          %v1023 = vrot.slane %v1009, %v1022
          %v1024 = vcombine.low %v1000, %v1016
          %v1025 = vcombine.high %v1000, %v1016
          %v1026 = vcombine.low %v1007, %v1023
          %v1027 = vcombine.high %v1007, %v1023
          %v1028 = vpack.c.bf16 %v1024, %v1024
          %v1029 = vpack.c.bf16 %v1025, %v1025
          %v1030 = vpack.c.bf16 %v1026, %v1026
          %v1031 = vpack.c.bf16 %v1027, %v1027
          %1032 = vst.msk [vmem:[#allocation3] sm:$0xf] %vm875, %v1028
          %1033 = vst.msk [vmem:[#allocation3 + $0x4] sm:$0xf] %vm875, %v1029
          %1034 = vst.msk [vmem:[#allocation3 + $0x8] sm:$0xf] %vm875, %v1030
          %1035 = vst.msk [vmem:[#allocation3 + $0xc] sm:$0xf] %vm875, %v1031
        $region116: #{tpu_custom_call.1} parent=83 // pred_fallthru
          _
        %s1036 = smul.u32 %s39, 8
        %s1037 = scalar_lea.vmem %s643, %s1036
        %v1038 = vld [vmem:[%s1037] sm:$0xff]
        %v1039 = vld [vmem:[%s650] sm:$0xff]
        %v1040 = vpack.c.bf16 %v1038, %v1038
        %v1041 = vld [vmem:[%s2] sm:$0xf]
        %v1042 = vld [vmem:[%s2 + $0x4] sm:$0xf]
        %v1043 = vld [vmem:[%s2 + $0x8] sm:$0xf]
        %v1044 = vld [vmem:[%s2 + $0xc] sm:$0xf]
        %v1045 = vld [vmem:[#allocation4] sm:$0x1]
        %v1047 = vlaneseq
        %v1048 = vshrl.u32 %v1047, 7
        %v1049 = vsub.s32 0, %v1048
        %v1050 = vrot.slane %v1045, %v1049
        %v1056 = vunpack.c.l.b16 %v1041
        %v1057 = vunpack.c.l.b16 %v1042
        %v1058 = vunpack.c.l.b16 %v1043
        %v1059 = vunpack.c.l.b16 %v1044
        %v1060 = vpack.c.b16 %v1057, %v1056
        %v1061 = vpack.c.b16 %v1059, %v1058
        %vm1064 = vcmask 261120
        %v1066 = vsel %vm1064, %v1040, 0
        %1068 = vmatprep.subr.bf16.mxu0 0
        %1069 = vmatpush1.bf16.msra.mxu0 0
        %1070 = vmatprep.subr.bf16.mxu0 0
        %1071 = vmatpush1.bf16.msra.mxu0 0
        %1072 = vmatprep.subr.bf16.mxu0 0
        %1073 = vmatpush1.bf16.msra.mxu0 0
        %1074 = vmatprep.subr.bf16.mxu0 0
        %1075 = vmatpush1.bf16.msra.mxu0 0
        %1076 = vmatprep.subr.bf16.mxu0 0
        %1077 = vmatpush1.bf16.msra.mxu0 0
        %1078 = vmatprep.subr.bf16.mxu0 0
        %1079 = vmatpush1.bf16.msra.mxu0 0
        %1080 = vmatprep.subr.bf16.mxu0 0
        %1081 = vmatpush1.bf16.msra.mxu0 %v1061
        %1082 = vmatprep.subr.bf16.mxu0 0
        %1083 = vmatpush1.bf16.msra.mxu0 %v1060
        %1084 = vmatprep.subr.bf16.mxu0 0
        %1085 = vmatpush2.bf16.msra.mxu0 0
        %1086 = vmatprep.subr.bf16.mxu0 0
        %1087 = vmatpush2.bf16.msra.mxu0 0
        %1088 = vmatprep.subr.bf16.mxu0 0
        %1089 = vmatpush2.bf16.msra.mxu0 0
        %1090 = vmatprep.subr.bf16.mxu0 0
        %1091 = vmatpush2.bf16.msra.mxu0 0
        %1092 = vmatprep.subr.bf16.mxu0 0
        %1093 = vmatpush2.bf16.msra.mxu0 0
        %1094 = vmatprep.subr.bf16.mxu0 0
        %1095 = vmatpush2.bf16.msra.mxu0 0
        %1096 = vmatprep.subr.bf16.mxu0 0
        %1097 = vmatpush2.bf16.msra.mxu0 0
        %1098 = vmatprep.subr.bf16.mxu0 0
        %1099 = vmatpush2.bf16.msra.mxu0 0
        %1100 = vmatprep.mubr.bf16.mxu0 0
        %1101 = vmatmul.mubr.bf16.gmra.mxu0 %v1066
        %v1102 = vpop.f32.mrf.mxu0
        %v1103 = vadd.f32 %v1050, %v1102
        %v1104 = vpop.f32.mrf.mxu0
        %v1105 = vpop.f32.mrf.mxu0
        %v1106 = vpop.f32.mrf.mxu0
        %1107 = vdwg.mxu0
        %1109 = vrot.lane.b32.xlu0 %v1103, 120
        %v1110 = vpop.permute.xlu0 %1109
        %1112 = vrot.lane.b32.xlu0 %v1103, 112
        %v1113 = vpop.permute.xlu0 %1112
        %1115 = vrot.lane.b32.xlu0 %v1103, 104
        %v1116 = vpop.permute.xlu0 %1115
        %v1118 = vcombine.low %v1103, %v1113
        %v1119 = vcombine.high %v1103, %v1113
        %v1121 = vunpack.c.l.s4 1983009808
        %v1122 = vunpack.c.0.s8 %v1121
        %v1123 = vlaneseq
        %v1124 = vshrl.u32 %v1123, 7
        %v1125 = vsub.s32 %v1122, %v1124
        %v1126 = vrot.slane %v1118, %v1125
        %v1128 = vunpack.c.l.s4 1983009808
        %v1129 = vunpack.c.0.s8 %v1128
        %v1130 = vlaneseq
        %v1131 = vshrl.u32 %v1130, 7
        %v1132 = vsub.s32 %v1129, %v1131
        %v1133 = vrot.slane %v1119, %v1132
        %v1134 = vcombine.low %v1110, %v1116
        %v1135 = vcombine.high %v1110, %v1116
        %v1137 = vunpack.c.l.s4 1983009808
        %v1138 = vunpack.c.0.s8 %v1137
        %v1139 = vlaneseq
        %v1140 = vshrl.u32 %v1139, 7
        %v1141 = vsub.s32 %v1138, %v1140
        %v1142 = vrot.slane %v1134, %v1141
        %v1144 = vunpack.c.l.s4 1983009808
        %v1145 = vunpack.c.0.s8 %v1144
        %v1146 = vlaneseq
        %v1147 = vshrl.u32 %v1146, 7
        %v1148 = vsub.s32 %v1145, %v1147
        %v1149 = vrot.slane %v1135, %v1148
        %v1150 = vcombine.low %v1126, %v1142
        %v1151 = vcombine.high %v1126, %v1142
        %v1153 = vunpack.c.l.s4 1934713408
        %v1154 = vunpack.c.0.s8 %v1153
        %v1155 = vlaneseq
        %v1156 = vshrl.u32 %v1155, 7
        %v1157 = vsub.s32 %v1154, %v1156
        %v1158 = vrot.slane %v1150, %v1157
        %v1160 = vunpack.c.l.s4 1934713408
        %v1161 = vunpack.c.0.s8 %v1160
        %v1162 = vlaneseq
        %v1163 = vshrl.u32 %v1162, 7
        %v1164 = vsub.s32 %v1161, %v1163
        %v1165 = vrot.slane %v1151, %v1164
        %v1166 = vcombine.low %v1133, %v1149
        %v1167 = vcombine.high %v1133, %v1149
        %v1169 = vunpack.c.l.s4 1934713408
        %v1170 = vunpack.c.0.s8 %v1169
        %v1171 = vlaneseq
        %v1172 = vshrl.u32 %v1171, 7
        %v1173 = vsub.s32 %v1170, %v1172
        %v1174 = vrot.slane %v1166, %v1173
        %v1176 = vunpack.c.l.s4 1934713408
        %v1177 = vunpack.c.0.s8 %v1176
        %v1178 = vlaneseq
        %v1179 = vshrl.u32 %v1178, 7
        %v1180 = vsub.s32 %v1177, %v1179
        %v1181 = vrot.slane %v1167, %v1180
        %v1182 = vcombine.high %v1158, 0.0
        %v1183 = vcombine.high %v1165, 0.0
        %v1184 = vcombine.high %v1174, 0.0
        %v1185 = vcombine.high %v1181, 0.0
        %v1186 = vcombine.low %v1158, %v1165
        %v1188 = vunpack.c.l.s4 1983009808
        %v1189 = vunpack.c.0.s8 %v1188
        %v1190 = vlaneseq
        %v1191 = vshrl.u32 %v1190, 7
        %v1192 = vsub.s32 %v1189, %v1191
        %v1193 = vrot.slane %v1186, %v1192
        %v1194 = vcombine.low %v1182, %v1183
        %v1196 = vunpack.c.l.s4 1983009808
        %v1197 = vunpack.c.0.s8 %v1196
        %v1198 = vlaneseq
        %v1199 = vshrl.u32 %v1198, 7
        %v1200 = vsub.s32 %v1197, %v1199
        %v1201 = vrot.slane %v1194, %v1200
        %v1202 = vcombine.low %v1174, %v1181
        %v1204 = vunpack.c.l.s4 1983009808
        %v1205 = vunpack.c.0.s8 %v1204
        %v1206 = vlaneseq
        %v1207 = vshrl.u32 %v1206, 7
        %v1208 = vsub.s32 %v1205, %v1207
        %v1209 = vrot.slane %v1202, %v1208
        %v1210 = vcombine.low %v1184, %v1185
        %v1212 = vunpack.c.l.s4 1983009808
        %v1213 = vunpack.c.0.s8 %v1212
        %v1214 = vlaneseq
        %v1215 = vshrl.u32 %v1214, 7
        %v1216 = vsub.s32 %v1213, %v1215
        %v1217 = vrot.slane %v1210, %v1216
        %v1218 = vcombine.low %v1193, %v1201
        %v1219 = vcombine.high %v1193, %v1201
        %v1221 = vunpack.c.l.s4 1934713408
        %v1222 = vunpack.c.0.s8 %v1221
        %v1223 = vlaneseq
        %v1224 = vshrl.u32 %v1223, 7
        %v1225 = vsub.s32 %v1222, %v1224
        %v1226 = vrot.slane %v1218, %v1225
        %v1228 = vunpack.c.l.s4 1934713408
        %v1229 = vunpack.c.0.s8 %v1228
        %v1230 = vlaneseq
        %v1231 = vshrl.u32 %v1230, 7
        %v1232 = vsub.s32 %v1229, %v1231
        %v1233 = vrot.slane %v1219, %v1232
        %v1234 = vcombine.low %v1209, %v1217
        %v1235 = vcombine.high %v1209, %v1217
        %v1237 = vunpack.c.l.s4 1934713408
        %v1238 = vunpack.c.0.s8 %v1237
        %v1239 = vlaneseq
        %v1240 = vshrl.u32 %v1239, 7
        %v1241 = vsub.s32 %v1238, %v1240
        %v1242 = vrot.slane %v1234, %v1241
        %v1244 = vunpack.c.l.s4 1934713408
        %v1245 = vunpack.c.0.s8 %v1244
        %v1246 = vlaneseq
        %v1247 = vshrl.u32 %v1246, 7
        %v1248 = vsub.s32 %v1245, %v1247
        %v1249 = vrot.slane %v1235, %v1248
        %v1250 = vcombine.low %v1226, %v1242
        %v1251 = vcombine.high %v1226, %v1242
        %v1252 = vcombine.low %v1233, %v1249
        %v1253 = vcombine.high %v1233, %v1249
        %v1254 = vpack.c.bf16 %v1250, %v1250
        %v1255 = vpack.c.bf16 %v1251, %v1251
        %v1256 = vpack.c.bf16 %v1252, %v1252
        %v1257 = vpack.c.bf16 %v1253, %v1253
        %v1258 = vld [vmem:[#allocation2] sm:$0xf]
        %v1259 = vld [vmem:[#allocation2 + $0x4] sm:$0xf]
        %v1260 = vld [vmem:[#allocation2 + $0x8] sm:$0xf]
        %v1261 = vld [vmem:[#allocation2 + $0xc] sm:$0xf]
        %vm1262 = vcmask 64512
        %v1264 = vsel %vm1262, %v1254, 0
        %v1267 = vsel %vm1262, %v1258, 0
        %1269 = vmatprep.subr.bf16.mxu0 0
        %1270 = vmatpush1.bf16.xpose.msra.mxu0 0
        %1271 = vmatprep.subr.bf16.mxu0 0
        %1272 = vmatpush1.bf16.xpose.msra.mxu0 0
        %1273 = vmatprep.subr.bf16.mxu0 0
        %1274 = vmatpush1.bf16.xpose.msra.mxu0 0
        %1275 = vmatprep.subr.bf16.mxu0 0
        %1276 = vmatpush1.bf16.xpose.msra.mxu0 0
        %1277 = vmatprep.subr.bf16.mxu0 0
        %1278 = vmatpush1.bf16.xpose.msra.mxu0 0
        %1279 = vmatprep.subr.bf16.mxu0 0
        %1280 = vmatpush1.bf16.xpose.msra.mxu0 0
        %1281 = vmatprep.subr.bf16.mxu0 0
        %1282 = vmatpush1.bf16.xpose.msra.mxu0 0
        %1283 = vmatprep.subr.bf16.mxu0 0
        %1284 = vmatpush1.bf16.xpose.msra.mxu0 %v1267
        %1285 = vmatprep.subr.bf16.mxu0 0
        %1286 = vmatpush2.bf16.xpose.msra.mxu0 0
        %1287 = vmatprep.subr.bf16.mxu0 0
        %1288 = vmatpush2.bf16.xpose.msra.mxu0 0
        %1289 = vmatprep.subr.bf16.mxu0 0
        %1290 = vmatpush2.bf16.xpose.msra.mxu0 0
        %1291 = vmatprep.subr.bf16.mxu0 0
        %1292 = vmatpush2.bf16.xpose.msra.mxu0 0
        %1293 = vmatprep.subr.bf16.mxu0 0
        %1294 = vmatpush2.bf16.xpose.msra.mxu0 0
        %1295 = vmatprep.subr.bf16.mxu0 0
        %1296 = vmatpush2.bf16.xpose.msra.mxu0 0
        %1297 = vmatprep.subr.bf16.mxu0 0
        %1298 = vmatpush2.bf16.xpose.msra.mxu0 0
        %1299 = vmatprep.subr.bf16.mxu0 0
        %1300 = vmatpush2.bf16.xpose.msra.mxu0 0
        %1301 = vmatprep.mubr.bf16.mxu0 0
        %1302 = vmatmul.mubr.bf16.gmra.mxu0 %v1264
        %v1303 = vpop.f32.mrf.mxu0
        %v1304 = vadd.f32 %v1039, %v1303
        %v1305 = vpop.f32.mrf.mxu0
        %v1306 = vpop.f32.mrf.mxu0
        %v1307 = vpop.f32.mrf.mxu0
        %1308 = vdwg.mxu0
        %v1310 = vsel %vm1262, %v1255, 0
        %v1313 = vsel %vm1262, %v1259, 0
        %1315 = vmatprep.subr.bf16.mxu0 0
        %1316 = vmatpush1.bf16.xpose.msra.mxu0 0
        %1317 = vmatprep.subr.bf16.mxu0 0
        %1318 = vmatpush1.bf16.xpose.msra.mxu0 0
        %1319 = vmatprep.subr.bf16.mxu0 0
        %1320 = vmatpush1.bf16.xpose.msra.mxu0 0
        %1321 = vmatprep.subr.bf16.mxu0 0
        %1322 = vmatpush1.bf16.xpose.msra.mxu0 0
        %1323 = vmatprep.subr.bf16.mxu0 0
        %1324 = vmatpush1.bf16.xpose.msra.mxu0 0
        %1325 = vmatprep.subr.bf16.mxu0 0
        %1326 = vmatpush1.bf16.xpose.msra.mxu0 0
        %1327 = vmatprep.subr.bf16.mxu0 0
        %1328 = vmatpush1.bf16.xpose.msra.mxu0 0
        %1329 = vmatprep.subr.bf16.mxu0 0
        %1330 = vmatpush1.bf16.xpose.msra.mxu0 %v1313
        %1331 = vmatprep.subr.bf16.mxu0 0
        %1332 = vmatpush2.bf16.xpose.msra.mxu0 0
        %1333 = vmatprep.subr.bf16.mxu0 0
        %1334 = vmatpush2.bf16.xpose.msra.mxu0 0
        %1335 = vmatprep.subr.bf16.mxu0 0
        %1336 = vmatpush2.bf16.xpose.msra.mxu0 0
        %1337 = vmatprep.subr.bf16.mxu0 0
        %1338 = vmatpush2.bf16.xpose.msra.mxu0 0
        %1339 = vmatprep.subr.bf16.mxu0 0
        %1340 = vmatpush2.bf16.xpose.msra.mxu0 0
        %1341 = vmatprep.subr.bf16.mxu0 0
        %1342 = vmatpush2.bf16.xpose.msra.mxu0 0
        %1343 = vmatprep.subr.bf16.mxu0 0
        %1344 = vmatpush2.bf16.xpose.msra.mxu0 0
        %1345 = vmatprep.subr.bf16.mxu0 0
        %1346 = vmatpush2.bf16.xpose.msra.mxu0 0
        %1347 = vmatprep.mubr.bf16.mxu0 0
        %1348 = vmatmul.mubr.bf16.gmra.mxu0 %v1310
        %v1349 = vpop.f32.mrf.mxu0
        %v1350 = vadd.f32 %v1039, %v1349
        %v1351 = vpop.f32.mrf.mxu0
        %v1352 = vpop.f32.mrf.mxu0
        %v1353 = vpop.f32.mrf.mxu0
        %1354 = vdwg.mxu0
        %v1356 = vsel %vm1262, %v1256, 0
        %v1359 = vsel %vm1262, %v1260, 0
        %1361 = vmatprep.subr.bf16.mxu0 0
        %1362 = vmatpush1.bf16.xpose.msra.mxu0 0
        %1363 = vmatprep.subr.bf16.mxu0 0
        %1364 = vmatpush1.bf16.xpose.msra.mxu0 0
        %1365 = vmatprep.subr.bf16.mxu0 0
        %1366 = vmatpush1.bf16.xpose.msra.mxu0 0
        %1367 = vmatprep.subr.bf16.mxu0 0
        %1368 = vmatpush1.bf16.xpose.msra.mxu0 0
        %1369 = vmatprep.subr.bf16.mxu0 0
        %1370 = vmatpush1.bf16.xpose.msra.mxu0 0
        %1371 = vmatprep.subr.bf16.mxu0 0
        %1372 = vmatpush1.bf16.xpose.msra.mxu0 0
        %1373 = vmatprep.subr.bf16.mxu0 0
        %1374 = vmatpush1.bf16.xpose.msra.mxu0 0
        %1375 = vmatprep.subr.bf16.mxu0 0
        %1376 = vmatpush1.bf16.xpose.msra.mxu0 %v1359
        %1377 = vmatprep.subr.bf16.mxu0 0
        %1378 = vmatpush2.bf16.xpose.msra.mxu0 0
        %1379 = vmatprep.subr.bf16.mxu0 0
        %1380 = vmatpush2.bf16.xpose.msra.mxu0 0
        %1381 = vmatprep.subr.bf16.mxu0 0
        %1382 = vmatpush2.bf16.xpose.msra.mxu0 0
        %1383 = vmatprep.subr.bf16.mxu0 0
        %1384 = vmatpush2.bf16.xpose.msra.mxu0 0
        %1385 = vmatprep.subr.bf16.mxu0 0
        %1386 = vmatpush2.bf16.xpose.msra.mxu0 0
        %1387 = vmatprep.subr.bf16.mxu0 0
        %1388 = vmatpush2.bf16.xpose.msra.mxu0 0
        %1389 = vmatprep.subr.bf16.mxu0 0
        %1390 = vmatpush2.bf16.xpose.msra.mxu0 0
        %1391 = vmatprep.subr.bf16.mxu0 0
        %1392 = vmatpush2.bf16.xpose.msra.mxu0 0
        %1393 = vmatprep.mubr.bf16.mxu0 0
        %1394 = vmatmul.mubr.bf16.gmra.mxu0 %v1356
        %v1395 = vpop.f32.mrf.mxu0
        %v1396 = vadd.f32 %v1039, %v1395
        %v1397 = vpop.f32.mrf.mxu0
        %v1398 = vpop.f32.mrf.mxu0
        %v1399 = vpop.f32.mrf.mxu0
        %1400 = vdwg.mxu0
        %v1402 = vsel %vm1262, %v1257, 0
        %v1405 = vsel %vm1262, %v1261, 0
        %1407 = vmatprep.subr.bf16.mxu0 0
        %1408 = vmatpush1.bf16.xpose.msra.mxu0 0
        %1409 = vmatprep.subr.bf16.mxu0 0
        %1410 = vmatpush1.bf16.xpose.msra.mxu0 0
        %1411 = vmatprep.subr.bf16.mxu0 0
        %1412 = vmatpush1.bf16.xpose.msra.mxu0 0
        %1413 = vmatprep.subr.bf16.mxu0 0
        %1414 = vmatpush1.bf16.xpose.msra.mxu0 0
        %1415 = vmatprep.subr.bf16.mxu0 0
        %1416 = vmatpush1.bf16.xpose.msra.mxu0 0
        %1417 = vmatprep.subr.bf16.mxu0 0
        %1418 = vmatpush1.bf16.xpose.msra.mxu0 0
        %1419 = vmatprep.subr.bf16.mxu0 0
        %1420 = vmatpush1.bf16.xpose.msra.mxu0 0
        %1421 = vmatprep.subr.bf16.mxu0 0
        %1422 = vmatpush1.bf16.xpose.msra.mxu0 %v1405
        %1423 = vmatprep.subr.bf16.mxu0 0
        %1424 = vmatpush2.bf16.xpose.msra.mxu0 0
        %1425 = vmatprep.subr.bf16.mxu0 0
        %1426 = vmatpush2.bf16.xpose.msra.mxu0 0
        %1427 = vmatprep.subr.bf16.mxu0 0
        %1428 = vmatpush2.bf16.xpose.msra.mxu0 0
        %1429 = vmatprep.subr.bf16.mxu0 0
        %1430 = vmatpush2.bf16.xpose.msra.mxu0 0
        %1431 = vmatprep.subr.bf16.mxu0 0
        %1432 = vmatpush2.bf16.xpose.msra.mxu0 0
        %1433 = vmatprep.subr.bf16.mxu0 0
        %1434 = vmatpush2.bf16.xpose.msra.mxu0 0
        %1435 = vmatprep.subr.bf16.mxu0 0
        %1436 = vmatpush2.bf16.xpose.msra.mxu0 0
        %1437 = vmatprep.subr.bf16.mxu0 0
        %1438 = vmatpush2.bf16.xpose.msra.mxu0 0
        %1439 = vmatprep.mubr.bf16.mxu0 0
        %1440 = vmatmul.mubr.bf16.gmra.mxu0 %v1402
        %v1441 = vpop.f32.mrf.mxu0
        %v1442 = vadd.f32 %v1039, %v1441
        %v1443 = vpop.f32.mrf.mxu0
        %v1444 = vpop.f32.mrf.mxu0
        %v1445 = vpop.f32.mrf.mxu0
        %1446 = vdwg.mxu0
        %v1447 = vsel %vm1262, %v1304, -inf
        %1448 = vmax.xlane.f32.xlu0 %v1447
        %v1449 = vpop.xlane.xlu0 %1448
        %v1450 = vsel %vm1262, %v1350, -inf
        %1451 = vmax.xlane.f32.xlu0 %v1450
        %v1452 = vpop.xlane.xlu0 %1451
        %v1453 = vsel %vm1262, %v1396, -inf
        %1454 = vmax.xlane.f32.xlu0 %v1453
        %v1455 = vpop.xlane.xlu0 %1454
        %v1456 = vsel %vm1262, %v1442, -inf
        %1457 = vmax.xlane.f32.xlu0 %v1456
        %v1458 = vpop.xlane.xlu0 %1457
        %v1459 = vsub.f32 %v1304, %v1449
        %v1460 = vsub.f32 %v1350, %v1452
        %v1461 = vsub.f32 %v1396, %v1455
        %v1462 = vsub.f32 %v1442, %v1458
        %v1463 = vmul.f32 %v1459, 1.442695
        %v1464 = vpow.pop %v1463
        %v1465 = vmul.f32 %v1460, 1.442695
        %v1466 = vpow.pop %v1465
        %v1467 = vmul.f32 %v1461, 1.442695
        %v1468 = vpow.pop %v1467
        %v1469 = vmul.f32 %v1462, 1.442695
        %v1470 = vpow.pop %v1469
        %v1471 = vsel %vm1262, %v1464, 0.0
        %1472 = vadd.xlane.f32.xlu0 %v1471
        %v1473 = vpop.xlane.xlu0 %1472
        %v1474 = vsel %vm1262, %v1466, 0.0
        %1475 = vadd.xlane.f32.xlu0 %v1474
        %v1476 = vpop.xlane.xlu0 %1475
        %v1477 = vsel %vm1262, %v1468, 0.0
        %1478 = vadd.xlane.f32.xlu0 %v1477
        %v1479 = vpop.xlane.xlu0 %1478
        %v1480 = vsel %vm1262, %v1470, 0.0
        %1481 = vadd.xlane.f32.xlu0 %v1480
        %v1482 = vpop.xlane.xlu0 %1481
        %v1483 = vrcp.pop %v1473
        %v1484 = vrcp.pop %v1476
        %v1485 = vrcp.pop %v1479
        %v1486 = vrcp.pop %v1482
        %v1487 = vmul.f32 %v1464, %v1483
        %v1488 = vmul.f32 %v1466, %v1484
        %v1489 = vmul.f32 %v1468, %v1485
        %v1490 = vmul.f32 %v1470, %v1486
        %v1491 = vpack.c.bf16 %v1487, %v1487
        %v1492 = vpack.c.bf16 %v1488, %v1488
        %v1493 = vpack.c.bf16 %v1489, %v1489
        %v1494 = vpack.c.bf16 %v1490, %v1490
        %v1495 = vld [vmem:[#allocation3] sm:$0xf]
        %v1496 = vld [vmem:[#allocation3 + $0x4] sm:$0xf]
        %v1497 = vld [vmem:[#allocation3 + $0x8] sm:$0xf]
        %v1498 = vld [vmem:[#allocation3 + $0xc] sm:$0xf]
        %v1500 = vsel %vm1262, %v1491, 0
        %vm1502 = vcmask 1043456
        %v1504 = vsel %vm1502, %v1495, 0
        %1506 = vmatprep.subr.bf16.mxu0 0
        %1507 = vmatpush1.bf16.msra.mxu0 0
        %1508 = vmatprep.subr.bf16.mxu0 0
        %1509 = vmatpush1.bf16.msra.mxu0 0
        %1510 = vmatprep.subr.bf16.mxu0 0
        %1511 = vmatpush1.bf16.msra.mxu0 0
        %1512 = vmatprep.subr.bf16.mxu0 0
        %1513 = vmatpush1.bf16.msra.mxu0 0
        %1514 = vmatprep.subr.bf16.mxu0 0
        %1515 = vmatpush1.bf16.msra.mxu0 0
        %1516 = vmatprep.subr.bf16.mxu0 0
        %1517 = vmatpush1.bf16.msra.mxu0 0
        %1518 = vmatprep.subr.bf16.mxu0 0
        %1519 = vmatpush1.bf16.msra.mxu0 0
        %1520 = vmatprep.subr.bf16.mxu0 0
        %1521 = vmatpush1.bf16.msra.mxu0 %v1504
        %1522 = vmatprep.subr.bf16.mxu0 0
        %1523 = vmatpush2.bf16.msra.mxu0 0
        %1524 = vmatprep.subr.bf16.mxu0 0
        %1525 = vmatpush2.bf16.msra.mxu0 0
        %1526 = vmatprep.subr.bf16.mxu0 0
        %1527 = vmatpush2.bf16.msra.mxu0 0
        %1528 = vmatprep.subr.bf16.mxu0 0
        %1529 = vmatpush2.bf16.msra.mxu0 0
        %1530 = vmatprep.subr.bf16.mxu0 0
        %1531 = vmatpush2.bf16.msra.mxu0 0
        %1532 = vmatprep.subr.bf16.mxu0 0
        %1533 = vmatpush2.bf16.msra.mxu0 0
        %1534 = vmatprep.subr.bf16.mxu0 0
        %1535 = vmatpush2.bf16.msra.mxu0 0
        %1536 = vmatprep.subr.bf16.mxu0 0
        %1537 = vmatpush2.bf16.msra.mxu0 0
        %1538 = vmatprep.mubr.bf16.mxu0 0
        %1539 = vmatmul.mubr.bf16.gmra.mxu0 %v1500
        %v1540 = vpop.f32.mrf.mxu0
        %v1541 = vadd.f32 0.0, %v1540
        %v1542 = vpop.f32.mrf.mxu0
        %v1543 = vpop.f32.mrf.mxu0
        %v1544 = vpop.f32.mrf.mxu0
        %1545 = vdwg.mxu0
        %v1547 = vsel %vm1262, %v1492, 0
        %v1550 = vsel %vm1502, %v1496, 0
        %1552 = vmatprep.subr.bf16.mxu0 0
        %1553 = vmatpush1.bf16.msra.mxu0 0
        %1554 = vmatprep.subr.bf16.mxu0 0
        %1555 = vmatpush1.bf16.msra.mxu0 0
        %1556 = vmatprep.subr.bf16.mxu0 0
        %1557 = vmatpush1.bf16.msra.mxu0 0
        %1558 = vmatprep.subr.bf16.mxu0 0
        %1559 = vmatpush1.bf16.msra.mxu0 0
        %1560 = vmatprep.subr.bf16.mxu0 0
        %1561 = vmatpush1.bf16.msra.mxu0 0
        %1562 = vmatprep.subr.bf16.mxu0 0
        %1563 = vmatpush1.bf16.msra.mxu0 0
        %1564 = vmatprep.subr.bf16.mxu0 0
        %1565 = vmatpush1.bf16.msra.mxu0 0
        %1566 = vmatprep.subr.bf16.mxu0 0
        %1567 = vmatpush1.bf16.msra.mxu0 %v1550
        %1568 = vmatprep.subr.bf16.mxu0 0
        %1569 = vmatpush2.bf16.msra.mxu0 0
        %1570 = vmatprep.subr.bf16.mxu0 0
        %1571 = vmatpush2.bf16.msra.mxu0 0
        %1572 = vmatprep.subr.bf16.mxu0 0
        %1573 = vmatpush2.bf16.msra.mxu0 0
        %1574 = vmatprep.subr.bf16.mxu0 0
        %1575 = vmatpush2.bf16.msra.mxu0 0
        %1576 = vmatprep.subr.bf16.mxu0 0
        %1577 = vmatpush2.bf16.msra.mxu0 0
        %1578 = vmatprep.subr.bf16.mxu0 0
        %1579 = vmatpush2.bf16.msra.mxu0 0
        %1580 = vmatprep.subr.bf16.mxu0 0
        %1581 = vmatpush2.bf16.msra.mxu0 0
        %1582 = vmatprep.subr.bf16.mxu0 0
        %1583 = vmatpush2.bf16.msra.mxu0 0
        %1584 = vmatprep.mubr.bf16.mxu0 0
        %1585 = vmatmul.mubr.bf16.gmra.mxu0 %v1547
        %v1586 = vpop.f32.mrf.mxu0
        %v1587 = vadd.f32 0.0, %v1586
        %v1588 = vpop.f32.mrf.mxu0
        %v1589 = vpop.f32.mrf.mxu0
        %v1590 = vpop.f32.mrf.mxu0
        %1591 = vdwg.mxu0
        %v1593 = vsel %vm1262, %v1493, 0
        %v1596 = vsel %vm1502, %v1497, 0
        %1598 = vmatprep.subr.bf16.mxu0 0
        %1599 = vmatpush1.bf16.msra.mxu0 0
        %1600 = vmatprep.subr.bf16.mxu0 0
        %1601 = vmatpush1.bf16.msra.mxu0 0
        %1602 = vmatprep.subr.bf16.mxu0 0
        %1603 = vmatpush1.bf16.msra.mxu0 0
        %1604 = vmatprep.subr.bf16.mxu0 0
        %1605 = vmatpush1.bf16.msra.mxu0 0
        %1606 = vmatprep.subr.bf16.mxu0 0
        %1607 = vmatpush1.bf16.msra.mxu0 0
        %1608 = vmatprep.subr.bf16.mxu0 0
        %1609 = vmatpush1.bf16.msra.mxu0 0
        %1610 = vmatprep.subr.bf16.mxu0 0
        %1611 = vmatpush1.bf16.msra.mxu0 0
        %1612 = vmatprep.subr.bf16.mxu0 0
        %1613 = vmatpush1.bf16.msra.mxu0 %v1596
        %1614 = vmatprep.subr.bf16.mxu0 0
        %1615 = vmatpush2.bf16.msra.mxu0 0
        %1616 = vmatprep.subr.bf16.mxu0 0
        %1617 = vmatpush2.bf16.msra.mxu0 0
        %1618 = vmatprep.subr.bf16.mxu0 0
        %1619 = vmatpush2.bf16.msra.mxu0 0
        %1620 = vmatprep.subr.bf16.mxu0 0
        %1621 = vmatpush2.bf16.msra.mxu0 0
        %1622 = vmatprep.subr.bf16.mxu0 0
        %1623 = vmatpush2.bf16.msra.mxu0 0
        %1624 = vmatprep.subr.bf16.mxu0 0
        %1625 = vmatpush2.bf16.msra.mxu0 0
        %1626 = vmatprep.subr.bf16.mxu0 0
        %1627 = vmatpush2.bf16.msra.mxu0 0
        %1628 = vmatprep.subr.bf16.mxu0 0
        %1629 = vmatpush2.bf16.msra.mxu0 0
        %1630 = vmatprep.mubr.bf16.mxu0 0
        %1631 = vmatmul.mubr.bf16.gmra.mxu0 %v1593
        %v1632 = vpop.f32.mrf.mxu0
        %v1633 = vadd.f32 0.0, %v1632
        %v1634 = vpop.f32.mrf.mxu0
        %v1635 = vpop.f32.mrf.mxu0
        %v1636 = vpop.f32.mrf.mxu0
        %1637 = vdwg.mxu0
        %v1639 = vsel %vm1262, %v1494, 0
        %v1642 = vsel %vm1502, %v1498, 0
        %1644 = vmatprep.subr.bf16.mxu0 0
        %1645 = vmatpush1.bf16.msra.mxu0 0
        %1646 = vmatprep.subr.bf16.mxu0 0
        %1647 = vmatpush1.bf16.msra.mxu0 0
        %1648 = vmatprep.subr.bf16.mxu0 0
        %1649 = vmatpush1.bf16.msra.mxu0 0
        %1650 = vmatprep.subr.bf16.mxu0 0
        %1651 = vmatpush1.bf16.msra.mxu0 0
        %1652 = vmatprep.subr.bf16.mxu0 0
        %1653 = vmatpush1.bf16.msra.mxu0 0
        %1654 = vmatprep.subr.bf16.mxu0 0
        %1655 = vmatpush1.bf16.msra.mxu0 0
        %1656 = vmatprep.subr.bf16.mxu0 0
        %1657 = vmatpush1.bf16.msra.mxu0 0
        %1658 = vmatprep.subr.bf16.mxu0 0
        %1659 = vmatpush1.bf16.msra.mxu0 %v1642
        %1660 = vmatprep.subr.bf16.mxu0 0
        %1661 = vmatpush2.bf16.msra.mxu0 0
        %1662 = vmatprep.subr.bf16.mxu0 0
        %1663 = vmatpush2.bf16.msra.mxu0 0
        %1664 = vmatprep.subr.bf16.mxu0 0
        %1665 = vmatpush2.bf16.msra.mxu0 0
        %1666 = vmatprep.subr.bf16.mxu0 0
        %1667 = vmatpush2.bf16.msra.mxu0 0
        %1668 = vmatprep.subr.bf16.mxu0 0
        %1669 = vmatpush2.bf16.msra.mxu0 0
        %1670 = vmatprep.subr.bf16.mxu0 0
        %1671 = vmatpush2.bf16.msra.mxu0 0
        %1672 = vmatprep.subr.bf16.mxu0 0
        %1673 = vmatpush2.bf16.msra.mxu0 0
        %1674 = vmatprep.subr.bf16.mxu0 0
        %1675 = vmatpush2.bf16.msra.mxu0 0
        %1676 = vmatprep.mubr.bf16.mxu0 0
        %1677 = vmatmul.mubr.bf16.gmra.mxu0 %v1639
        %v1678 = vpop.f32.mrf.mxu0
        %v1679 = vadd.f32 0.0, %v1678
        %v1680 = vpop.f32.mrf.mxu0
        %v1681 = vpop.f32.mrf.mxu0
        %v1682 = vpop.f32.mrf.mxu0
        %1683 = vdwg.mxu0
        %v1684 = vcombine.low %v1541, %v1633
        %v1685 = vcombine.high %v1541, %v1633
        %v1687 = vunpack.c.l.s4 1983009808
        %v1688 = vunpack.c.0.s8 %v1687
        %v1689 = vlaneseq
        %v1690 = vshrl.u32 %v1689, 7
        %v1691 = vsub.s32 %v1688, %v1690
        %v1692 = vrot.slane %v1684, %v1691
        %v1694 = vunpack.c.l.s4 1983009808
        %v1695 = vunpack.c.0.s8 %v1694
        %v1696 = vlaneseq
        %v1697 = vshrl.u32 %v1696, 7
        %v1698 = vsub.s32 %v1695, %v1697
        %v1699 = vrot.slane %v1685, %v1698
        %v1700 = vcombine.low %v1587, %v1679
        %v1701 = vcombine.high %v1587, %v1679
        %v1703 = vunpack.c.l.s4 1983009808
        %v1704 = vunpack.c.0.s8 %v1703
        %v1705 = vlaneseq
        %v1706 = vshrl.u32 %v1705, 7
        %v1707 = vsub.s32 %v1704, %v1706
        %v1708 = vrot.slane %v1700, %v1707
        %v1710 = vunpack.c.l.s4 1983009808
        %v1711 = vunpack.c.0.s8 %v1710
        %v1712 = vlaneseq
        %v1713 = vshrl.u32 %v1712, 7
        %v1714 = vsub.s32 %v1711, %v1713
        %v1715 = vrot.slane %v1701, %v1714
        %v1716 = vcombine.low %v1692, %v1708
        %v1717 = vcombine.high %v1692, %v1708
        %v1719 = vunpack.c.l.s4 1934713408
        %v1720 = vunpack.c.0.s8 %v1719
        %v1721 = vlaneseq
        %v1722 = vshrl.u32 %v1721, 7
        %v1723 = vsub.s32 %v1720, %v1722
        %v1724 = vrot.slane %v1716, %v1723
        %v1726 = vunpack.c.l.s4 1934713408
        %v1727 = vunpack.c.0.s8 %v1726
        %v1728 = vlaneseq
        %v1729 = vshrl.u32 %v1728, 7
        %v1730 = vsub.s32 %v1727, %v1729
        %v1731 = vrot.slane %v1717, %v1730
        %v1732 = vcombine.low %v1699, %v1715
        %v1733 = vcombine.high %v1699, %v1715
        %v1735 = vunpack.c.l.s4 1934713408
        %v1736 = vunpack.c.0.s8 %v1735
        %v1737 = vlaneseq
        %v1738 = vshrl.u32 %v1737, 7
        %v1739 = vsub.s32 %v1736, %v1738
        %v1740 = vrot.slane %v1732, %v1739
        %v1742 = vunpack.c.l.s4 1934713408
        %v1743 = vunpack.c.0.s8 %v1742
        %v1744 = vlaneseq
        %v1745 = vshrl.u32 %v1744, 7
        %v1746 = vsub.s32 %v1743, %v1745
        %v1747 = vrot.slane %v1733, %v1746
        %v1748 = vcombine.high %v1724, 0.0
        %v1749 = vcombine.high %v1731, 0.0
        %v1750 = vcombine.high %v1740, 0.0
        %v1751 = vcombine.high %v1747, 0.0
        %v1752 = vcombine.low %v1724, %v1731
        %v1754 = vunpack.c.l.s4 1983009808
        %v1755 = vunpack.c.0.s8 %v1754
        %v1756 = vlaneseq
        %v1757 = vshrl.u32 %v1756, 7
        %v1758 = vsub.s32 %v1755, %v1757
        %v1759 = vrot.slane %v1752, %v1758
        %v1760 = vcombine.low %v1748, %v1749
        %v1762 = vunpack.c.l.s4 1983009808
        %v1763 = vunpack.c.0.s8 %v1762
        %v1764 = vlaneseq
        %v1765 = vshrl.u32 %v1764, 7
        %v1766 = vsub.s32 %v1763, %v1765
        %v1767 = vrot.slane %v1760, %v1766
        %v1768 = vcombine.low %v1740, %v1747
        %v1770 = vunpack.c.l.s4 1983009808
        %v1771 = vunpack.c.0.s8 %v1770
        %v1772 = vlaneseq
        %v1773 = vshrl.u32 %v1772, 7
        %v1774 = vsub.s32 %v1771, %v1773
        %v1775 = vrot.slane %v1768, %v1774
        %v1776 = vcombine.low %v1750, %v1751
        %v1778 = vunpack.c.l.s4 1983009808
        %v1779 = vunpack.c.0.s8 %v1778
        %v1780 = vlaneseq
        %v1781 = vshrl.u32 %v1780, 7
        %v1782 = vsub.s32 %v1779, %v1781
        %v1783 = vrot.slane %v1776, %v1782
        %v1784 = vcombine.low %v1759, %v1767
        %v1785 = vcombine.high %v1759, %v1767
        %v1787 = vunpack.c.l.s4 1934713408
        %v1788 = vunpack.c.0.s8 %v1787
        %v1789 = vlaneseq
        %v1790 = vshrl.u32 %v1789, 7
        %v1791 = vsub.s32 %v1788, %v1790
        %v1792 = vrot.slane %v1784, %v1791
        %v1794 = vunpack.c.l.s4 1934713408
        %v1795 = vunpack.c.0.s8 %v1794
        %v1796 = vlaneseq
        %v1797 = vshrl.u32 %v1796, 7
        %v1798 = vsub.s32 %v1795, %v1797
        %v1799 = vrot.slane %v1785, %v1798
        %v1800 = vcombine.low %v1775, %v1783
        %v1801 = vcombine.high %v1775, %v1783
        %v1803 = vunpack.c.l.s4 1934713408
        %v1804 = vunpack.c.0.s8 %v1803
        %v1805 = vlaneseq
        %v1806 = vshrl.u32 %v1805, 7
        %v1807 = vsub.s32 %v1804, %v1806
        %v1808 = vrot.slane %v1800, %v1807
        %v1810 = vunpack.c.l.s4 1934713408
        %v1811 = vunpack.c.0.s8 %v1810
        %v1812 = vlaneseq
        %v1813 = vshrl.u32 %v1812, 7
        %v1814 = vsub.s32 %v1811, %v1813
        %v1815 = vrot.slane %v1801, %v1814
        %v1816 = vcombine.low %v1792, %v1808
        %v1817 = vcombine.high %v1792, %v1808
        %v1818 = vcombine.low %v1799, %v1815
        %v1819 = vcombine.high %v1799, %v1815
        %1821 = vrot.lane.b32.xlu0 %v1817, 8
        %v1822 = vpop.permute.xlu0 %1821
        %1825 = vrot.lane.b32.xlu0 %v1818, 16
        %v1826 = vpop.permute.xlu0 %1825
        %1829 = vrot.lane.b32.xlu0 %v1819, 24
        %v1830 = vpop.permute.xlu0 %1829
        %v1832 = vsel %vm1262, %v1816, %v1822
        %vm1833 = vcmask 130048
        %v1834 = vsel %vm1833, %v1832, %v1826
        %vm1835 = vcmask 195584
        %v1836 = vsel %vm1835, %v1834, %v1830
        %v1837 = vpack.c.bf16 %v1836, %v1836
        %v1838 = vld [vmem:[#allocation10] sm:$0xf]
        %v1839 = vld [vmem:[#allocation10 + $0x4] sm:$0xf]
        %v1840 = vld [vmem:[#allocation10 + $0x8] sm:$0xf]
        %v1841 = vld [vmem:[#allocation10 + $0xc] sm:$0xf]
        %v1842 = vld [vmem:[#allocation12] sm:$0x1]
        %v1844 = vlaneseq
        %v1845 = vshrl.u32 %v1844, 7
        %v1846 = vsub.s32 0, %v1845
        %v1847 = vrot.slane %v1842, %v1846
        %v1853 = vunpack.c.l.b16 %v1838
        %v1854 = vunpack.c.l.b16 %v1839
        %v1855 = vunpack.c.l.b16 %v1840
        %v1856 = vunpack.c.l.b16 %v1841
        %v1857 = vpack.c.b16 %v1854, %v1853
        %v1858 = vpack.c.b16 %v1856, %v1855
        %v1862 = vsel %vm1064, %v1837, 0
        %1864 = vmatprep.subr.bf16.mxu0 0
        %1865 = vmatpush1.bf16.msra.mxu0 0
        %1866 = vmatprep.subr.bf16.mxu0 0
        %1867 = vmatpush1.bf16.msra.mxu0 0
        %1868 = vmatprep.subr.bf16.mxu0 0
        %1869 = vmatpush1.bf16.msra.mxu0 0
        %1870 = vmatprep.subr.bf16.mxu0 0
        %1871 = vmatpush1.bf16.msra.mxu0 0
        %1872 = vmatprep.subr.bf16.mxu0 0
        %1873 = vmatpush1.bf16.msra.mxu0 0
        %1874 = vmatprep.subr.bf16.mxu0 0
        %1875 = vmatpush1.bf16.msra.mxu0 0
        %1876 = vmatprep.subr.bf16.mxu0 0
        %1877 = vmatpush1.bf16.msra.mxu0 %v1858
        %1878 = vmatprep.subr.bf16.mxu0 0
        %1879 = vmatpush1.bf16.msra.mxu0 %v1857
        %1880 = vmatprep.subr.bf16.mxu0 0
        %1881 = vmatpush2.bf16.msra.mxu0 0
        %1882 = vmatprep.subr.bf16.mxu0 0
        %1883 = vmatpush2.bf16.msra.mxu0 0
        %1884 = vmatprep.subr.bf16.mxu0 0
        %1885 = vmatpush2.bf16.msra.mxu0 0
        %1886 = vmatprep.subr.bf16.mxu0 0
        %1887 = vmatpush2.bf16.msra.mxu0 0
        %1888 = vmatprep.subr.bf16.mxu0 0
        %1889 = vmatpush2.bf16.msra.mxu0 0
        %1890 = vmatprep.subr.bf16.mxu0 0
        %1891 = vmatpush2.bf16.msra.mxu0 0
        %1892 = vmatprep.subr.bf16.mxu0 0
        %1893 = vmatpush2.bf16.msra.mxu0 0
        %1894 = vmatprep.subr.bf16.mxu0 0
        %1895 = vmatpush2.bf16.msra.mxu0 0
        %1896 = vmatprep.mubr.bf16.mxu0 0
        %1897 = vmatmul.mubr.bf16.gmra.mxu0 %v1862
        %v1898 = vpop.f32.mrf.mxu0
        %v1899 = vadd.f32 %v1847, %v1898
        %v1900 = vpop.f32.mrf.mxu0
        %v1901 = vpop.f32.mrf.mxu0
        %v1902 = vpop.f32.mrf.mxu0
        %1903 = vdwg.mxu0
        %v1904 = vadd.f32 %v1038, %v1899
        %v1905 = vld [vmem:[#allocation13] sm:$0x1]
        %v1906 = vld [vmem:[#allocation15] sm:$0x1]
        %v1907 = vsel %vm1064, %v1904, 0.0
        %1908 = vadd.xlane.f32.xlu0 %v1907
        %v1909 = vpop.xlane.xlu0 %1908
        %v1910 = vrcp.pop 32.0
        %v1911 = vmul.f32 %v1909, %v1910
        %v1912 = vsub.f32 %v1904, %v1911
        %v1913 = vmul.f32 %v1912, %v1912
        %v1914 = vsel %vm1064, %v1913, 0.0
        %1915 = vadd.xlane.f32.xlu0 %v1914
        %v1916 = vpop.xlane.xlu0 %1915
        %v1917 = vmul.f32 %v1916, %v1910
        %v1918 = vadd.f32 %v1917, 1e-06
        %v1919 = vrsqrt.pop %v1918
        %v1920 = vmul.f32 %v1912, %v1919
        %v1922 = vlaneseq
        %v1923 = vshrl.u32 %v1922, 7
        %v1924 = vsub.s32 0, %v1923
        %v1925 = vrot.slane %v1905, %v1924
        %v1927 = vmul.f32 %v1920, %v1925
        %v1929 = vlaneseq
        %v1930 = vshrl.u32 %v1929, 7
        %v1931 = vsub.s32 0, %v1930
        %v1932 = vrot.slane %v1906, %v1931
        %v1934 = vadd.f32 %v1927, %v1932
        %v1935 = vpack.c.bf16 %v1934, %v1934
        %v1936 = vld [vmem:[%s10] sm:$0xf]
        %v1937 = vld [vmem:[%s10 + $0x4] sm:$0xf]
        %v1938 = vld [vmem:[%s10 + $0x8] sm:$0xf]
        %v1939 = vld [vmem:[%s10 + $0xc] sm:$0xf]
        %v1940 = vld [vmem:[%s11] sm:$0x1]
        %v1942 = vlaneseq
        %v1943 = vshrl.u32 %v1942, 7
        %v1944 = vsub.s32 0, %v1943
        %v1945 = vrot.slane %v1940, %v1944
        %v1951 = vunpack.c.l.b16 %v1936
        %v1952 = vunpack.c.l.b16 %v1937
        %v1953 = vunpack.c.l.b16 %v1938
        %v1954 = vunpack.c.l.b16 %v1939
        %v1955 = vpack.c.b16 %v1952, %v1951
        %v1956 = vpack.c.b16 %v1954, %v1953
        %v1960 = vsel %vm1064, %v1935, 0
        %1962 = vmatprep.subr.bf16.mxu0 0
        %1963 = vmatpush1.bf16.msra.mxu0 0
        %1964 = vmatprep.subr.bf16.mxu0 0
        %1965 = vmatpush1.bf16.msra.mxu0 0
        %1966 = vmatprep.subr.bf16.mxu0 0
        %1967 = vmatpush1.bf16.msra.mxu0 0
        %1968 = vmatprep.subr.bf16.mxu0 0
        %1969 = vmatpush1.bf16.msra.mxu0 0
        %1970 = vmatprep.subr.bf16.mxu0 0
        %1971 = vmatpush1.bf16.msra.mxu0 0
        %1972 = vmatprep.subr.bf16.mxu0 0
        %1973 = vmatpush1.bf16.msra.mxu0 0
        %1974 = vmatprep.subr.bf16.mxu0 0
        %1975 = vmatpush1.bf16.msra.mxu0 %v1956
        %1976 = vmatprep.subr.bf16.mxu0 0
        %1977 = vmatpush1.bf16.msra.mxu0 %v1955
        %1978 = vmatprep.subr.bf16.mxu0 0
        %1979 = vmatpush2.bf16.msra.mxu0 0
        %1980 = vmatprep.subr.bf16.mxu0 0
        %1981 = vmatpush2.bf16.msra.mxu0 0
        %1982 = vmatprep.subr.bf16.mxu0 0
        %1983 = vmatpush2.bf16.msra.mxu0 0
        %1984 = vmatprep.subr.bf16.mxu0 0
        %1985 = vmatpush2.bf16.msra.mxu0 0
        %1986 = vmatprep.subr.bf16.mxu0 0
        %1987 = vmatpush2.bf16.msra.mxu0 0
        %1988 = vmatprep.subr.bf16.mxu0 0
        %1989 = vmatpush2.bf16.msra.mxu0 0
        %1990 = vmatprep.subr.bf16.mxu0 0
        %1991 = vmatpush2.bf16.msra.mxu0 0
        %1992 = vmatprep.subr.bf16.mxu0 0
        %1993 = vmatpush2.bf16.msra.mxu0 0
        %1994 = vmatprep.mubr.bf16.mxu0 0
        %1995 = vmatmul.mubr.bf16.gmra.mxu0 %v1960
        %v1996 = vpop.f32.mrf.mxu0
        %v1997 = vadd.f32 %v1945, %v1996
        %v1998 = vpop.f32.mrf.mxu0
        %v1999 = vpop.f32.mrf.mxu0
        %v2000 = vpop.f32.mrf.mxu0
        %2001 = vdwg.mxu0
        %v2002 = vmax.f32 %v1997, 0.0
        %v2003 = vpack.c.bf16 %v2002, %v2002
        %v2004 = vld [vmem:[%s12] sm:$0xf]
        %v2005 = vld [vmem:[%s12 + $0x4] sm:$0xf]
        %v2006 = vld [vmem:[%s12 + $0x8] sm:$0xf]
        %v2007 = vld [vmem:[%s12 + $0xc] sm:$0xf]
        %v2008 = vld [vmem:[%s12 + $0x10] sm:$0xf]
        %v2009 = vld [vmem:[%s12 + $0x14] sm:$0xf]
        %v2010 = vld [vmem:[%s12 + $0x18] sm:$0xf]
        %v2011 = vld [vmem:[%s12 + $0x1c] sm:$0xf]
        %v2012 = vld [vmem:[%s13] sm:$0x1]
        %v2014 = vlaneseq
        %v2015 = vshrl.u32 %v2014, 7
        %v2016 = vsub.s32 0, %v2015
        %v2017 = vrot.slane %v2012, %v2016
        %v2027 = vunpack.c.l.b16 %v2004
        %v2028 = vunpack.c.l.b16 %v2005
        %v2029 = vunpack.c.l.b16 %v2006
        %v2030 = vunpack.c.l.b16 %v2007
        %v2031 = vunpack.c.l.b16 %v2008
        %v2032 = vunpack.c.l.b16 %v2009
        %v2033 = vunpack.c.l.b16 %v2010
        %v2034 = vunpack.c.l.b16 %v2011
        %v2035 = vpack.c.b16 %v2028, %v2027
        %v2036 = vpack.c.b16 %v2030, %v2029
        %v2037 = vpack.c.b16 %v2032, %v2031
        %v2038 = vpack.c.b16 %v2034, %v2033
        %vm2043 = vcmask 523264
        %v2045 = vsel %vm2043, %v2003, 0
        %2047 = vmatprep.subr.bf16.mxu0 0
        %2048 = vmatpush1.bf16.msra.mxu0 0
        %2049 = vmatprep.subr.bf16.mxu0 0
        %2050 = vmatpush1.bf16.msra.mxu0 0
        %2051 = vmatprep.subr.bf16.mxu0 0
        %2052 = vmatpush1.bf16.msra.mxu0 0
        %2053 = vmatprep.subr.bf16.mxu0 0
        %2054 = vmatpush1.bf16.msra.mxu0 0
        %2055 = vmatprep.subr.bf16.mxu0 0
        %2056 = vmatpush1.bf16.msra.mxu0 %v2038
        %2057 = vmatprep.subr.bf16.mxu0 0
        %2058 = vmatpush1.bf16.msra.mxu0 %v2037
        %2059 = vmatprep.subr.bf16.mxu0 0
        %2060 = vmatpush1.bf16.msra.mxu0 %v2036
        %2061 = vmatprep.subr.bf16.mxu0 0
        %2062 = vmatpush1.bf16.msra.mxu0 %v2035
        %2063 = vmatprep.subr.bf16.mxu0 0
        %2064 = vmatpush2.bf16.msra.mxu0 0
        %2065 = vmatprep.subr.bf16.mxu0 0
        %2066 = vmatpush2.bf16.msra.mxu0 0
        %2067 = vmatprep.subr.bf16.mxu0 0
        %2068 = vmatpush2.bf16.msra.mxu0 0
        %2069 = vmatprep.subr.bf16.mxu0 0
        %2070 = vmatpush2.bf16.msra.mxu0 0
        %2071 = vmatprep.subr.bf16.mxu0 0
        %2072 = vmatpush2.bf16.msra.mxu0 0
        %2073 = vmatprep.subr.bf16.mxu0 0
        %2074 = vmatpush2.bf16.msra.mxu0 0
        %2075 = vmatprep.subr.bf16.mxu0 0
        %2076 = vmatpush2.bf16.msra.mxu0 0
        %2077 = vmatprep.subr.bf16.mxu0 0
        %2078 = vmatpush2.bf16.msra.mxu0 0
        %2079 = vmatprep.mubr.bf16.mxu0 0
        %2080 = vmatmul.mubr.bf16.gmra.mxu0 %v2045
        %v2081 = vpop.f32.mrf.mxu0
        %v2082 = vadd.f32 %v2017, %v2081
        %v2083 = vpop.f32.mrf.mxu0
        %v2084 = vpop.f32.mrf.mxu0
        %v2085 = vpop.f32.mrf.mxu0
        %2086 = vdwg.mxu0
        %v2087 = vadd.f32 %v1934, %v2082
        %v2088 = vld [vmem:[%s14] sm:$0x1]
        %v2089 = vld [vmem:[%s15] sm:$0x1]
        %v2090 = vsel %vm1064, %v2087, 0.0
        %2091 = vadd.xlane.f32.xlu0 %v2090
        %v2092 = vpop.xlane.xlu0 %2091
        %v2093 = vmul.f32 %v2092, %v1910
        %v2094 = vsub.f32 %v2087, %v2093
        %v2095 = vmul.f32 %v2094, %v2094
        %v2096 = vsel %vm1064, %v2095, 0.0
        %2097 = vadd.xlane.f32.xlu0 %v2096
        %v2098 = vpop.xlane.xlu0 %2097
        %v2099 = vmul.f32 %v2098, %v1910
        %v2100 = vadd.f32 %v2099, 1e-06
        %v2101 = vrsqrt.pop %v2100
        %v2102 = vmul.f32 %v2094, %v2101
        %v2104 = vlaneseq
        %v2105 = vshrl.u32 %v2104, 7
        %v2106 = vsub.s32 0, %v2105
        %v2107 = vrot.slane %v2088, %v2106
        %v2109 = vmul.f32 %v2102, %v2107
        %v2111 = vlaneseq
        %v2112 = vshrl.u32 %v2111, 7
        %v2113 = vsub.s32 0, %v2112
        %v2114 = vrot.slane %v2089, %v2113
        %v2116 = vadd.f32 %v2109, %v2114
        %2117 = vst.msk [vmem:[%s639] sm:$0xff] %vm1064, %v2116
        %s2118 = sand.u32 %s404, 1
        %s2119 = scalar_lea.sflag [#allocation6], %s2118
        %s2120 = sand.u32 %s404, 1
        %s2121 = smul.addr %s2120, 8
        %s2122 = scalar_lea.vmem [#allocation16], %s2121
        // Predicated region
        $region117: #{tpu_custom_call.1} parent=83 // pred_check
          %p2123 = pneg %p414
        $region118: #{tpu_custom_call.1} parent=83 // pred_check_branch
          %2125 = sbr.rel (%p2123) target = $region120
        $region119: #{tpu_custom_call.1} parent=83 // pred_region
          %s2127 = ssub.s32 128, 128
          %2128 = vsyncadd %s2119, %s2127
          %s2129 = sadd.s32 %s39, %s38
          %s2130 = smul.addr %s2129, 128
          %s2131 = scalar_lea.hbm %s16, %s2130
          %s2133 = sshll.u32 %s2122, 4
          %s2134 = int_to_ptr.vmem [resolvable:$true] %s2133
          %2136 = dma.vmem_to_hbm [thread:$0]  %s2134, 128, %s2131, %s2119
        $region120: #{tpu_custom_call.1} parent=83 // pred_fallthru
          _
      $region84: #{tpu_custom_call.1} parent=5 // pred_fallthru
        _
      %p2137 = scmp.le.s32.totalorder 2, %s29
      // Predicated region
      $region121: #{tpu_custom_call.1} parent=5 // pred_check
        %p2138 = pneg %p2137
      $region122: #{tpu_custom_call.1} parent=5 // pred_check_branch
        %2140 = sbr.rel (%p2138) target = $region124
      $region123: #{tpu_custom_call.1} parent=5 // pred_region
        %s2141 = ssub.s32 %s29, 2
        // Predicated region
        $region125: #{tpu_custom_call.1} parent=123 // pred_check
          %p2142 = pneg %p420
        $region126: #{tpu_custom_call.1} parent=123 // pred_check_branch
          %2144 = sbr.rel (%p2142) target = $region128
        $region127: #{tpu_custom_call.1} parent=123 // pred_region
          %s2145 = sand.u32 %s405, 1
          %s2146 = scalar_lea.sflag [#allocation6], %s2145
          %s2147 = sand.u32 %s405, 1
          %s2148 = smul.addr %s2147, 8
          %s2149 = scalar_lea.vmem [#allocation16], %s2148
          %2150 = dma.done %s2146, 128
        $region128: #{tpu_custom_call.1} parent=123 // pred_fallthru
          _
      $region124: #{tpu_custom_call.1} parent=5 // pred_fallthru
        _
    $region6: #{tpu_custom_call.1} parent=1 // loop_footer
      %s33 = sadd.s32 1, %s29
    $region7: #{tpu_custom_call.1} parent=1 // loop_footer_branch
      %28 = sbr.rel target = $region3
    $region8: #{tpu_custom_call.1} parent=1 // loop_exit
      _
    %2151 = vsyncpa [#allocation5], 1
    %s2152 = scalar_lea.sflag [#allocation5], 1
    %2153 = vsyncpa %s2152, 1
    %2154 = vsyncpa [#allocation8], 1
    %2155 = vsyncpa [#allocation11], 1
    %2156 = vsyncpa [#allocation14], 1
    %2157 = vsyncpa [#allocation6], 1
    %s2158 = scalar_lea.sflag [#allocation6], 1
    %2159 = vsyncpa %s2158, 1

// kernel: tpu_custom_call.1
$region0: #{tpu_custom_call.1}
  #allocation0 [shape = 'u32[]', space=smem, size = 0x4, offset = 0x4, fixed_abs, tag = 'smem constant byte address 0x4 - core index']
  #allocation1 [shape = 'u32[144,128]{1,0:T(1,128)}', space=vmem, size = 0x12000, scoped, tag = 'internal scratch']
  #allocation2 [shape = 'bf16[4,8,8]{2,1,0:T(8,128)(2,1)}', space=vmem, size = 0x2000, scoped, tag = 'scratch operand']
  #allocation3 [shape = 'bf16[4,8,8]{2,1,0:T(8,128)(2,1)}', space=vmem, size = 0x2000, scoped, tag = 'scratch operand']
  %s0 = inlined_call_operand.vmem [shape: f32[2,8,32], index: 0, kind: input, shape index: {}]
  %s1 = inlined_call_operand.vmem [shape: f32[2,8,8], index: 1, kind: input, shape index: {}]
  %s2 = inlined_call_operand.vmem [shape: bf16[32,32], index: 2, kind: input, shape index: {}]
  %s3 = inlined_call_operand.hbm [shape: f32[1,32], index: 3, kind: input, shape index: {}]
  %s4 = inlined_call_operand.hbm [shape: bf16[32,64], index: 4, kind: input, shape index: {}]
  %s5 = inlined_call_operand.hbm [shape: f32[1,64], index: 5, kind: input, shape index: {}]
  %s6 = inlined_call_operand.hbm [shape: bf16[32,32], index: 6, kind: input, shape index: {}]
  %s7 = inlined_call_operand.hbm [shape: f32[1,32], index: 7, kind: input, shape index: {}]
  %s8 = inlined_call_operand.hbm [shape: f32[1,32], index: 8, kind: input, shape index: {}]
  %s9 = inlined_call_operand.hbm [shape: f32[1,32], index: 9, kind: input, shape index: {}]
  %s10 = inlined_call_operand.vmem [shape: bf16[32,64], index: 10, kind: input, shape index: {}]
  %s11 = inlined_call_operand.vmem [shape: f32[1,64], index: 11, kind: input, shape index: {}]
  %s12 = inlined_call_operand.vmem [shape: bf16[64,32], index: 12, kind: input, shape index: {}]
  %s13 = inlined_call_operand.vmem [shape: f32[1,32], index: 13, kind: input, shape index: {}]
  %s14 = inlined_call_operand.vmem [shape: f32[1,32], index: 14, kind: input, shape index: {}]
  %s15 = inlined_call_operand.vmem [shape: f32[1,32], index: 15, kind: input, shape index: {}]
  %s16 = inlined_call_operand.hbm [shape: f32[2,8,32], index: 16, kind: output, shape index: {}]
  %s17 = sld [smem:[#allocation0]]
  $region129: #{tpu_custom_call.1} parent=0
    _
  %s19 = ssub.s32 1, %s17
  %s20 = scalar_select 0, %s19, %s17
  $region1: #{tpu_custom_call.1} parent=0
    #allocation4 [shape = 'u8[512]{0}', space=vmem, size = 0x400, scoped, tag = 'input window, operand 3, single buffered']
    #allocation5 [shape = 's32[2]{0}', space=sflag, size = 0x8, scoped, tag = 'scoped memory for tpu_custom_call.1']
    #allocation6 [shape = 's32[2]{0}', space=sflag, size = 0x8, scoped, tag = 'scoped memory for tpu_custom_call.1']
    #allocation7 [shape = 'u8[8192]{0}', space=vmem, size = 0x2000, scoped, tag = 'input window, operand 4, single buffered']
    #allocation8 [shape = 's32[1]{0}', space=sflag, size = 0x4, scoped, tag = 'scoped memory for tpu_custom_call.1']
    #allocation9 [shape = 'u8[512]{0}', space=vmem, size = 0x400, scoped, tag = 'input window, operand 5, single buffered']
    #allocation10 [shape = 'u8[8192]{0}', space=vmem, size = 0x2000, scoped, tag = 'input window, operand 6, single buffered']
    #allocation11 [shape = 's32[1]{0}', space=sflag, size = 0x4, scoped, tag = 'scoped memory for tpu_custom_call.1']
    #allocation12 [shape = 'u8[512]{0}', space=vmem, size = 0x400, scoped, tag = 'input window, operand 7, single buffered']
    #allocation13 [shape = 'u8[512]{0}', space=vmem, size = 0x400, scoped, tag = 'input window, operand 8, single buffered']
    #allocation14 [shape = 's32[1]{0}', space=sflag, size = 0x4, scoped, tag = 'scoped memory for tpu_custom_call.1']
    #allocation15 [shape = 'u8[512]{0}', space=vmem, size = 0x400, scoped, tag = 'input window, operand 9, single buffered']
    #allocation16 [shape = 'u8[8192]{0}', space=vmem, size = 0x2000, scoped, tag = 'output window, operand 0']
    %21 = vsyncpa [#allocation5], 0
    %22 = vsyncpa [#allocation8], 0
    %23 = vsyncpa [#allocation11], 0
    %24 = vsyncpa [#allocation14], 0
    %25 = vsyncpa [#allocation6], 0
    %s26 = scalar_lea.sflag [#allocation6], 1
    %27 = vsyncpa %s26, 0
    loop: start=0, step=1, limit=4
    $region2: #{tpu_custom_call.1} parent=1 // loop_pre_header
      _
    $region3: #{tpu_custom_call.1} parent=1 // loop_header
      %s29 = sphi 0, %s33
      %p30 = scmp.ge.s32.totalorder %s29, 4
      %s36 = sphi 0, %s48
      %s37 = sphi 0, %s44
      %s38 = sphi 0, %s36
      %s39 = sphi 0, %s37
      %s40 = sphi 0, %s38
      %s41 = sphi 0, %s39
      %s51 = sphi 0, %s53
      %s54 = sphi 0, %s51
      %s55 = sphi 0, %s54
      %s71 = sphi 0, %s55
      %s79 = sphi 0, %s81
      %s82 = sphi 0, %s79
      %s83 = sphi 0, %s82
      %s99 = sphi 0, %s83
      %s103 = sphi 0, %s103
      %s105 = sphi 0, %s103
      %s106 = sphi 0, %s105
      %s120 = sphi 0, %s106
      %s124 = sphi 0, %s124
      %s126 = sphi 0, %s124
      %s127 = sphi 0, %s126
      %s141 = sphi 0, %s127
      %s145 = sphi 0, %s145
      %s147 = sphi 0, %s145
      %s148 = sphi 0, %s147
      %s162 = sphi 0, %s148
      %s166 = sphi 0, %s166
      %s168 = sphi 0, %s166
      %s169 = sphi 0, %s168
      %s183 = sphi 0, %s169
      %s187 = sphi 0, %s187
      %s189 = sphi 0, %s187
      %s190 = sphi 0, %s189
      %s204 = sphi 0, %s190
      %s208 = sphi 0, %s208
      %s210 = sphi 0, %s208
      %s211 = sphi 0, %s210
      %s225 = sphi 0, %s211
      %s229 = sphi 0, %s229
      %s231 = sphi 0, %s229
      %s232 = sphi 0, %s231
      %s246 = sphi 0, %s232
      %s250 = sphi 0, %s250
      %s252 = sphi 0, %s250
      %s253 = sphi 0, %s252
      %s267 = sphi 0, %s253
      %s271 = sphi 0, %s271
      %s273 = sphi 0, %s271
      %s274 = sphi 0, %s273
      %s288 = sphi 0, %s274
      %s292 = sphi 0, %s292
      %s294 = sphi 0, %s292
      %s295 = sphi 0, %s294
      %s309 = sphi 0, %s295
      %s313 = sphi 0, %s313
      %s315 = sphi 0, %s313
      %s316 = sphi 0, %s315
      %s330 = sphi 0, %s316
      %s334 = sphi 0, %s334
      %s336 = sphi 0, %s334
      %s337 = sphi 0, %s336
      %s351 = sphi 0, %s337
      %s355 = sphi 0, %s355
      %s357 = sphi 0, %s355
      %s358 = sphi 0, %s357
      %s372 = sphi 0, %s358
      %s376 = sphi 0, %s376
      %s378 = sphi 0, %s376
      %s379 = sphi 0, %s378
      %s393 = sphi 0, %s379
      %s401 = sphi 0, %s403
      %s404 = sphi 0, %s401
      %s405 = sphi 0, %s404
      %s421 = sphi 0, %s405
    $region4: #{tpu_custom_call.1} parent=1 // loop_header_branch
      %32 = sbr.rel (%p30) target = $region8
    $region5: #{tpu_custom_call.1} parent=1 // loop_body
      %s34 = ssub.s32 %s29, 1
      %s35 = ssub.s32 %s29, 2
      %s42 = sadd.s32 1, %s37
      %p43 = scmp.ge.s32.totalorder %s42, 1
      %s44 = scalar_select %p43, 0, %s42
      %s45 = sadd.s32 1, %s36
      %s46 = scalar_select %p43, %s45, %s36
      %p47 = scmp.ge.s32.totalorder %s46, 2
      %s48 = scalar_select %p47, 0, %s46
      %s49 = ssub.s32 %s36, %s48
      %p50 = scmp.eq.s32.totalorder %s49, 0
      %s52 = sadd.s32 %s51, 1
      %s53 = scalar_select %p50, %s51, %s52
      %p56 = pneg %p50
      %p57 = scmp.eq.s32.totalorder %s29, 1
      %p58 = por %p56, %p57
      %p59 = scmp.ne.s32.totalorder %s51, %s54
      %p60 = scmp.eq.s32.totalorder %s29, 0
      %p61 = por %p59, %p60
      %p62 = scmp.ne.s32.totalorder %s51, %s54
      %p63 = scmp.eq.s32.totalorder %s34, 1
      %p64 = por %p62, %p63
      %p65 = scmp.ne.s32.totalorder %s54, %s55
      %p66 = scmp.eq.s32.totalorder %s34, 0
      %p67 = por %p65, %p66
      %p68 = scmp.ne.s32.totalorder %s54, %s55
      %p69 = scmp.eq.s32.totalorder %s35, 1
      %p70 = por %p68, %p69
      %p72 = scmp.ne.s32.totalorder %s55, %s71
      %p73 = scmp.eq.s32.totalorder %s35, 0
      %p74 = por %p72, %p73
      %s75 = ssub.s32 %s36, %s48
      %s76 = ssub.s32 %s37, %s44
      %s77 = sor.u32 %s75, %s76
      %p78 = scmp.eq.s32.totalorder %s77, 0
      %s80 = sadd.s32 %s79, 1
      %s81 = scalar_select %p78, %s79, %s80
      %p84 = pneg %p78
      %p85 = scmp.eq.s32.totalorder %s29, 1
      %p86 = por %p84, %p85
      %p87 = scmp.ne.s32.totalorder %s79, %s82
      %p88 = scmp.eq.s32.totalorder %s29, 0
      %p89 = por %p87, %p88
      %p90 = scmp.ne.s32.totalorder %s79, %s82
      %p91 = scmp.eq.s32.totalorder %s34, 1
      %p92 = por %p90, %p91
      %p93 = scmp.ne.s32.totalorder %s82, %s83
      %p94 = scmp.eq.s32.totalorder %s34, 0
      %p95 = por %p93, %p94
      %p96 = scmp.ne.s32.totalorder %s82, %s83
      %p97 = scmp.eq.s32.totalorder %s35, 1
      %p98 = por %p96, %p97
      %p100 = scmp.ne.s32.totalorder %s83, %s99
      %p101 = scmp.eq.s32.totalorder %s35, 0
      %p102 = por %p100, %p101
      %s104 = sadd.s32 %s103, 1
      %p107 = scmp.eq.s32.totalorder %s29, 1
      %p108 = scmp.ne.s32.totalorder %s103, %s105
      %p109 = scmp.eq.s32.totalorder %s29, 0
      %p110 = por %p108, %p109
      %p111 = scmp.ne.s32.totalorder %s103, %s105
      %p112 = scmp.eq.s32.totalorder %s34, 1
      %p113 = por %p111, %p112
      %p114 = scmp.ne.s32.totalorder %s105, %s106
      %p115 = scmp.eq.s32.totalorder %s34, 0
      %p116 = por %p114, %p115
      %p117 = scmp.ne.s32.totalorder %s105, %s106
      %p118 = scmp.eq.s32.totalorder %s35, 1
      %p119 = por %p117, %p118
      %p121 = scmp.ne.s32.totalorder %s106, %s120
      %p122 = scmp.eq.s32.totalorder %s35, 0
      %p123 = por %p121, %p122
      %s125 = sadd.s32 %s124, 1
      %p128 = scmp.eq.s32.totalorder %s29, 1
      %p129 = scmp.ne.s32.totalorder %s124, %s126
      %p130 = scmp.eq.s32.totalorder %s29, 0
      %p131 = por %p129, %p130
      %p132 = scmp.ne.s32.totalorder %s124, %s126
      %p133 = scmp.eq.s32.totalorder %s34, 1
      %p134 = por %p132, %p133
      %p135 = scmp.ne.s32.totalorder %s126, %s127
      %p136 = scmp.eq.s32.totalorder %s34, 0
      %p137 = por %p135, %p136
      %p138 = scmp.ne.s32.totalorder %s126, %s127
      %p139 = scmp.eq.s32.totalorder %s35, 1
      %p140 = por %p138, %p139
      %p142 = scmp.ne.s32.totalorder %s127, %s141
      %p143 = scmp.eq.s32.totalorder %s35, 0
      %p144 = por %p142, %p143
      %s146 = sadd.s32 %s145, 1
      %p149 = scmp.eq.s32.totalorder %s29, 1
      %p150 = scmp.ne.s32.totalorder %s145, %s147
      %p151 = scmp.eq.s32.totalorder %s29, 0
      %p152 = por %p150, %p151
      %p153 = scmp.ne.s32.totalorder %s145, %s147
      %p154 = scmp.eq.s32.totalorder %s34, 1
      %p155 = por %p153, %p154
      %p156 = scmp.ne.s32.totalorder %s147, %s148
      %p157 = scmp.eq.s32.totalorder %s34, 0
      %p158 = por %p156, %p157
      %p159 = scmp.ne.s32.totalorder %s147, %s148
      %p160 = scmp.eq.s32.totalorder %s35, 1
      %p161 = por %p159, %p160
      %p163 = scmp.ne.s32.totalorder %s148, %s162
      %p164 = scmp.eq.s32.totalorder %s35, 0
      %p165 = por %p163, %p164
      %s167 = sadd.s32 %s166, 1
      %p170 = scmp.eq.s32.totalorder %s29, 1
      %p171 = scmp.ne.s32.totalorder %s166, %s168
      %p172 = scmp.eq.s32.totalorder %s29, 0
      %p173 = por %p171, %p172
      %p174 = scmp.ne.s32.totalorder %s166, %s168
      %p175 = scmp.eq.s32.totalorder %s34, 1
      %p176 = por %p174, %p175
      %p177 = scmp.ne.s32.totalorder %s168, %s169
      %p178 = scmp.eq.s32.totalorder %s34, 0
      %p179 = por %p177, %p178
      %p180 = scmp.ne.s32.totalorder %s168, %s169
      %p181 = scmp.eq.s32.totalorder %s35, 1
      %p182 = por %p180, %p181
      %p184 = scmp.ne.s32.totalorder %s169, %s183
      %p185 = scmp.eq.s32.totalorder %s35, 0
      %p186 = por %p184, %p185
      %s188 = sadd.s32 %s187, 1
      %p191 = scmp.eq.s32.totalorder %s29, 1
      %p192 = scmp.ne.s32.totalorder %s187, %s189
      %p193 = scmp.eq.s32.totalorder %s29, 0
      %p194 = por %p192, %p193
      %p195 = scmp.ne.s32.totalorder %s187, %s189
      %p196 = scmp.eq.s32.totalorder %s34, 1
      %p197 = por %p195, %p196
      %p198 = scmp.ne.s32.totalorder %s189, %s190
      %p199 = scmp.eq.s32.totalorder %s34, 0
      %p200 = por %p198, %p199
      %p201 = scmp.ne.s32.totalorder %s189, %s190
      %p202 = scmp.eq.s32.totalorder %s35, 1
      %p203 = por %p201, %p202
      %p205 = scmp.ne.s32.totalorder %s190, %s204
      %p206 = scmp.eq.s32.totalorder %s35, 0
      %p207 = por %p205, %p206
      %s209 = sadd.s32 %s208, 1
      %p212 = scmp.eq.s32.totalorder %s29, 1
      %p213 = scmp.ne.s32.totalorder %s208, %s210
      %p214 = scmp.eq.s32.totalorder %s29, 0
      %p215 = por %p213, %p214
      %p216 = scmp.ne.s32.totalorder %s208, %s210
      %p217 = scmp.eq.s32.totalorder %s34, 1
      %p218 = por %p216, %p217
      %p219 = scmp.ne.s32.totalorder %s210, %s211
      %p220 = scmp.eq.s32.totalorder %s34, 0
      %p221 = por %p219, %p220
      %p222 = scmp.ne.s32.totalorder %s210, %s211
      %p223 = scmp.eq.s32.totalorder %s35, 1
      %p224 = por %p222, %p223
      %p226 = scmp.ne.s32.totalorder %s211, %s225
      %p227 = scmp.eq.s32.totalorder %s35, 0
      %p228 = por %p226, %p227
      %s230 = sadd.s32 %s229, 1
      %p233 = scmp.eq.s32.totalorder %s29, 1
      %p234 = scmp.ne.s32.totalorder %s229, %s231
      %p235 = scmp.eq.s32.totalorder %s29, 0
      %p236 = por %p234, %p235
      %p237 = scmp.ne.s32.totalorder %s229, %s231
      %p238 = scmp.eq.s32.totalorder %s34, 1
      %p239 = por %p237, %p238
      %p240 = scmp.ne.s32.totalorder %s231, %s232
      %p241 = scmp.eq.s32.totalorder %s34, 0
      %p242 = por %p240, %p241
      %p243 = scmp.ne.s32.totalorder %s231, %s232
      %p244 = scmp.eq.s32.totalorder %s35, 1
      %p245 = por %p243, %p244
      %p247 = scmp.ne.s32.totalorder %s232, %s246
      %p248 = scmp.eq.s32.totalorder %s35, 0
      %p249 = por %p247, %p248
      %s251 = sadd.s32 %s250, 1
      %p254 = scmp.eq.s32.totalorder %s29, 1
      %p255 = scmp.ne.s32.totalorder %s250, %s252
      %p256 = scmp.eq.s32.totalorder %s29, 0
      %p257 = por %p255, %p256
      %p258 = scmp.ne.s32.totalorder %s250, %s252
      %p259 = scmp.eq.s32.totalorder %s34, 1
      %p260 = por %p258, %p259
      %p261 = scmp.ne.s32.totalorder %s252, %s253
      %p262 = scmp.eq.s32.totalorder %s34, 0
      %p263 = por %p261, %p262
      %p264 = scmp.ne.s32.totalorder %s252, %s253
      %p265 = scmp.eq.s32.totalorder %s35, 1
      %p266 = por %p264, %p265
      %p268 = scmp.ne.s32.totalorder %s253, %s267
      %p269 = scmp.eq.s32.totalorder %s35, 0
      %p270 = por %p268, %p269
      %s272 = sadd.s32 %s271, 1
      %p275 = scmp.eq.s32.totalorder %s29, 1
      %p276 = scmp.ne.s32.totalorder %s271, %s273
      %p277 = scmp.eq.s32.totalorder %s29, 0
      %p278 = por %p276, %p277
      %p279 = scmp.ne.s32.totalorder %s271, %s273
      %p280 = scmp.eq.s32.totalorder %s34, 1
      %p281 = por %p279, %p280
      %p282 = scmp.ne.s32.totalorder %s273, %s274
      %p283 = scmp.eq.s32.totalorder %s34, 0
      %p284 = por %p282, %p283
      %p285 = scmp.ne.s32.totalorder %s273, %s274
      %p286 = scmp.eq.s32.totalorder %s35, 1
      %p287 = por %p285, %p286
      %p289 = scmp.ne.s32.totalorder %s274, %s288
      %p290 = scmp.eq.s32.totalorder %s35, 0
      %p291 = por %p289, %p290
      %s293 = sadd.s32 %s292, 1
      %p296 = scmp.eq.s32.totalorder %s29, 1
      %p297 = scmp.ne.s32.totalorder %s292, %s294
      %p298 = scmp.eq.s32.totalorder %s29, 0
      %p299 = por %p297, %p298
      %p300 = scmp.ne.s32.totalorder %s292, %s294
      %p301 = scmp.eq.s32.totalorder %s34, 1
      %p302 = por %p300, %p301
      %p303 = scmp.ne.s32.totalorder %s294, %s295
      %p304 = scmp.eq.s32.totalorder %s34, 0
      %p305 = por %p303, %p304
      %p306 = scmp.ne.s32.totalorder %s294, %s295
      %p307 = scmp.eq.s32.totalorder %s35, 1
      %p308 = por %p306, %p307
      %p310 = scmp.ne.s32.totalorder %s295, %s309
      %p311 = scmp.eq.s32.totalorder %s35, 0
      %p312 = por %p310, %p311
      %s314 = sadd.s32 %s313, 1
      %p317 = scmp.eq.s32.totalorder %s29, 1
      %p318 = scmp.ne.s32.totalorder %s313, %s315
      %p319 = scmp.eq.s32.totalorder %s29, 0
      %p320 = por %p318, %p319
      %p321 = scmp.ne.s32.totalorder %s313, %s315
      %p322 = scmp.eq.s32.totalorder %s34, 1
      %p323 = por %p321, %p322
      %p324 = scmp.ne.s32.totalorder %s315, %s316
      %p325 = scmp.eq.s32.totalorder %s34, 0
      %p326 = por %p324, %p325
      %p327 = scmp.ne.s32.totalorder %s315, %s316
      %p328 = scmp.eq.s32.totalorder %s35, 1
      %p329 = por %p327, %p328
      %p331 = scmp.ne.s32.totalorder %s316, %s330
      %p332 = scmp.eq.s32.totalorder %s35, 0
      %p333 = por %p331, %p332
      %s335 = sadd.s32 %s334, 1
      %p338 = scmp.eq.s32.totalorder %s29, 1
      %p339 = scmp.ne.s32.totalorder %s334, %s336
      %p340 = scmp.eq.s32.totalorder %s29, 0
      %p341 = por %p339, %p340
      %p342 = scmp.ne.s32.totalorder %s334, %s336
      %p343 = scmp.eq.s32.totalorder %s34, 1
      %p344 = por %p342, %p343
      %p345 = scmp.ne.s32.totalorder %s336, %s337
      %p346 = scmp.eq.s32.totalorder %s34, 0
      %p347 = por %p345, %p346
      %p348 = scmp.ne.s32.totalorder %s336, %s337
      %p349 = scmp.eq.s32.totalorder %s35, 1
      %p350 = por %p348, %p349
      %p352 = scmp.ne.s32.totalorder %s337, %s351
      %p353 = scmp.eq.s32.totalorder %s35, 0
      %p354 = por %p352, %p353
      %s356 = sadd.s32 %s355, 1
      %p359 = scmp.eq.s32.totalorder %s29, 1
      %p360 = scmp.ne.s32.totalorder %s355, %s357
      %p361 = scmp.eq.s32.totalorder %s29, 0
      %p362 = por %p360, %p361
      %p363 = scmp.ne.s32.totalorder %s355, %s357
      %p364 = scmp.eq.s32.totalorder %s34, 1
      %p365 = por %p363, %p364
      %p366 = scmp.ne.s32.totalorder %s357, %s358
      %p367 = scmp.eq.s32.totalorder %s34, 0
      %p368 = por %p366, %p367
      %p369 = scmp.ne.s32.totalorder %s357, %s358
      %p370 = scmp.eq.s32.totalorder %s35, 1
      %p371 = por %p369, %p370
      %p373 = scmp.ne.s32.totalorder %s358, %s372
      %p374 = scmp.eq.s32.totalorder %s35, 0
      %p375 = por %p373, %p374
      %s377 = sadd.s32 %s376, 1
      %p380 = scmp.eq.s32.totalorder %s29, 1
      %p381 = scmp.ne.s32.totalorder %s376, %s378
      %p382 = scmp.eq.s32.totalorder %s29, 0
      %p383 = por %p381, %p382
      %p384 = scmp.ne.s32.totalorder %s376, %s378
      %p385 = scmp.eq.s32.totalorder %s34, 1
      %p386 = por %p384, %p385
      %p387 = scmp.ne.s32.totalorder %s378, %s379
      %p388 = scmp.eq.s32.totalorder %s34, 0
      %p389 = por %p387, %p388
      %p390 = scmp.ne.s32.totalorder %s378, %s379
      %p391 = scmp.eq.s32.totalorder %s35, 1
      %p392 = por %p390, %p391
      %p394 = scmp.ne.s32.totalorder %s379, %s393
      %p395 = scmp.eq.s32.totalorder %s35, 0
      %p396 = por %p394, %p395
      %s397 = ssub.s32 %s36, %s48
      %s398 = ssub.s32 %s37, %s44
      %s399 = sor.u32 %s397, %s398
      %p400 = scmp.eq.s32.totalorder %s399, 0
      %s402 = sadd.s32 %s401, 1
      %s403 = scalar_select %p400, %s401, %s402
      %p406 = pneg %p400
      %p407 = scmp.eq.s32.totalorder %s29, 1
      %p408 = por %p406, %p407
      %p409 = scmp.ne.s32.totalorder %s401, %s404
      %p410 = scmp.eq.s32.totalorder %s29, 0
      %p411 = por %p409, %p410
      %p412 = scmp.ne.s32.totalorder %s401, %s404
      %p413 = scmp.eq.s32.totalorder %s34, 1
      %p414 = por %p412, %p413
      %p415 = scmp.ne.s32.totalorder %s404, %s405
      %p416 = scmp.eq.s32.totalorder %s34, 0
      %p417 = por %p415, %p416
      %p418 = scmp.ne.s32.totalorder %s404, %s405
      %p419 = scmp.eq.s32.totalorder %s35, 1
      %p420 = por %p418, %p419
      %p422 = scmp.ne.s32.totalorder %s405, %s421
      %p423 = scmp.eq.s32.totalorder %s35, 0
      %p424 = por %p422, %p423
      %p425 = scmp.le.s32.totalorder 1, %s29
      %p426 = scmp.lt.s32.totalorder %s29, 3
      %p427 = pnand %p425, %p426
      %p428 = pneg %p427
      // Predicated region
      $region9: #{tpu_custom_call.1} parent=5 // pred_check
        _
      $region10: #{tpu_custom_call.1} parent=5 // pred_check_branch
        %430 = sbr.rel (%p427) target = $region12
      $region11: #{tpu_custom_call.1} parent=5 // pred_region
        %s431 = ssub.s32 %s29, 1
        // Predicated region
        $region13: #{tpu_custom_call.1} parent=11 // pred_check
          %p432 = pneg %p116
        $region14: #{tpu_custom_call.1} parent=11 // pred_check_branch
          %434 = sbr.rel (%p432) target = $region16
        $region15: #{tpu_custom_call.1} parent=11 // pred_region
          _
        $region16: #{tpu_custom_call.1} parent=11 // pred_fallthru
          _
        // Predicated region
        $region17: #{tpu_custom_call.1} parent=11 // pred_check
          %p435 = pneg %p137
        $region18: #{tpu_custom_call.1} parent=11 // pred_check_branch
          %437 = sbr.rel (%p435) target = $region20
        $region19: #{tpu_custom_call.1} parent=11 // pred_region
          %s439 = ssub.s32 16, 16
          %440 = vsyncadd [#allocation5], %s439
          %s442 = sshll.u32 [#allocation4], 4
          %s443 = int_to_ptr.vmem [resolvable:$true] %s442
          %445 = dma.hbm_to_vmem [thread:$0]  %s3, 16, %s443, [#allocation5]
        $region20: #{tpu_custom_call.1} parent=11 // pred_fallthru
          _
        // Predicated region
        $region21: #{tpu_custom_call.1} parent=11 // pred_check
          %p446 = pneg %p158
        $region22: #{tpu_custom_call.1} parent=11 // pred_check_branch
          %448 = sbr.rel (%p446) target = $region24
        $region23: #{tpu_custom_call.1} parent=11 // pred_region
          %s450 = ssub.s32 256, 256
          %451 = vsyncadd [#allocation8], %s450
          %s452 = sshll.u32 [#allocation7], 4
          %s453 = int_to_ptr.vmem [resolvable:$true] %s452
          %458 = dma.hbm_to_vmem [thread:$0]  %s4, 256, %s453, [#allocation8], 64, 64, 4
        $region24: #{tpu_custom_call.1} parent=11 // pred_fallthru
          _
        // Predicated region
        $region25: #{tpu_custom_call.1} parent=11 // pred_check
          %p459 = pneg %p179
        $region26: #{tpu_custom_call.1} parent=11 // pred_check_branch
          %461 = sbr.rel (%p459) target = $region28
        $region27: #{tpu_custom_call.1} parent=11 // pred_region
          %s463 = ssub.s32 16, 16
          %464 = vsyncadd [#allocation8], %s463
          %s466 = sshll.u32 [#allocation9], 4
          %s467 = int_to_ptr.vmem [resolvable:$true] %s466
          %469 = dma.hbm_to_vmem [thread:$0]  %s5, 16, %s467, [#allocation8]
        $region28: #{tpu_custom_call.1} parent=11 // pred_fallthru
          _
        // Predicated region
        $region29: #{tpu_custom_call.1} parent=11 // pred_check
          %p470 = pneg %p200
        $region30: #{tpu_custom_call.1} parent=11 // pred_check_branch
          %472 = sbr.rel (%p470) target = $region32
        $region31: #{tpu_custom_call.1} parent=11 // pred_region
          %s474 = ssub.s32 256, 256
          %475 = vsyncadd [#allocation11], %s474
          %s476 = sshll.u32 [#allocation10], 4
          %s477 = int_to_ptr.vmem [resolvable:$true] %s476
          %482 = dma.hbm_to_vmem [thread:$0]  %s6, 256, %s477, [#allocation11], 64, 64, 4
        $region32: #{tpu_custom_call.1} parent=11 // pred_fallthru
          _
        // Predicated region
        $region33: #{tpu_custom_call.1} parent=11 // pred_check
          %p483 = pneg %p221
        $region34: #{tpu_custom_call.1} parent=11 // pred_check_branch
          %485 = sbr.rel (%p483) target = $region36
        $region35: #{tpu_custom_call.1} parent=11 // pred_region
          %s487 = ssub.s32 16, 16
          %488 = vsyncadd [#allocation11], %s487
          %s490 = sshll.u32 [#allocation12], 4
          %s491 = int_to_ptr.vmem [resolvable:$true] %s490
          %493 = dma.hbm_to_vmem [thread:$0]  %s7, 16, %s491, [#allocation11]
        $region36: #{tpu_custom_call.1} parent=11 // pred_fallthru
          _
        // Predicated region
        $region37: #{tpu_custom_call.1} parent=11 // pred_check
          %p494 = pneg %p242
        $region38: #{tpu_custom_call.1} parent=11 // pred_check_branch
          %496 = sbr.rel (%p494) target = $region40
        $region39: #{tpu_custom_call.1} parent=11 // pred_region
          %s498 = ssub.s32 16, 16
          %499 = vsyncadd [#allocation14], %s498
          %s501 = sshll.u32 [#allocation13], 4
          %s502 = int_to_ptr.vmem [resolvable:$true] %s501
          %504 = dma.hbm_to_vmem [thread:$0]  %s8, 16, %s502, [#allocation14]
        $region40: #{tpu_custom_call.1} parent=11 // pred_fallthru
          _
        // Predicated region
        $region41: #{tpu_custom_call.1} parent=11 // pred_check
          %p505 = pneg %p263
        $region42: #{tpu_custom_call.1} parent=11 // pred_check_branch
          %507 = sbr.rel (%p505) target = $region44
        $region43: #{tpu_custom_call.1} parent=11 // pred_region
          %s509 = ssub.s32 16, 16
          %510 = vsyncadd [#allocation14], %s509
          %s512 = sshll.u32 [#allocation15], 4
          %s513 = int_to_ptr.vmem [resolvable:$true] %s512
          %515 = dma.hbm_to_vmem [thread:$0]  %s9, 16, %s513, [#allocation14]
        $region44: #{tpu_custom_call.1} parent=11 // pred_fallthru
          _
        // Predicated region
        $region45: #{tpu_custom_call.1} parent=11 // pred_check
          %p516 = pneg %p284
        $region46: #{tpu_custom_call.1} parent=11 // pred_check_branch
          %518 = sbr.rel (%p516) target = $region48
        $region47: #{tpu_custom_call.1} parent=11 // pred_region
          _
        $region48: #{tpu_custom_call.1} parent=11 // pred_fallthru
          _
        // Predicated region
        $region49: #{tpu_custom_call.1} parent=11 // pred_check
          %p519 = pneg %p305
        $region50: #{tpu_custom_call.1} parent=11 // pred_check_branch
          %521 = sbr.rel (%p519) target = $region52
        $region51: #{tpu_custom_call.1} parent=11 // pred_region
          _
        $region52: #{tpu_custom_call.1} parent=11 // pred_fallthru
          _
        // Predicated region
        $region53: #{tpu_custom_call.1} parent=11 // pred_check
          %p522 = pneg %p326
        $region54: #{tpu_custom_call.1} parent=11 // pred_check_branch
          %524 = sbr.rel (%p522) target = $region56
        $region55: #{tpu_custom_call.1} parent=11 // pred_region
          _
        $region56: #{tpu_custom_call.1} parent=11 // pred_fallthru
          _
        // Predicated region
        $region57: #{tpu_custom_call.1} parent=11 // pred_check
          %p525 = pneg %p347
        $region58: #{tpu_custom_call.1} parent=11 // pred_check_branch
          %527 = sbr.rel (%p525) target = $region60
        $region59: #{tpu_custom_call.1} parent=11 // pred_region
          _
        $region60: #{tpu_custom_call.1} parent=11 // pred_fallthru
          _
        // Predicated region
        $region61: #{tpu_custom_call.1} parent=11 // pred_check
          %p528 = pneg %p368
        $region62: #{tpu_custom_call.1} parent=11 // pred_check_branch
          %530 = sbr.rel (%p528) target = $region64
        $region63: #{tpu_custom_call.1} parent=11 // pred_region
          _
        $region64: #{tpu_custom_call.1} parent=11 // pred_fallthru
          _
        // Predicated region
        $region65: #{tpu_custom_call.1} parent=11 // pred_check
          %p531 = pneg %p389
        $region66: #{tpu_custom_call.1} parent=11 // pred_check_branch
          %533 = sbr.rel (%p531) target = $region68
        $region67: #{tpu_custom_call.1} parent=11 // pred_region
          _
        $region68: #{tpu_custom_call.1} parent=11 // pred_fallthru
          _
      $region12: #{tpu_custom_call.1} parent=5 // pred_fallthru
        _
      %p534 = scmp.lt.s32.totalorder %s29, 2
      // Predicated region
      $region69: #{tpu_custom_call.1} parent=5 // pred_check
        %p535 = pneg %p534
      $region70: #{tpu_custom_call.1} parent=5 // pred_check_branch
        %537 = sbr.rel (%p535) target = $region72
      $region71: #{tpu_custom_call.1} parent=5 // pred_region
        // Predicated region
        $region73: #{tpu_custom_call.1} parent=71 // pred_check
          %p538 = pneg %p61
        $region74: #{tpu_custom_call.1} parent=71 // pred_check_branch
          %540 = sbr.rel (%p538) target = $region76
        $region75: #{tpu_custom_call.1} parent=71 // pred_region
          %p541 = scmp.lt.s32.totalorder %s36, 1
          %s542 = scalar_select %p541, %s36, 1
          %s543 = smul.addr %s542, 8
          %s544 = scalar_lea.vmem %s0, %s543
        $region76: #{tpu_custom_call.1} parent=71 // pred_fallthru
          _
        // Predicated region
        $region77: #{tpu_custom_call.1} parent=71 // pred_check
          %p545 = pneg %p89
        $region78: #{tpu_custom_call.1} parent=71 // pred_check_branch
          %547 = sbr.rel (%p545) target = $region80
        $region79: #{tpu_custom_call.1} parent=71 // pred_region
          %p548 = scmp.lt.s32.totalorder %s36, 1
          %s549 = scalar_select %p548, %s36, 1
          %p550 = scmp.lt.s32.totalorder %s37, 0
          %s551 = scalar_select %p550, %s37, 0
          %s552 = sadd.s32 %s551, %s549
          %s553 = smul.addr %s552, 8
          %s554 = scalar_lea.vmem %s1, %s553
        $region80: #{tpu_custom_call.1} parent=71 // pred_fallthru
          _
      $region72: #{tpu_custom_call.1} parent=5 // pred_fallthru
        _
      %p555 = scmp.le.s32.totalorder 1, %s29
      %p556 = scmp.lt.s32.totalorder %s29, 3
      %p557 = pnand %p555, %p556
      %p558 = pneg %p557
      // Predicated region
      $region81: #{tpu_custom_call.1} parent=5 // pred_check
        _
      $region82: #{tpu_custom_call.1} parent=5 // pred_check_branch
        %560 = sbr.rel (%p557) target = $region84
      $region83: #{tpu_custom_call.1} parent=5 // pred_region
        %s561 = ssub.s32 %s29, 1
        // Predicated region
        $region85: #{tpu_custom_call.1} parent=83 // pred_check
          %p562 = pneg %p137
        $region86: #{tpu_custom_call.1} parent=83 // pred_check_branch
          %564 = sbr.rel (%p562) target = $region88
        $region87: #{tpu_custom_call.1} parent=83 // pred_region
          %565 = dma.done [#allocation5], 16
        $region88: #{tpu_custom_call.1} parent=83 // pred_fallthru
          _
        // Predicated region
        $region89: #{tpu_custom_call.1} parent=83 // pred_check
          %p566 = pneg %p158
        $region90: #{tpu_custom_call.1} parent=83 // pred_check_branch
          %568 = sbr.rel (%p566) target = $region92
        $region91: #{tpu_custom_call.1} parent=83 // pred_region
          %569 = dma.done [#allocation8], 256
        $region92: #{tpu_custom_call.1} parent=83 // pred_fallthru
          _
        // Predicated region
        $region93: #{tpu_custom_call.1} parent=83 // pred_check
          %p570 = pneg %p179
        $region94: #{tpu_custom_call.1} parent=83 // pred_check_branch
          %572 = sbr.rel (%p570) target = $region96
        $region95: #{tpu_custom_call.1} parent=83 // pred_region
          %573 = dma.done [#allocation8], 16
        $region96: #{tpu_custom_call.1} parent=83 // pred_fallthru
          _
        // Predicated region
        $region97: #{tpu_custom_call.1} parent=83 // pred_check
          %p574 = pneg %p200
        $region98: #{tpu_custom_call.1} parent=83 // pred_check_branch
          %576 = sbr.rel (%p574) target = $region100
        $region99: #{tpu_custom_call.1} parent=83 // pred_region
          %577 = dma.done [#allocation11], 256
        $region100: #{tpu_custom_call.1} parent=83 // pred_fallthru
          _
        // Predicated region
        $region101: #{tpu_custom_call.1} parent=83 // pred_check
          %p578 = pneg %p221
        $region102: #{tpu_custom_call.1} parent=83 // pred_check_branch
          %580 = sbr.rel (%p578) target = $region104
        $region103: #{tpu_custom_call.1} parent=83 // pred_region
          %581 = dma.done [#allocation11], 16
        $region104: #{tpu_custom_call.1} parent=83 // pred_fallthru
          _
        // Predicated region
        $region105: #{tpu_custom_call.1} parent=83 // pred_check
          %p582 = pneg %p242
        $region106: #{tpu_custom_call.1} parent=83 // pred_check_branch
          %584 = sbr.rel (%p582) target = $region108
        $region107: #{tpu_custom_call.1} parent=83 // pred_region
          %585 = dma.done [#allocation14], 16
        $region108: #{tpu_custom_call.1} parent=83 // pred_fallthru
          _
        // Predicated region
        $region109: #{tpu_custom_call.1} parent=83 // pred_check
          %p586 = pneg %p263
        $region110: #{tpu_custom_call.1} parent=83 // pred_check_branch
          %588 = sbr.rel (%p586) target = $region112
        $region111: #{tpu_custom_call.1} parent=83 // pred_region
          %589 = dma.done [#allocation14], 16
        $region112: #{tpu_custom_call.1} parent=83 // pred_fallthru
          _
        %p590 = scmp.lt.s32.totalorder %s38, 1
        %s591 = scalar_select %p590, %s38, 1
        %s592 = smul.addr %s591, 8
        %s593 = scalar_lea.vmem %s0, %s592
        %p594 = pneg %p67
        %p595 = pneg %p64
        %p596 = scmp.lt.s32.totalorder %s38, 1
        %s597 = scalar_select %p596, %s38, 1
        %p598 = scmp.lt.s32.totalorder %s39, 0
        %s599 = scalar_select %p598, %s39, 0
        %s600 = sadd.s32 %s599, %s597
        %s601 = smul.addr %s600, 8
        %s602 = scalar_lea.vmem %s1, %s601
        %p603 = pneg %p95
        %p604 = pneg %p92
        %p605 = pneg %p116
        %p606 = pneg %p113
        %p607 = pneg %p137
        %p608 = pneg %p134
        %p609 = pneg %p158
        %p610 = pneg %p155
        %p611 = pneg %p179
        %p612 = pneg %p176
        %p613 = pneg %p200
        %p614 = pneg %p197
        %p615 = pneg %p221
        %p616 = pneg %p218
        %p617 = pneg %p242
        %p618 = pneg %p239
        %p619 = pneg %p263
        %p620 = pneg %p260
        %p621 = pneg %p284
        %p622 = pneg %p281
        %p623 = pneg %p305
        %p624 = pneg %p302
        %p625 = pneg %p326
        %p626 = pneg %p323
        %p627 = pneg %p347
        %p628 = pneg %p344
        %p629 = pneg %p368
        %p630 = pneg %p365
        %p631 = pneg %p389
        %p632 = pneg %p386
        %p633 = pneg %p417
        %p634 = pneg %p414
        %s635 = sand.u32 %s404, 1
        %s636 = scalar_lea.sflag [#allocation6], %s635
        %s637 = sand.u32 %s404, 1
        %s638 = smul.addr %s637, 8
        %s639 = scalar_lea.vmem [#allocation16], %s638
        %p640 = scmp.lt.s32.totalorder %s38, 1
        %s641 = scalar_select %p640, %s38, 1
        %s642 = smul.addr %s641, 8
        %s643 = scalar_lea.vmem %s0, %s642
        %p644 = scmp.lt.s32.totalorder %s38, 1
        %s645 = scalar_select %p644, %s38, 1
        %p646 = scmp.lt.s32.totalorder %s39, 0
        %s647 = scalar_select %p646, %s39, 0
        %s648 = sadd.s32 %s647, %s645
        %s649 = smul.addr %s648, 8
        %s650 = scalar_lea.vmem %s1, %s649
        %p652 = scmp.eq.s32.totalorder %s39, 0
        // Predicated region
        $region113: #{tpu_custom_call.1} parent=83 // pred_check
          %p653 = pneg %p652
        $region114: #{tpu_custom_call.1} parent=83 // pred_check_branch
          %655 = sbr.rel (%p653) target = $region116
        $region115: #{tpu_custom_call.1} parent=83 // pred_region
          %v656 = vld [vmem:[%s643] sm:$0xff]
          %v657 = vpack.c.bf16 %v656, %v656
          %v658 = vld [vmem:[#allocation7] sm:$0xf]
          %v659 = vld [vmem:[#allocation7 + $0x4] sm:$0xf]
          %v660 = vld [vmem:[#allocation7 + $0x8] sm:$0xf]
          %v661 = vld [vmem:[#allocation7 + $0xc] sm:$0xf]
          %v662 = vld [vmem:[#allocation9] sm:$0x1]
          %v664 = vlaneseq
          %v665 = vshrl.u32 %v664, 7
          %v666 = vsub.s32 0, %v665
          %v667 = vrot.slane %v662, %v666
          %v673 = vunpack.c.l.b16 %v658
          %v674 = vunpack.c.l.b16 %v659
          %v675 = vunpack.c.l.b16 %v660
          %v676 = vunpack.c.l.b16 %v661
          %v677 = vpack.c.b16 %v674, %v673
          %v678 = vpack.c.b16 %v676, %v675
          %vm681 = vcmask 261120
          %v683 = vsel %vm681, %v657, 0
          %685 = vmatprep.subr.bf16.mxu0 0
          %686 = vmatpush1.bf16.msra.mxu0 0
          %687 = vmatprep.subr.bf16.mxu0 0
          %688 = vmatpush1.bf16.msra.mxu0 0
          %689 = vmatprep.subr.bf16.mxu0 0
          %690 = vmatpush1.bf16.msra.mxu0 0
          %691 = vmatprep.subr.bf16.mxu0 0
          %692 = vmatpush1.bf16.msra.mxu0 0
          %693 = vmatprep.subr.bf16.mxu0 0
          %694 = vmatpush1.bf16.msra.mxu0 0
          %695 = vmatprep.subr.bf16.mxu0 0
          %696 = vmatpush1.bf16.msra.mxu0 0
          %697 = vmatprep.subr.bf16.mxu0 0
          %698 = vmatpush1.bf16.msra.mxu0 %v678
          %699 = vmatprep.subr.bf16.mxu0 0
          %700 = vmatpush1.bf16.msra.mxu0 %v677
          %701 = vmatprep.subr.bf16.mxu0 0
          %702 = vmatpush2.bf16.msra.mxu0 0
          %703 = vmatprep.subr.bf16.mxu0 0
          %704 = vmatpush2.bf16.msra.mxu0 0
          %705 = vmatprep.subr.bf16.mxu0 0
          %706 = vmatpush2.bf16.msra.mxu0 0
          %707 = vmatprep.subr.bf16.mxu0 0
          %708 = vmatpush2.bf16.msra.mxu0 0
          %709 = vmatprep.subr.bf16.mxu0 0
          %710 = vmatpush2.bf16.msra.mxu0 0
          %711 = vmatprep.subr.bf16.mxu0 0
          %712 = vmatpush2.bf16.msra.mxu0 0
          %713 = vmatprep.subr.bf16.mxu0 0
          %714 = vmatpush2.bf16.msra.mxu0 0
          %715 = vmatprep.subr.bf16.mxu0 0
          %716 = vmatpush2.bf16.msra.mxu0 0
          %717 = vmatprep.mubr.bf16.mxu0 0
          %718 = vmatmul.mubr.bf16.gmra.mxu0 %v683
          %v719 = vpop.f32.mrf.mxu0
          %v720 = vadd.f32 %v667, %v719
          %v721 = vpop.f32.mrf.mxu0
          %v722 = vpop.f32.mrf.mxu0
          %v723 = vpop.f32.mrf.mxu0
          %724 = vdwg.mxu0
          %726 = vrot.lane.b32.xlu0 %v720, 120
          %v727 = vpop.permute.xlu0 %726
          %729 = vrot.lane.b32.xlu0 %v720, 112
          %v730 = vpop.permute.xlu0 %729
          %732 = vrot.lane.b32.xlu0 %v720, 104
          %v733 = vpop.permute.xlu0 %732
          %v735 = vcombine.low %v720, %v730
          %v736 = vcombine.high %v720, %v730
          %v738 = vunpack.c.l.s4 1983009808
          %v739 = vunpack.c.0.s8 %v738
          %v740 = vlaneseq
          %v741 = vshrl.u32 %v740, 7
          %v742 = vsub.s32 %v739, %v741
          %v743 = vrot.slane %v735, %v742
          %v745 = vunpack.c.l.s4 1983009808
          %v746 = vunpack.c.0.s8 %v745
          %v747 = vlaneseq
          %v748 = vshrl.u32 %v747, 7
          %v749 = vsub.s32 %v746, %v748
          %v750 = vrot.slane %v736, %v749
          %v751 = vcombine.low %v727, %v733
          %v752 = vcombine.high %v727, %v733
          %v754 = vunpack.c.l.s4 1983009808
          %v755 = vunpack.c.0.s8 %v754
          %v756 = vlaneseq
          %v757 = vshrl.u32 %v756, 7
          %v758 = vsub.s32 %v755, %v757
          %v759 = vrot.slane %v751, %v758
          %v761 = vunpack.c.l.s4 1983009808
          %v762 = vunpack.c.0.s8 %v761
          %v763 = vlaneseq
          %v764 = vshrl.u32 %v763, 7
          %v765 = vsub.s32 %v762, %v764
          %v766 = vrot.slane %v752, %v765
          %v767 = vcombine.low %v743, %v759
          %v768 = vcombine.high %v743, %v759
          %v770 = vunpack.c.l.s4 1934713408
          %v771 = vunpack.c.0.s8 %v770
          %v772 = vlaneseq
          %v773 = vshrl.u32 %v772, 7
          %v774 = vsub.s32 %v771, %v773
          %v775 = vrot.slane %v767, %v774
          %v777 = vunpack.c.l.s4 1934713408
          %v778 = vunpack.c.0.s8 %v777
          %v779 = vlaneseq
          %v780 = vshrl.u32 %v779, 7
          %v781 = vsub.s32 %v778, %v780
          %v782 = vrot.slane %v768, %v781
          %v783 = vcombine.low %v750, %v766
          %v784 = vcombine.high %v750, %v766
          %v786 = vunpack.c.l.s4 1934713408
          %v787 = vunpack.c.0.s8 %v786
          %v788 = vlaneseq
          %v789 = vshrl.u32 %v788, 7
          %v790 = vsub.s32 %v787, %v789
          %v791 = vrot.slane %v783, %v790
          %v793 = vunpack.c.l.s4 1934713408
          %v794 = vunpack.c.0.s8 %v793
          %v795 = vlaneseq
          %v796 = vshrl.u32 %v795, 7
          %v797 = vsub.s32 %v794, %v796
          %v798 = vrot.slane %v784, %v797
          %v799 = vcombine.high %v775, 0.0
          %v800 = vcombine.high %v782, 0.0
          %v801 = vcombine.high %v791, 0.0
          %v802 = vcombine.high %v798, 0.0
          %v803 = vcombine.low %v775, %v782
          %v805 = vunpack.c.l.s4 1983009808
          %v806 = vunpack.c.0.s8 %v805
          %v807 = vlaneseq
          %v808 = vshrl.u32 %v807, 7
          %v809 = vsub.s32 %v806, %v808
          %v810 = vrot.slane %v803, %v809
          %v811 = vcombine.low %v799, %v800
          %v813 = vunpack.c.l.s4 1983009808
          %v814 = vunpack.c.0.s8 %v813
          %v815 = vlaneseq
          %v816 = vshrl.u32 %v815, 7
          %v817 = vsub.s32 %v814, %v816
          %v818 = vrot.slane %v811, %v817
          %v819 = vcombine.low %v791, %v798
          %v821 = vunpack.c.l.s4 1983009808
          %v822 = vunpack.c.0.s8 %v821
          %v823 = vlaneseq
          %v824 = vshrl.u32 %v823, 7
          %v825 = vsub.s32 %v822, %v824
          %v826 = vrot.slane %v819, %v825
          %v827 = vcombine.low %v801, %v802
          %v829 = vunpack.c.l.s4 1983009808
          %v830 = vunpack.c.0.s8 %v829
          %v831 = vlaneseq
          %v832 = vshrl.u32 %v831, 7
          %v833 = vsub.s32 %v830, %v832
          %v834 = vrot.slane %v827, %v833
          %v835 = vcombine.low %v810, %v818
          %v836 = vcombine.high %v810, %v818
          %v838 = vunpack.c.l.s4 1934713408
          %v839 = vunpack.c.0.s8 %v838
          %v840 = vlaneseq
          %v841 = vshrl.u32 %v840, 7
          %v842 = vsub.s32 %v839, %v841
          %v843 = vrot.slane %v835, %v842
          %v845 = vunpack.c.l.s4 1934713408
          %v846 = vunpack.c.0.s8 %v845
          %v847 = vlaneseq
          %v848 = vshrl.u32 %v847, 7
          %v849 = vsub.s32 %v846, %v848
          %v850 = vrot.slane %v836, %v849
          %v851 = vcombine.low %v826, %v834
          %v852 = vcombine.high %v826, %v834
          %v854 = vunpack.c.l.s4 1934713408
          %v855 = vunpack.c.0.s8 %v854
          %v856 = vlaneseq
          %v857 = vshrl.u32 %v856, 7
          %v858 = vsub.s32 %v855, %v857
          %v859 = vrot.slane %v851, %v858
          %v861 = vunpack.c.l.s4 1934713408
          %v862 = vunpack.c.0.s8 %v861
          %v863 = vlaneseq
          %v864 = vshrl.u32 %v863, 7
          %v865 = vsub.s32 %v862, %v864
          %v866 = vrot.slane %v852, %v865
          %v867 = vcombine.low %v843, %v859
          %v868 = vcombine.high %v843, %v859
          %v869 = vcombine.low %v850, %v866
          %v870 = vcombine.high %v850, %v866
          %v871 = vpack.c.bf16 %v867, %v867
          %v872 = vpack.c.bf16 %v868, %v868
          %v873 = vpack.c.bf16 %v869, %v869
          %v874 = vpack.c.bf16 %v870, %v870
          %vm875 = vcmask 60416
          %876 = vst.msk [vmem:[#allocation2] sm:$0xf] %vm875, %v871
          %877 = vst.msk [vmem:[#allocation2 + $0x4] sm:$0xf] %vm875, %v872
          %878 = vst.msk [vmem:[#allocation2 + $0x8] sm:$0xf] %vm875, %v873
          %879 = vst.msk [vmem:[#allocation2 + $0xc] sm:$0xf] %vm875, %v874
          %880 = vrot.lane.b32.xlu0 %v720, 96
          %v881 = vpop.permute.xlu0 %880
          %882 = vrot.lane.b32.xlu0 %v727, 96
          %v883 = vpop.permute.xlu0 %882
          %884 = vrot.lane.b32.xlu0 %v730, 96
          %v885 = vpop.permute.xlu0 %884
          %886 = vrot.lane.b32.xlu0 %v733, 96
          %v887 = vpop.permute.xlu0 %886
          %v892 = vcombine.low %v881, %v885
          %v893 = vcombine.high %v881, %v885
          %v895 = vunpack.c.l.s4 1983009808
          %v896 = vunpack.c.0.s8 %v895
          %v897 = vlaneseq
          %v898 = vshrl.u32 %v897, 7
          %v899 = vsub.s32 %v896, %v898
          %v900 = vrot.slane %v892, %v899
          %v902 = vunpack.c.l.s4 1983009808
          %v903 = vunpack.c.0.s8 %v902
          %v904 = vlaneseq
          %v905 = vshrl.u32 %v904, 7
          %v906 = vsub.s32 %v903, %v905
          %v907 = vrot.slane %v893, %v906
          %v908 = vcombine.low %v883, %v887
          %v909 = vcombine.high %v883, %v887
          %v911 = vunpack.c.l.s4 1983009808
          %v912 = vunpack.c.0.s8 %v911
          %v913 = vlaneseq
          %v914 = vshrl.u32 %v913, 7
          %v915 = vsub.s32 %v912, %v914
          %v916 = vrot.slane %v908, %v915
          %v918 = vunpack.c.l.s4 1983009808
          %v919 = vunpack.c.0.s8 %v918
          %v920 = vlaneseq
          %v921 = vshrl.u32 %v920, 7
          %v922 = vsub.s32 %v919, %v921
          %v923 = vrot.slane %v909, %v922
          %v924 = vcombine.low %v900, %v916
          %v925 = vcombine.high %v900, %v916
          %v927 = vunpack.c.l.s4 1934713408
          %v928 = vunpack.c.0.s8 %v927
          %v929 = vlaneseq
          %v930 = vshrl.u32 %v929, 7
          %v931 = vsub.s32 %v928, %v930
          %v932 = vrot.slane %v924, %v931
          %v934 = vunpack.c.l.s4 1934713408
          %v935 = vunpack.c.0.s8 %v934
          %v936 = vlaneseq
          %v937 = vshrl.u32 %v936, 7
          %v938 = vsub.s32 %v935, %v937
          %v939 = vrot.slane %v925, %v938
          %v940 = vcombine.low %v907, %v923
          %v941 = vcombine.high %v907, %v923
          %v943 = vunpack.c.l.s4 1934713408
          %v944 = vunpack.c.0.s8 %v943
          %v945 = vlaneseq
          %v946 = vshrl.u32 %v945, 7
          %v947 = vsub.s32 %v944, %v946
          %v948 = vrot.slane %v940, %v947
          %v950 = vunpack.c.l.s4 1934713408
          %v951 = vunpack.c.0.s8 %v950
          %v952 = vlaneseq
          %v953 = vshrl.u32 %v952, 7
          %v954 = vsub.s32 %v951, %v953
          %v955 = vrot.slane %v941, %v954
          %v956 = vcombine.high %v932, 0.0
          %v957 = vcombine.high %v939, 0.0
          %v958 = vcombine.high %v948, 0.0
          %v959 = vcombine.high %v955, 0.0
          %v960 = vcombine.low %v932, %v939
          %v962 = vunpack.c.l.s4 1983009808
          %v963 = vunpack.c.0.s8 %v962
          %v964 = vlaneseq
          %v965 = vshrl.u32 %v964, 7
          %v966 = vsub.s32 %v963, %v965
          %v967 = vrot.slane %v960, %v966
          %v968 = vcombine.low %v956, %v957
          %v970 = vunpack.c.l.s4 1983009808
          %v971 = vunpack.c.0.s8 %v970
          %v972 = vlaneseq
          %v973 = vshrl.u32 %v972, 7
          %v974 = vsub.s32 %v971, %v973
          %v975 = vrot.slane %v968, %v974
          %v976 = vcombine.low %v948, %v955
          %v978 = vunpack.c.l.s4 1983009808
          %v979 = vunpack.c.0.s8 %v978
          %v980 = vlaneseq
          %v981 = vshrl.u32 %v980, 7
          %v982 = vsub.s32 %v979, %v981
          %v983 = vrot.slane %v976, %v982
          %v984 = vcombine.low %v958, %v959
          %v986 = vunpack.c.l.s4 1983009808
          %v987 = vunpack.c.0.s8 %v986
          %v988 = vlaneseq
          %v989 = vshrl.u32 %v988, 7
          %v990 = vsub.s32 %v987, %v989
          %v991 = vrot.slane %v984, %v990
          %v992 = vcombine.low %v967, %v975
          %v993 = vcombine.high %v967, %v975
          %v995 = vunpack.c.l.s4 1934713408
          %v996 = vunpack.c.0.s8 %v995
          %v997 = vlaneseq
          %v998 = vshrl.u32 %v997, 7
          %v999 = vsub.s32 %v996, %v998
          %v1000 = vrot.slane %v992, %v999
          %v1002 = vunpack.c.l.s4 1934713408
          %v1003 = vunpack.c.0.s8 %v1002
          %v1004 = vlaneseq
          %v1005 = vshrl.u32 %v1004, 7
          %v1006 = vsub.s32 %v1003, %v1005
          %v1007 = vrot.slane %v993, %v1006
          %v1008 = vcombine.low %v983, %v991
          %v1009 = vcombine.high %v983, %v991
          %v1011 = vunpack.c.l.s4 1934713408
          %v1012 = vunpack.c.0.s8 %v1011
          %v1013 = vlaneseq
          %v1014 = vshrl.u32 %v1013, 7
          %v1015 = vsub.s32 %v1012, %v1014
          %v1016 = vrot.slane %v1008, %v1015
          %v1018 = vunpack.c.l.s4 1934713408
          %v1019 = vunpack.c.0.s8 %v1018
          %v1020 = vlaneseq
          %v1021 = vshrl.u32 %v1020, 7
          %v1022 = vsub.s32 %v1019, %v1021
          %v1023 = vrot.slane %v1009, %v1022
          %v1024 = vcombine.low %v1000, %v1016
          %v1025 = vcombine.high %v1000, %v1016
          %v1026 = vcombine.low %v1007, %v1023
          %v1027 = vcombine.high %v1007, %v1023
          %v1028 = vpack.c.bf16 %v1024, %v1024
          %v1029 = vpack.c.bf16 %v1025, %v1025
          %v1030 = vpack.c.bf16 %v1026, %v1026
          %v1031 = vpack.c.bf16 %v1027, %v1027
          %1032 = vst.msk [vmem:[#allocation3] sm:$0xf] %vm875, %v1028
          %1033 = vst.msk [vmem:[#allocation3 + $0x4] sm:$0xf] %vm875, %v1029
          %1034 = vst.msk [vmem:[#allocation3 + $0x8] sm:$0xf] %vm875, %v1030
          %1035 = vst.msk [vmem:[#allocation3 + $0xc] sm:$0xf] %vm875, %v1031
        $region116: #{tpu_custom_call.1} parent=83 // pred_fallthru
          _
        %s1036 = smul.u32 %s39, 8
        %s1037 = scalar_lea.vmem %s643, %s1036
        %v1038 = vld [vmem:[%s1037] sm:$0xff]
        %v1039 = vld [vmem:[%s650] sm:$0xff]
        %v1040 = vpack.c.bf16 %v1038, %v1038
        %v1041 = vld [vmem:[%s2] sm:$0xf]
        %v1042 = vld [vmem:[%s2 + $0x4] sm:$0xf]
        %v1043 = vld [vmem:[%s2 + $0x8] sm:$0xf]
        %v1044 = vld [vmem:[%s2 + $0xc] sm:$0xf]
        %v1045 = vld [vmem:[#allocation4] sm:$0x1]
        %v1047 = vlaneseq
        %v1048 = vshrl.u32 %v1047, 7
        %v1049 = vsub.s32 0, %v1048
        %v1050 = vrot.slane %v1045, %v1049
        %v1056 = vunpack.c.l.b16 %v1041
        %v1057 = vunpack.c.l.b16 %v1042
        %v1058 = vunpack.c.l.b16 %v1043
        %v1059 = vunpack.c.l.b16 %v1044
        %v1060 = vpack.c.b16 %v1057, %v1056
        %v1061 = vpack.c.b16 %v1059, %v1058
        %vm1064 = vcmask 261120
        %v1066 = vsel %vm1064, %v1040, 0
        %1068 = vmatprep.subr.bf16.mxu0 0
        %1069 = vmatpush1.bf16.msra.mxu0 0
        %1070 = vmatprep.subr.bf16.mxu0 0
        %1071 = vmatpush1.bf16.msra.mxu0 0
        %1072 = vmatprep.subr.bf16.mxu0 0
        %1073 = vmatpush1.bf16.msra.mxu0 0
        %1074 = vmatprep.subr.bf16.mxu0 0
        %1075 = vmatpush1.bf16.msra.mxu0 0
        %1076 = vmatprep.subr.bf16.mxu0 0
        %1077 = vmatpush1.bf16.msra.mxu0 0
        %1078 = vmatprep.subr.bf16.mxu0 0
        %1079 = vmatpush1.bf16.msra.mxu0 0
        %1080 = vmatprep.subr.bf16.mxu0 0
        %1081 = vmatpush1.bf16.msra.mxu0 %v1061
        %1082 = vmatprep.subr.bf16.mxu0 0
        %1083 = vmatpush1.bf16.msra.mxu0 %v1060
        %1084 = vmatprep.subr.bf16.mxu0 0
        %1085 = vmatpush2.bf16.msra.mxu0 0
        %1086 = vmatprep.subr.bf16.mxu0 0
        %1087 = vmatpush2.bf16.msra.mxu0 0
        %1088 = vmatprep.subr.bf16.mxu0 0
        %1089 = vmatpush2.bf16.msra.mxu0 0
        %1090 = vmatprep.subr.bf16.mxu0 0
        %1091 = vmatpush2.bf16.msra.mxu0 0
        %1092 = vmatprep.subr.bf16.mxu0 0
        %1093 = vmatpush2.bf16.msra.mxu0 0
        %1094 = vmatprep.subr.bf16.mxu0 0
        %1095 = vmatpush2.bf16.msra.mxu0 0
        %1096 = vmatprep.subr.bf16.mxu0 0
        %1097 = vmatpush2.bf16.msra.mxu0 0
        %1098 = vmatprep.subr.bf16.mxu0 0
        %1099 = vmatpush2.bf16.msra.mxu0 0
        %1100 = vmatprep.mubr.bf16.mxu0 0
        %1101 = vmatmul.mubr.bf16.gmra.mxu0 %v1066
        %v1102 = vpop.f32.mrf.mxu0
        %v1103 = vadd.f32 %v1050, %v1102
        %v1104 = vpop.f32.mrf.mxu0
        %v1105 = vpop.f32.mrf.mxu0
        %v1106 = vpop.f32.mrf.mxu0
        %1107 = vdwg.mxu0
        %1109 = vrot.lane.b32.xlu0 %v1103, 120
        %v1110 = vpop.permute.xlu0 %1109
        %1112 = vrot.lane.b32.xlu0 %v1103, 112
        %v1113 = vpop.permute.xlu0 %1112
        %1115 = vrot.lane.b32.xlu0 %v1103, 104
        %v1116 = vpop.permute.xlu0 %1115
        %v1118 = vcombine.low %v1103, %v1113
        %v1119 = vcombine.high %v1103, %v1113
        %v1121 = vunpack.c.l.s4 1983009808
        %v1122 = vunpack.c.0.s8 %v1121
        %v1123 = vlaneseq
        %v1124 = vshrl.u32 %v1123, 7
        %v1125 = vsub.s32 %v1122, %v1124
        %v1126 = vrot.slane %v1118, %v1125
        %v1128 = vunpack.c.l.s4 1983009808
        %v1129 = vunpack.c.0.s8 %v1128
        %v1130 = vlaneseq
        %v1131 = vshrl.u32 %v1130, 7
        %v1132 = vsub.s32 %v1129, %v1131
        %v1133 = vrot.slane %v1119, %v1132
        %v1134 = vcombine.low %v1110, %v1116
        %v1135 = vcombine.high %v1110, %v1116
        %v1137 = vunpack.c.l.s4 1983009808
        %v1138 = vunpack.c.0.s8 %v1137
        %v1139 = vlaneseq
        %v1140 = vshrl.u32 %v1139, 7
        %v1141 = vsub.s32 %v1138, %v1140
        %v1142 = vrot.slane %v1134, %v1141
        %v1144 = vunpack.c.l.s4 1983009808
        %v1145 = vunpack.c.0.s8 %v1144
        %v1146 = vlaneseq
        %v1147 = vshrl.u32 %v1146, 7
        %v1148 = vsub.s32 %v1145, %v1147
        %v1149 = vrot.slane %v1135, %v1148
        %v1150 = vcombine.low %v1126, %v1142
        %v1151 = vcombine.high %v1126, %v1142
        %v1153 = vunpack.c.l.s4 1934713408
        %v1154 = vunpack.c.0.s8 %v1153
        %v1155 = vlaneseq
        %v1156 = vshrl.u32 %v1155, 7
        %v1157 = vsub.s32 %v1154, %v1156
        %v1158 = vrot.slane %v1150, %v1157
        %v1160 = vunpack.c.l.s4 1934713408
        %v1161 = vunpack.c.0.s8 %v1160
        %v1162 = vlaneseq
        %v1163 = vshrl.u32 %v1162, 7
        %v1164 = vsub.s32 %v1161, %v1163
        %v1165 = vrot.slane %v1151, %v1164
        %v1166 = vcombine.low %v1133, %v1149
        %v1167 = vcombine.high %v1133, %v1149
        %v1169 = vunpack.c.l.s4 1934713408
        %v1170 = vunpack.c.0.s8 %v1169
        %v1171 = vlaneseq
        %v1172 = vshrl.u32 %v1171, 7
        %v1173 = vsub.s32 %v1170, %v1172
        %v1174 = vrot.slane %v1166, %v1173
        %v1176 = vunpack.c.l.s4 1934713408
        %v1177 = vunpack.c.0.s8 %v1176
        %v1178 = vlaneseq
        %v1179 = vshrl.u32 %v1178, 7
        %v1180 = vsub.s32 %v1177, %v1179
        %v1181 = vrot.slane %v1167, %v1180
        %v1182 = vcombine.high %v1158, 0.0
        %v1183 = vcombine.high %v1165, 0.0
        %v1184 = vcombine.high %v1174, 0.0
        %v1185 = vcombine.high %v1181, 0.0
        %v1186 = vcombine.low %v1158, %v1165
        %v1188 = vunpack.c.l.s4 1983009808
        %v1189 = vunpack.c.0.s8 %v1188
        %v1190 = vlaneseq
        %v1191 = vshrl.u32 %v1190, 7
        %v1192 = vsub.s32 %v1189, %v1191
        %v1193 = vrot.slane %v1186, %v1192
        %v1194 = vcombine.low %v1182, %v1183
        %v1196 = vunpack.c.l.s4 1983009808
        %v1197 = vunpack.c.0.s8 %v1196
        %v1198 = vlaneseq
        %v1199 = vshrl.u32 %v1198, 7
        %v1200 = vsub.s32 %v1197, %v1199
        %v1201 = vrot.slane %v1194, %v1200
        %v1202 = vcombine.low %v1174, %v1181
        %v1204 = vunpack.c.l.s4 1983009808
        %v1205 = vunpack.c.0.s8 %v1204
        %v1206 = vlaneseq
        %v1207 = vshrl.u32 %v1206, 7
        %v1208 = vsub.s32 %v1205, %v1207
        %v1209 = vrot.slane %v1202, %v1208
        %v1210 = vcombine.low %v1184, %v1185
        %v1212 = vunpack.c.l.s4 1983009808
        %v1213 = vunpack.c.0.s8 %v1212
        %v1214 = vlaneseq
        %v1215 = vshrl.u32 %v1214, 7
        %v1216 = vsub.s32 %v1213, %v1215
        %v1217 = vrot.slane %v1210, %v1216
        %v1218 = vcombine.low %v1193, %v1201
        %v1219 = vcombine.high %v1193, %v1201
        %v1221 = vunpack.c.l.s4 1934713408
        %v1222 = vunpack.c.0.s8 %v1221
        %v1223 = vlaneseq
        %v1224 = vshrl.u32 %v1223, 7
        %v1225 = vsub.s32 %v1222, %v1224
        %v1226 = vrot.slane %v1218, %v1225
        %v1228 = vunpack.c.l.s4 1934713408
        %v1229 = vunpack.c.0.s8 %v1228
        %v1230 = vlaneseq
        %v1231 = vshrl.u32 %v1230, 7
        %v1232 = vsub.s32 %v1229, %v1231
        %v1233 = vrot.slane %v1219, %v1232
        %v1234 = vcombine.low %v1209, %v1217
        %v1235 = vcombine.high %v1209, %v1217
        %v1237 = vunpack.c.l.s4 1934713408
        %v1238 = vunpack.c.0.s8 %v1237
        %v1239 = vlaneseq
        %v1240 = vshrl.u32 %v1239, 7
        %v1241 = vsub.s32 %v1238, %v1240
        %v1242 = vrot.slane %v1234, %v1241
        %v1244 = vunpack.c.l.s4 1934713408
        %v1245 = vunpack.c.0.s8 %v1244
        %v1246 = vlaneseq
        %v1247 = vshrl.u32 %v1246, 7
        %v1248 = vsub.s32 %v1245, %v1247
        %v1249 = vrot.slane %v1235, %v1248
        %v1250 = vcombine.low %v1226, %v1242
        %v1251 = vcombine.high %v1226, %v1242
        %v1252 = vcombine.low %v1233, %v1249
        %v1253 = vcombine.high %v1233, %v1249
        %v1254 = vpack.c.bf16 %v1250, %v1250
        %v1255 = vpack.c.bf16 %v1251, %v1251
        %v1256 = vpack.c.bf16 %v1252, %v1252
        %v1257 = vpack.c.bf16 %v1253, %v1253
        %v1258 = vld [vmem:[#allocation2] sm:$0xf]
        %v1259 = vld [vmem:[#allocation2 + $0x4] sm:$0xf]
        %v1260 = vld [vmem:[#allocation2 + $0x8] sm:$0xf]
        %v1261 = vld [vmem:[#allocation2 + $0xc] sm:$0xf]
        %vm1262 = vcmask 64512
        %v1264 = vsel %vm1262, %v1254, 0
        %v1267 = vsel %vm1262, %v1258, 0
        %1269 = vmatprep.subr.bf16.mxu0 0
        %1270 = vmatpush1.bf16.xpose.msra.mxu0 0
        %1271 = vmatprep.subr.bf16.mxu0 0
        %1272 = vmatpush1.bf16.xpose.msra.mxu0 0
        %1273 = vmatprep.subr.bf16.mxu0 0
        %1274 = vmatpush1.bf16.xpose.msra.mxu0 0
        %1275 = vmatprep.subr.bf16.mxu0 0
        %1276 = vmatpush1.bf16.xpose.msra.mxu0 0
        %1277 = vmatprep.subr.bf16.mxu0 0
        %1278 = vmatpush1.bf16.xpose.msra.mxu0 0
        %1279 = vmatprep.subr.bf16.mxu0 0
        %1280 = vmatpush1.bf16.xpose.msra.mxu0 0
        %1281 = vmatprep.subr.bf16.mxu0 0
        %1282 = vmatpush1.bf16.xpose.msra.mxu0 0
        %1283 = vmatprep.subr.bf16.mxu0 0
        %1284 = vmatpush1.bf16.xpose.msra.mxu0 %v1267
        %1285 = vmatprep.subr.bf16.mxu0 0
        %1286 = vmatpush2.bf16.xpose.msra.mxu0 0
        %1287 = vmatprep.subr.bf16.mxu0 0
        %1288 = vmatpush2.bf16.xpose.msra.mxu0 0
        %1289 = vmatprep.subr.bf16.mxu0 0
        %1290 = vmatpush2.bf16.xpose.msra.mxu0 0
        %1291 = vmatprep.subr.bf16.mxu0 0
        %1292 = vmatpush2.bf16.xpose.msra.mxu0 0
        %1293 = vmatprep.subr.bf16.mxu0 0
        %1294 = vmatpush2.bf16.xpose.msra.mxu0 0
        %1295 = vmatprep.subr.bf16.mxu0 0
        %1296 = vmatpush2.bf16.xpose.msra.mxu0 0
        %1297 = vmatprep.subr.bf16.mxu0 0
        %1298 = vmatpush2.bf16.xpose.msra.mxu0 0
        %1299 = vmatprep.subr.bf16.mxu0 0
        %1300 = vmatpush2.bf16.xpose.msra.mxu0 0
        %1301 = vmatprep.mubr.bf16.mxu0 0
        %1302 = vmatmul.mubr.bf16.gmra.mxu0 %v1264
        %v1303 = vpop.f32.mrf.mxu0
        %v1304 = vadd.f32 %v1039, %v1303
        %v1305 = vpop.f32.mrf.mxu0
        %v1306 = vpop.f32.mrf.mxu0
        %v1307 = vpop.f32.mrf.mxu0
        %1308 = vdwg.mxu0
        %v1310 = vsel %vm1262, %v1255, 0
        %v1313 = vsel %vm1262, %v1259, 0
        %1315 = vmatprep.subr.bf16.mxu0 0
        %1316 = vmatpush1.bf16.xpose.msra.mxu0 0
        %1317 = vmatprep.subr.bf16.mxu0 0
        %1318 = vmatpush1.bf16.xpose.msra.mxu0 0
        %1319 = vmatprep.subr.bf16.mxu0 0
        %1320 = vmatpush1.bf16.xpose.msra.mxu0 0
        %1321 = vmatprep.subr.bf16.mxu0 0
        %1322 = vmatpush1.bf16.xpose.msra.mxu0 0
        %1323 = vmatprep.subr.bf16.mxu0 0
        %1324 = vmatpush1.bf16.xpose.msra.mxu0 0
        %1325 = vmatprep.subr.bf16.mxu0 0
        %1326 = vmatpush1.bf16.xpose.msra.mxu0 0
        %1327 = vmatprep.subr.bf16.mxu0 0
        %1328 = vmatpush1.bf16.xpose.msra.mxu0 0
        %1329 = vmatprep.subr.bf16.mxu0 0
        %1330 = vmatpush1.bf16.xpose.msra.mxu0 %v1313
        %1331 = vmatprep.subr.bf16.mxu0 0
        %1332 = vmatpush2.bf16.xpose.msra.mxu0 0
        %1333 = vmatprep.subr.bf16.mxu0 0
        %1334 = vmatpush2.bf16.xpose.msra.mxu0 0
        %1335 = vmatprep.subr.bf16.mxu0 0
        %1336 = vmatpush2.bf16.xpose.msra.mxu0 0
        %1337 = vmatprep.subr.bf16.mxu0 0
        %1338 = vmatpush2.bf16.xpose.msra.mxu0 0
        %1339 = vmatprep.subr.bf16.mxu0 0
        %1340 = vmatpush2.bf16.xpose.msra.mxu0 0
        %1341 = vmatprep.subr.bf16.mxu0 0
        %1342 = vmatpush2.bf16.xpose.msra.mxu0 0
        %1343 = vmatprep.subr.bf16.mxu0 0
        %1344 = vmatpush2.bf16.xpose.msra.mxu0 0
        %1345 = vmatprep.subr.bf16.mxu0 0
        %1346 = vmatpush2.bf16.xpose.msra.mxu0 0
        %1347 = vmatprep.mubr.bf16.mxu0 0
        %1348 = vmatmul.mubr.bf16.gmra.mxu0 %v1310
        %v1349 = vpop.f32.mrf.mxu0
        %v1350 = vadd.f32 %v1039, %v1349
        %v1351 = vpop.f32.mrf.mxu0
        %v1352 = vpop.f32.mrf.mxu0
        %v1353 = vpop.f32.mrf.mxu0
        %1354 = vdwg.mxu0
        %v1356 = vsel %vm1262, %v1256, 0
        %v1359 = vsel %vm1262, %v1260, 0
        %1361 = vmatprep.subr.bf16.mxu0 0
        %1362 = vmatpush1.bf16.xpose.msra.mxu0 0
        %1363 = vmatprep.subr.bf16.mxu0 0
        %1364 = vmatpush1.bf16.xpose.msra.mxu0 0
        %1365 = vmatprep.subr.bf16.mxu0 0
        %1366 = vmatpush1.bf16.xpose.msra.mxu0 0
        %1367 = vmatprep.subr.bf16.mxu0 0
        %1368 = vmatpush1.bf16.xpose.msra.mxu0 0
        %1369 = vmatprep.subr.bf16.mxu0 0
        %1370 = vmatpush1.bf16.xpose.msra.mxu0 0
        %1371 = vmatprep.subr.bf16.mxu0 0
        %1372 = vmatpush1.bf16.xpose.msra.mxu0 0
        %1373 = vmatprep.subr.bf16.mxu0 0
        %1374 = vmatpush1.bf16.xpose.msra.mxu0 0
        %1375 = vmatprep.subr.bf16.mxu0 0
        %1376 = vmatpush1.bf16.xpose.msra.mxu0 %v1359
        %1377 = vmatprep.subr.bf16.mxu0 0
        %1378 = vmatpush2.bf16.xpose.msra.mxu0 0
        %1379 = vmatprep.subr.bf16.mxu0 0
        %1380 = vmatpush2.bf16.xpose.msra.mxu0 0
        %1381 = vmatprep.subr.bf16.mxu0 0
        %1382 = vmatpush2.bf16.xpose.msra.mxu0 0
        %1383 = vmatprep.subr.bf16.mxu0 0
        %1384 = vmatpush2.bf16.xpose.msra.mxu0 0
        %1385 = vmatprep.subr.bf16.mxu0 0
        %1386 = vmatpush2.bf16.xpose.msra.mxu0 0
        %1387 = vmatprep.subr.bf16.mxu0 0
        %1388 = vmatpush2.bf16.xpose.msra.mxu0 0
        %1389 = vmatprep.subr.bf16.mxu0 0
        %1390 = vmatpush2.bf16.xpose.msra.mxu0 0
        %1391 = vmatprep.subr.bf16.mxu0 0
        %1392 = vmatpush2.bf16.xpose.msra.mxu0 0
        %1393 = vmatprep.mubr.bf16.mxu0 0
        %1394 = vmatmul.mubr.bf16.gmra.mxu0 %v1356
        %v1395 = vpop.f32.mrf.mxu0
        %v1396 = vadd.f32 %v1039, %v1395
        %v1397 = vpop.f32.mrf.mxu0
        %v1398 = vpop.f32.mrf.mxu0
        %v1399 = vpop.f32.mrf.mxu0
        %1400 = vdwg.mxu0
        %v1402 = vsel %vm1262, %v1257, 0
        %v1405 = vsel %vm1262, %v1261, 0
        %1407 = vmatprep.subr.bf16.mxu0 0
        %1408 = vmatpush1.bf16.xpose.msra.mxu0 0
        %1409 = vmatprep.subr.bf16.mxu0 0
        %1410 = vmatpush1.bf16.xpose.msra.mxu0 0
        %1411 = vmatprep.subr.bf16.mxu0 0
        %1412 = vmatpush1.bf16.xpose.msra.mxu0 0
        %1413 = vmatprep.subr.bf16.mxu0 0
        %1414 = vmatpush1.bf16.xpose.msra.mxu0 0
        %1415 = vmatprep.subr.bf16.mxu0 0
        %1416 = vmatpush1.bf16.xpose.msra.mxu0 0
        %1417 = vmatprep.subr.bf16.mxu0 0
        %1418 = vmatpush1.bf16.xpose.msra.mxu0 0
        %1419 = vmatprep.subr.bf16.mxu0 0
        %1420 = vmatpush1.bf16.xpose.msra.mxu0 0
        %1421 = vmatprep.subr.bf16.mxu0 0
        %1422 = vmatpush1.bf16.xpose.msra.mxu0 %v1405
        %1423 = vmatprep.subr.bf16.mxu0 0
        %1424 = vmatpush2.bf16.xpose.msra.mxu0 0
        %1425 = vmatprep.subr.bf16.mxu0 0
        %1426 = vmatpush2.bf16.xpose.msra.mxu0 0
        %1427 = vmatprep.subr.bf16.mxu0 0
        %1428 = vmatpush2.bf16.xpose.msra.mxu0 0
        %1429 = vmatprep.subr.bf16.mxu0 0
        %1430 = vmatpush2.bf16.xpose.msra.mxu0 0
        %1431 = vmatprep.subr.bf16.mxu0 0
        %1432 = vmatpush2.bf16.xpose.msra.mxu0 0
        %1433 = vmatprep.subr.bf16.mxu0 0
        %1434 = vmatpush2.bf16.xpose.msra.mxu0 0
        %1435 = vmatprep.subr.bf16.mxu0 0
        %1436 = vmatpush2.bf16.xpose.msra.mxu0 0
        %1437 = vmatprep.subr.bf16.mxu0 0
        %1438 = vmatpush2.bf16.xpose.msra.mxu0 0
        %1439 = vmatprep.mubr.bf16.mxu0 0
        %1440 = vmatmul.mubr.bf16.gmra.mxu0 %v1402
        %v1441 = vpop.f32.mrf.mxu0
        %v1442 = vadd.f32 %v1039, %v1441
        %v1443 = vpop.f32.mrf.mxu0
        %v1444 = vpop.f32.mrf.mxu0
        %v1445 = vpop.f32.mrf.mxu0
        %1446 = vdwg.mxu0
        %v1447 = vsel %vm1262, %v1304, -inf
        %1448 = vmax.xlane.f32.xlu0 %v1447
        %v1449 = vpop.xlane.xlu0 %1448
        %v1450 = vsel %vm1262, %v1350, -inf
        %1451 = vmax.xlane.f32.xlu0 %v1450
        %v1452 = vpop.xlane.xlu0 %1451
        %v1453 = vsel %vm1262, %v1396, -inf
        %1454 = vmax.xlane.f32.xlu0 %v1453
        %v1455 = vpop.xlane.xlu0 %1454
        %v1456 = vsel %vm1262, %v1442, -inf
        %1457 = vmax.xlane.f32.xlu0 %v1456
        %v1458 = vpop.xlane.xlu0 %1457
        %v1459 = vsub.f32 %v1304, %v1449
        %v1460 = vsub.f32 %v1350, %v1452
        %v1461 = vsub.f32 %v1396, %v1455
        %v1462 = vsub.f32 %v1442, %v1458
        %v1463 = vmul.f32 %v1459, 1.442695
        %v1464 = vpow.pop %v1463
        %v1465 = vmul.f32 %v1460, 1.442695
        %v1466 = vpow.pop %v1465
        %v1467 = vmul.f32 %v1461, 1.442695
        %v1468 = vpow.pop %v1467
        %v1469 = vmul.f32 %v1462, 1.442695
        %v1470 = vpow.pop %v1469
        %v1471 = vsel %vm1262, %v1464, 0.0
        %1472 = vadd.xlane.f32.xlu0 %v1471
        %v1473 = vpop.xlane.xlu0 %1472
        %v1474 = vsel %vm1262, %v1466, 0.0
        %1475 = vadd.xlane.f32.xlu0 %v1474
        %v1476 = vpop.xlane.xlu0 %1475
        %v1477 = vsel %vm1262, %v1468, 0.0
        %1478 = vadd.xlane.f32.xlu0 %v1477
        %v1479 = vpop.xlane.xlu0 %1478
        %v1480 = vsel %vm1262, %v1470, 0.0
        %1481 = vadd.xlane.f32.xlu0 %v1480
        %v1482 = vpop.xlane.xlu0 %1481
        %v1483 = vrcp.pop %v1473
        %v1484 = vrcp.pop %v1476
        %v1485 = vrcp.pop %v1479
        %v1486 = vrcp.pop %v1482
        %v1487 = vmul.f32 %v1464, %v1483
        %v1488 = vmul.f32 %v1466, %v1484
        %v1489 = vmul.f32 %v1468, %v1485
        %v1490 = vmul.f32 %v1470, %v1486
        %v1491 = vpack.c.bf16 %v1487, %v1487
        %v1492 = vpack.c.bf16 %v1488, %v1488
        %v1493 = vpack.c.bf16 %v1489, %v1489
        %v1494 = vpack.c.bf16 %v1490, %v1490
        %v1495 = vld [vmem:[#allocation3] sm:$0xf]
        %v1496 = vld [vmem:[#allocation3 + $0x4] sm:$0xf]
        %v1497 = vld [vmem:[#allocation3 + $0x8] sm:$0xf]
        %v1498 = vld [vmem:[#allocation3 + $0xc] sm:$0xf]
        %v1500 = vsel %vm1262, %v1491, 0
        %vm1502 = vcmask 1043456
        %v1504 = vsel %vm1502, %v1495, 0
        %1506 = vmatprep.subr.bf16.mxu0 0
        %1507 = vmatpush1.bf16.msra.mxu0 0
        %1508 = vmatprep.subr.bf16.mxu0 0
        %1509 = vmatpush1.bf16.msra.mxu0 0
        %1510 = vmatprep.subr.bf16.mxu0 0
        %1511 = vmatpush1.bf16.msra.mxu0 0
        %1512 = vmatprep.subr.bf16.mxu0 0
        %1513 = vmatpush1.bf16.msra.mxu0 0
        %1514 = vmatprep.subr.bf16.mxu0 0
        %1515 = vmatpush1.bf16.msra.mxu0 0
        %1516 = vmatprep.subr.bf16.mxu0 0
        %1517 = vmatpush1.bf16.msra.mxu0 0
        %1518 = vmatprep.subr.bf16.mxu0 0
        %1519 = vmatpush1.bf16.msra.mxu0 0
        %1520 = vmatprep.subr.bf16.mxu0 0
        %1521 = vmatpush1.bf16.msra.mxu0 %v1504
        %1522 = vmatprep.subr.bf16.mxu0 0
        %1523 = vmatpush2.bf16.msra.mxu0 0
        %1524 = vmatprep.subr.bf16.mxu0 0
        %1525 = vmatpush2.bf16.msra.mxu0 0
        %1526 = vmatprep.subr.bf16.mxu0 0
        %1527 = vmatpush2.bf16.msra.mxu0 0
        %1528 = vmatprep.subr.bf16.mxu0 0
        %1529 = vmatpush2.bf16.msra.mxu0 0
        %1530 = vmatprep.subr.bf16.mxu0 0
        %1531 = vmatpush2.bf16.msra.mxu0 0
        %1532 = vmatprep.subr.bf16.mxu0 0
        %1533 = vmatpush2.bf16.msra.mxu0 0
        %1534 = vmatprep.subr.bf16.mxu0 0
        %1535 = vmatpush2.bf16.msra.mxu0 0
        %1536 = vmatprep.subr.bf16.mxu0 0
        %1537 = vmatpush2.bf16.msra.mxu0 0
        %1538 = vmatprep.mubr.bf16.mxu0 0
        %1539 = vmatmul.mubr.bf16.gmra.mxu0 %v1500
        %v1540 = vpop.f32.mrf.mxu0
        %v1541 = vadd.f32 0.0, %v1540
        %v1542 = vpop.f32.mrf.mxu0
        %v1543 = vpop.f32.mrf.mxu0
        %v1544 = vpop.f32.mrf.mxu0
        %1545 = vdwg.mxu0
        %v1547 = vsel %vm1262, %v1492, 0
        %v1550 = vsel %vm1502, %v1496, 0
        %1552 = vmatprep.subr.bf16.mxu0 0
        %1553 = vmatpush1.bf16.msra.mxu0 0
        %1554 = vmatprep.subr.bf16.mxu0 0
        %1555 = vmatpush1.bf16.msra.mxu0 0
        %1556 = vmatprep.subr.bf16.mxu0 0
        %1557 = vmatpush1.bf16.msra.mxu0 0
        %1558 = vmatprep.subr.bf16.mxu0 0
        %1559 = vmatpush1.bf16.msra.mxu0 0
        %1560 = vmatprep.subr.bf16.mxu0 0
        %1561 = vmatpush1.bf16.msra.mxu0 0
        %1562 = vmatprep.subr.bf16.mxu0 0
        %1563 = vmatpush1.bf16.msra.mxu0 0
        %1564 = vmatprep.subr.bf16.mxu0 0
        %1565 = vmatpush1.bf16.msra.mxu0 0
        %1566 = vmatprep.subr.bf16.mxu0 0
        %1567 = vmatpush1.bf16.msra.mxu0 %v1550
        %1568 = vmatprep.subr.bf16.mxu0 0
        %1569 = vmatpush2.bf16.msra.mxu0 0
        %1570 = vmatprep.subr.bf16.mxu0 0
        %1571 = vmatpush2.bf16.msra.mxu0 0
        %1572 = vmatprep.subr.bf16.mxu0 0
        %1573 = vmatpush2.bf16.msra.mxu0 0
        %1574 = vmatprep.subr.bf16.mxu0 0
        %1575 = vmatpush2.bf16.msra.mxu0 0
        %1576 = vmatprep.subr.bf16.mxu0 0
        %1577 = vmatpush2.bf16.msra.mxu0 0
        %1578 = vmatprep.subr.bf16.mxu0 0
        %1579 = vmatpush2.bf16.msra.mxu0 0
        %1580 = vmatprep.subr.bf16.mxu0 0
        %1581 = vmatpush2.bf16.msra.mxu0 0
        %1582 = vmatprep.subr.bf16.mxu0 0
        %1583 = vmatpush2.bf16.msra.mxu0 0
        %1584 = vmatprep.mubr.bf16.mxu0 0
        %1585 = vmatmul.mubr.bf16.gmra.mxu0 %v1547
        %v1586 = vpop.f32.mrf.mxu0
        %v1587 = vadd.f32 0.0, %v1586
        %v1588 = vpop.f32.mrf.mxu0
        %v1589 = vpop.f32.mrf.mxu0
        %v1590 = vpop.f32.mrf.mxu0
        %1591 = vdwg.mxu0
        %v1593 = vsel %vm1262, %v1493, 0
        %v1596 = vsel %vm1502, %v1497, 0
        %1598 = vmatprep.subr.bf16.mxu0 0
        %1599 = vmatpush1.bf16.msra.mxu0 0
        %1600 = vmatprep.subr.bf16.mxu0 0
        %1601 = vmatpush1.bf16.msra.mxu0 0
        %1602 = vmatprep.subr.bf16.mxu0 0
        %1603 = vmatpush1.bf16.msra.mxu0 0
        %1604 = vmatprep.subr.bf16.mxu0 0
        %1605 = vmatpush1.bf16.msra.mxu0 0
        %1606 = vmatprep.subr.bf16.mxu0 0
        %1607 = vmatpush1.bf16.msra.mxu0 0
        %1608 = vmatprep.subr.bf16.mxu0 0
        %1609 = vmatpush1.bf16.msra.mxu0 0
        %1610 = vmatprep.subr.bf16.mxu0 0
        %1611 = vmatpush1.bf16.msra.mxu0 0
        %1612 = vmatprep.subr.bf16.mxu0 0
        %1613 = vmatpush1.bf16.msra.mxu0 %v1596
        %1614 = vmatprep.subr.bf16.mxu0 0
        %1615 = vmatpush2.bf16.msra.mxu0 0
        %1616 = vmatprep.subr.bf16.mxu0 0
        %1617 = vmatpush2.bf16.msra.mxu0 0
        %1618 = vmatprep.subr.bf16.mxu0 0
        %1619 = vmatpush2.bf16.msra.mxu0 0
        %1620 = vmatprep.subr.bf16.mxu0 0
        %1621 = vmatpush2.bf16.msra.mxu0 0
        %1622 = vmatprep.subr.bf16.mxu0 0
        %1623 = vmatpush2.bf16.msra.mxu0 0
        %1624 = vmatprep.subr.bf16.mxu0 0
        %1625 = vmatpush2.bf16.msra.mxu0 0
        %1626 = vmatprep.subr.bf16.mxu0 0
        %1627 = vmatpush2.bf16.msra.mxu0 0
        %1628 = vmatprep.subr.bf16.mxu0 0
        %1629 = vmatpush2.bf16.msra.mxu0 0
        %1630 = vmatprep.mubr.bf16.mxu0 0
        %1631 = vmatmul.mubr.bf16.gmra.mxu0 %v1593
        %v1632 = vpop.f32.mrf.mxu0
        %v1633 = vadd.f32 0.0, %v1632
        %v1634 = vpop.f32.mrf.mxu0
        %v1635 = vpop.f32.mrf.mxu0
        %v1636 = vpop.f32.mrf.mxu0
        %1637 = vdwg.mxu0
        %v1639 = vsel %vm1262, %v1494, 0
        %v1642 = vsel %vm1502, %v1498, 0
        %1644 = vmatprep.subr.bf16.mxu0 0
        %1645 = vmatpush1.bf16.msra.mxu0 0
        %1646 = vmatprep.subr.bf16.mxu0 0
        %1647 = vmatpush1.bf16.msra.mxu0 0
        %1648 = vmatprep.subr.bf16.mxu0 0
        %1649 = vmatpush1.bf16.msra.mxu0 0
        %1650 = vmatprep.subr.bf16.mxu0 0
        %1651 = vmatpush1.bf16.msra.mxu0 0
        %1652 = vmatprep.subr.bf16.mxu0 0
        %1653 = vmatpush1.bf16.msra.mxu0 0
        %1654 = vmatprep.subr.bf16.mxu0 0
        %1655 = vmatpush1.bf16.msra.mxu0 0
        %1656 = vmatprep.subr.bf16.mxu0 0
        %1657 = vmatpush1.bf16.msra.mxu0 0
        %1658 = vmatprep.subr.bf16.mxu0 0
        %1659 = vmatpush1.bf16.msra.mxu0 %v1642
        %1660 = vmatprep.subr.bf16.mxu0 0
        %1661 = vmatpush2.bf16.msra.mxu0 0
        %1662 = vmatprep.subr.bf16.mxu0 0
        %1663 = vmatpush2.bf16.msra.mxu0 0
        %1664 = vmatprep.subr.bf16.mxu0 0
        %1665 = vmatpush2.bf16.msra.mxu0 0
        %1666 = vmatprep.subr.bf16.mxu0 0
        %1667 = vmatpush2.bf16.msra.mxu0 0
        %1668 = vmatprep.subr.bf16.mxu0 0
        %1669 = vmatpush2.bf16.msra.mxu0 0
        %1670 = vmatprep.subr.bf16.mxu0 0
        %1671 = vmatpush2.bf16.msra.mxu0 0
        %1672 = vmatprep.subr.bf16.mxu0 0
        %1673 = vmatpush2.bf16.msra.mxu0 0
        %1674 = vmatprep.subr.bf16.mxu0 0
        %1675 = vmatpush2.bf16.msra.mxu0 0
        %1676 = vmatprep.mubr.bf16.mxu0 0
        %1677 = vmatmul.mubr.bf16.gmra.mxu0 %v1639
        %v1678 = vpop.f32.mrf.mxu0
        %v1679 = vadd.f32 0.0, %v1678
        %v1680 = vpop.f32.mrf.mxu0
        %v1681 = vpop.f32.mrf.mxu0
        %v1682 = vpop.f32.mrf.mxu0
        %1683 = vdwg.mxu0
        %v1684 = vcombine.low %v1541, %v1633
        %v1685 = vcombine.high %v1541, %v1633
        %v1687 = vunpack.c.l.s4 1983009808
        %v1688 = vunpack.c.0.s8 %v1687
        %v1689 = vlaneseq
        %v1690 = vshrl.u32 %v1689, 7
        %v1691 = vsub.s32 %v1688, %v1690
        %v1692 = vrot.slane %v1684, %v1691
        %v1694 = vunpack.c.l.s4 1983009808
        %v1695 = vunpack.c.0.s8 %v1694
        %v1696 = vlaneseq
        %v1697 = vshrl.u32 %v1696, 7
        %v1698 = vsub.s32 %v1695, %v1697
        %v1699 = vrot.slane %v1685, %v1698
        %v1700 = vcombine.low %v1587, %v1679
        %v1701 = vcombine.high %v1587, %v1679
        %v1703 = vunpack.c.l.s4 1983009808
        %v1704 = vunpack.c.0.s8 %v1703
        %v1705 = vlaneseq
        %v1706 = vshrl.u32 %v1705, 7
        %v1707 = vsub.s32 %v1704, %v1706
        %v1708 = vrot.slane %v1700, %v1707
        %v1710 = vunpack.c.l.s4 1983009808
        %v1711 = vunpack.c.0.s8 %v1710
        %v1712 = vlaneseq
        %v1713 = vshrl.u32 %v1712, 7
        %v1714 = vsub.s32 %v1711, %v1713
        %v1715 = vrot.slane %v1701, %v1714
        %v1716 = vcombine.low %v1692, %v1708
        %v1717 = vcombine.high %v1692, %v1708
        %v1719 = vunpack.c.l.s4 1934713408
        %v1720 = vunpack.c.0.s8 %v1719
        %v1721 = vlaneseq
        %v1722 = vshrl.u32 %v1721, 7
        %v1723 = vsub.s32 %v1720, %v1722
        %v1724 = vrot.slane %v1716, %v1723
        %v1726 = vunpack.c.l.s4 1934713408
        %v1727 = vunpack.c.0.s8 %v1726
        %v1728 = vlaneseq
        %v1729 = vshrl.u32 %v1728, 7
        %v1730 = vsub.s32 %v1727, %v1729
        %v1731 = vrot.slane %v1717, %v1730
        %v1732 = vcombine.low %v1699, %v1715
        %v1733 = vcombine.high %v1699, %v1715
        %v1735 = vunpack.c.l.s4 1934713408
        %v1736 = vunpack.c.0.s8 %v1735
        %v1737 = vlaneseq
        %v1738 = vshrl.u32 %v1737, 7
        %v1739 = vsub.s32 %v1736, %v1738
        %v1740 = vrot.slane %v1732, %v1739
        %v1742 = vunpack.c.l.s4 1934713408
        %v1743 = vunpack.c.0.s8 %v1742
        %v1744 = vlaneseq
        %v1745 = vshrl.u32 %v1744, 7
        %v1746 = vsub.s32 %v1743, %v1745
        %v1747 = vrot.slane %v1733, %v1746
        %v1748 = vcombine.high %v1724, 0.0
        %v1749 = vcombine.high %v1731, 0.0
        %v1750 = vcombine.high %v1740, 0.0
        %v1751 = vcombine.high %v1747, 0.0
        %v1752 = vcombine.low %v1724, %v1731
        %v1754 = vunpack.c.l.s4 1983009808
        %v1755 = vunpack.c.0.s8 %v1754
        %v1756 = vlaneseq
        %v1757 = vshrl.u32 %v1756, 7
        %v1758 = vsub.s32 %v1755, %v1757
        %v1759 = vrot.slane %v1752, %v1758
        %v1760 = vcombine.low %v1748, %v1749
        %v1762 = vunpack.c.l.s4 1983009808
        %v1763 = vunpack.c.0.s8 %v1762
        %v1764 = vlaneseq
        %v1765 = vshrl.u32 %v1764, 7
        %v1766 = vsub.s32 %v1763, %v1765
        %v1767 = vrot.slane %v1760, %v1766
        %v1768 = vcombine.low %v1740, %v1747
        %v1770 = vunpack.c.l.s4 1983009808
        %v1771 = vunpack.c.0.s8 %v1770
        %v1772 = vlaneseq
        %v1773 = vshrl.u32 %v1772, 7
        %v1774 = vsub.s32 %v1771, %v1773
        %v1775 = vrot.slane %v1768, %v1774
        %v1776 = vcombine.low %v1750, %v1751
        %v1778 = vunpack.c.l.s4 1983009808
        %v1779 = vunpack.c.0.s8 %v1778
        %v1780 = vlaneseq
        %v1781 = vshrl.u32 %v1780, 7
        %v1782 = vsub.s32 %v1779, %v1781
        %v1783 = vrot.slane %v1776, %v1782
        %v1784 = vcombine.low %v1759, %v1767
        %v1785 = vcombine.high %v1759, %v1767
        %v1787 = vunpack.c.l.s4 1934713408
        %v1788 = vunpack.c.0.s8 %v1787
        %v1789 = vlaneseq
        %v1790 = vshrl.u32 %v1789, 7
        %v1791 = vsub.s32 %v1788, %v1790
        %v1792 = vrot.slane %v1784, %v1791
        %v1794 = vunpack.c.l.s4 1934713408
        %v1795 = vunpack.c.0.s8 %v1794
        %v1796 = vlaneseq
        %v1797 = vshrl.u32 %v1796, 7
        %v1798 = vsub.s32 %v1795, %v1797
        %v1799 = vrot.slane %v1785, %v1798
        %v1800 = vcombine.low %v1775, %v1783
        %v1801 = vcombine.high %v1775, %v1783
        %v1803 = vunpack.c.l.s4 1934713408
        %v1804 = vunpack.c.0.s8 %v1803
        %v1805 = vlaneseq
        %v1806 = vshrl.u32 %v1805, 7
        %v1807 = vsub.s32 %v1804, %v1806
        %v1808 = vrot.slane %v1800, %v1807
        %v1810 = vunpack.c.l.s4 1934713408
        %v1811 = vunpack.c.0.s8 %v1810
        %v1812 = vlaneseq
        %v1813 = vshrl.u32 %v1812, 7
        %v1814 = vsub.s32 %v1811, %v1813
        %v1815 = vrot.slane %v1801, %v1814
        %v1816 = vcombine.low %v1792, %v1808
        %v1817 = vcombine.high %v1792, %v1808
        %v1818 = vcombine.low %v1799, %v1815
        %v1819 = vcombine.high %v1799, %v1815
        %1821 = vrot.lane.b32.xlu0 %v1817, 8
        %v1822 = vpop.permute.xlu0 %1821
        %1825 = vrot.lane.b32.xlu0 %v1818, 16
        %v1826 = vpop.permute.xlu0 %1825
        %1829 = vrot.lane.b32.xlu0 %v1819, 24
        %v1830 = vpop.permute.xlu0 %1829
        %v1832 = vsel %vm1262, %v1816, %v1822
        %vm1833 = vcmask 130048
        %v1834 = vsel %vm1833, %v1832, %v1826
        %vm1835 = vcmask 195584
        %v1836 = vsel %vm1835, %v1834, %v1830
        %v1837 = vpack.c.bf16 %v1836, %v1836
        %v1838 = vld [vmem:[#allocation10] sm:$0xf]
        %v1839 = vld [vmem:[#allocation10 + $0x4] sm:$0xf]
        %v1840 = vld [vmem:[#allocation10 + $0x8] sm:$0xf]
        %v1841 = vld [vmem:[#allocation10 + $0xc] sm:$0xf]
        %v1842 = vld [vmem:[#allocation12] sm:$0x1]
        %v1844 = vlaneseq
        %v1845 = vshrl.u32 %v1844, 7
        %v1846 = vsub.s32 0, %v1845
        %v1847 = vrot.slane %v1842, %v1846
        %v1853 = vunpack.c.l.b16 %v1838
        %v1854 = vunpack.c.l.b16 %v1839
        %v1855 = vunpack.c.l.b16 %v1840
        %v1856 = vunpack.c.l.b16 %v1841
        %v1857 = vpack.c.b16 %v1854, %v1853
        %v1858 = vpack.c.b16 %v1856, %v1855
        %v1862 = vsel %vm1064, %v1837, 0
        %1864 = vmatprep.subr.bf16.mxu0 0
        %1865 = vmatpush1.bf16.msra.mxu0 0
        %1866 = vmatprep.subr.bf16.mxu0 0
        %1867 = vmatpush1.bf16.msra.mxu0 0
        %1868 = vmatprep.subr.bf16.mxu0 0
        %1869 = vmatpush1.bf16.msra.mxu0 0
        %1870 = vmatprep.subr.bf16.mxu0 0
        %1871 = vmatpush1.bf16.msra.mxu0 0
        %1872 = vmatprep.subr.bf16.mxu0 0
        %1873 = vmatpush1.bf16.msra.mxu0 0
        %1874 = vmatprep.subr.bf16.mxu0 0
        %1875 = vmatpush1.bf16.msra.mxu0 0
        %1876 = vmatprep.subr.bf16.mxu0 0
        %1877 = vmatpush1.bf16.msra.mxu0 %v1858
        %1878 = vmatprep.subr.bf16.mxu0 0
        %1879 = vmatpush1.bf16.msra.mxu0 %v1857
        %1880 = vmatprep.subr.bf16.mxu0 0
        %1881 = vmatpush2.bf16.msra.mxu0 0
        %1882 = vmatprep.subr.bf16.mxu0 0
        %1883 = vmatpush2.bf16.msra.mxu0 0
        %1884 = vmatprep.subr.bf16.mxu0 0
        %1885 = vmatpush2.bf16.msra.mxu0 0
        %1886 = vmatprep.subr.bf16.mxu0 0
        %1887 = vmatpush2.bf16.msra.mxu0 0
        %1888 = vmatprep.subr.bf16.mxu0 0
        %1889 = vmatpush2.bf16.msra.mxu0 0
        %1890 = vmatprep.subr.bf16.mxu0 0
        %1891 = vmatpush2.bf16.msra.mxu0 0
        %1892 = vmatprep.subr.bf16.mxu0 0
        %1893 = vmatpush2.bf16.msra.mxu0 0
        %1894 = vmatprep.subr.bf16.mxu0 0
        %1895 = vmatpush2.bf16.msra.mxu0 0
        %1896 = vmatprep.mubr.bf16.mxu0 0
        %1897 = vmatmul.mubr.bf16.gmra.mxu0 %v1862
        %v1898 = vpop.f32.mrf.mxu0
        %v1899 = vadd.f32 %v1847, %v1898
        %v1900 = vpop.f32.mrf.mxu0
        %v1901 = vpop.f32.mrf.mxu0
        %v1902 = vpop.f32.mrf.mxu0
        %1903 = vdwg.mxu0
        %v1904 = vadd.f32 %v1038, %v1899
        %v1905 = vld [vmem:[#allocation13] sm:$0x1]
        %v1906 = vld [vmem:[#allocation15] sm:$0x1]
        %v1907 = vsel %vm1064, %v1904, 0.0
        %1908 = vadd.xlane.f32.xlu0 %v1907
        %v1909 = vpop.xlane.xlu0 %1908
        %v1910 = vrcp.pop 32.0
        %v1911 = vmul.f32 %v1909, %v1910
        %v1912 = vsub.f32 %v1904, %v1911
        %v1913 = vmul.f32 %v1912, %v1912
        %v1914 = vsel %vm1064, %v1913, 0.0
        %1915 = vadd.xlane.f32.xlu0 %v1914
        %v1916 = vpop.xlane.xlu0 %1915
        %v1917 = vmul.f32 %v1916, %v1910
        %v1918 = vadd.f32 %v1917, 1e-06
        %v1919 = vrsqrt.pop %v1918
        %v1920 = vmul.f32 %v1912, %v1919
        %v1922 = vlaneseq
        %v1923 = vshrl.u32 %v1922, 7
        %v1924 = vsub.s32 0, %v1923
        %v1925 = vrot.slane %v1905, %v1924
        %v1927 = vmul.f32 %v1920, %v1925
        %v1929 = vlaneseq
        %v1930 = vshrl.u32 %v1929, 7
        %v1931 = vsub.s32 0, %v1930
        %v1932 = vrot.slane %v1906, %v1931
        %v1934 = vadd.f32 %v1927, %v1932
        %v1935 = vpack.c.bf16 %v1934, %v1934
        %v1936 = vld [vmem:[%s10] sm:$0xf]
        %v1937 = vld [vmem:[%s10 + $0x4] sm:$0xf]
        %v1938 = vld [vmem:[%s10 + $0x8] sm:$0xf]
        %v1939 = vld [vmem:[%s10 + $0xc] sm:$0xf]
        %v1940 = vld [vmem:[%s11] sm:$0x1]
        %v1942 = vlaneseq
        %v1943 = vshrl.u32 %v1942, 7
        %v1944 = vsub.s32 0, %v1943
        %v1945 = vrot.slane %v1940, %v1944
        %v1951 = vunpack.c.l.b16 %v1936
        %v1952 = vunpack.c.l.b16 %v1937
        %v1953 = vunpack.c.l.b16 %v1938
        %v1954 = vunpack.c.l.b16 %v1939
        %v1955 = vpack.c.b16 %v1952, %v1951
        %v1956 = vpack.c.b16 %v1954, %v1953
        %v1960 = vsel %vm1064, %v1935, 0
        %1962 = vmatprep.subr.bf16.mxu0 0
        %1963 = vmatpush1.bf16.msra.mxu0 0
        %1964 = vmatprep.subr.bf16.mxu0 0
        %1965 = vmatpush1.bf16.msra.mxu0 0
        %1966 = vmatprep.subr.bf16.mxu0 0
        %1967 = vmatpush1.bf16.msra.mxu0 0
        %1968 = vmatprep.subr.bf16.mxu0 0
        %1969 = vmatpush1.bf16.msra.mxu0 0
        %1970 = vmatprep.subr.bf16.mxu0 0
        %1971 = vmatpush1.bf16.msra.mxu0 0
        %1972 = vmatprep.subr.bf16.mxu0 0
        %1973 = vmatpush1.bf16.msra.mxu0 0
        %1974 = vmatprep.subr.bf16.mxu0 0
        %1975 = vmatpush1.bf16.msra.mxu0 %v1956
        %1976 = vmatprep.subr.bf16.mxu0 0
        %1977 = vmatpush1.bf16.msra.mxu0 %v1955
        %1978 = vmatprep.subr.bf16.mxu0 0
        %1979 = vmatpush2.bf16.msra.mxu0 0
        %1980 = vmatprep.subr.bf16.mxu0 0
        %1981 = vmatpush2.bf16.msra.mxu0 0
        %1982 = vmatprep.subr.bf16.mxu0 0
        %1983 = vmatpush2.bf16.msra.mxu0 0
        %1984 = vmatprep.subr.bf16.mxu0 0
        %1985 = vmatpush2.bf16.msra.mxu0 0
        %1986 = vmatprep.subr.bf16.mxu0 0
        %1987 = vmatpush2.bf16.msra.mxu0 0
        %1988 = vmatprep.subr.bf16.mxu0 0
        %1989 = vmatpush2.bf16.msra.mxu0 0
        %1990 = vmatprep.subr.bf16.mxu0 0
        %1991 = vmatpush2.bf16.msra.mxu0 0
        %1992 = vmatprep.subr.bf16.mxu0 0
        %1993 = vmatpush2.bf16.msra.mxu0 0
        %1994 = vmatprep.mubr.bf16.mxu0 0
        %1995 = vmatmul.mubr.bf16.gmra.mxu0 %v1960
        %v1996 = vpop.f32.mrf.mxu0
        %v1997 = vadd.f32 %v1945, %v1996
        %v1998 = vpop.f32.mrf.mxu0
        %v1999 = vpop.f32.mrf.mxu0
        %v2000 = vpop.f32.mrf.mxu0
        %2001 = vdwg.mxu0
        %v2002 = vmax.f32 %v1997, 0.0
        %v2003 = vpack.c.bf16 %v2002, %v2002
        %v2004 = vld [vmem:[%s12] sm:$0xf]
        %v2005 = vld [vmem:[%s12 + $0x4] sm:$0xf]
        %v2006 = vld [vmem:[%s12 + $0x8] sm:$0xf]
        %v2007 = vld [vmem:[%s12 + $0xc] sm:$0xf]
        %v2008 = vld [vmem:[%s12 + $0x10] sm:$0xf]
        %v2009 = vld [vmem:[%s12 + $0x14] sm:$0xf]
        %v2010 = vld [vmem:[%s12 + $0x18] sm:$0xf]
        %v2011 = vld [vmem:[%s12 + $0x1c] sm:$0xf]
        %v2012 = vld [vmem:[%s13] sm:$0x1]
        %v2014 = vlaneseq
        %v2015 = vshrl.u32 %v2014, 7
        %v2016 = vsub.s32 0, %v2015
        %v2017 = vrot.slane %v2012, %v2016
        %v2027 = vunpack.c.l.b16 %v2004
        %v2028 = vunpack.c.l.b16 %v2005
        %v2029 = vunpack.c.l.b16 %v2006
        %v2030 = vunpack.c.l.b16 %v2007
        %v2031 = vunpack.c.l.b16 %v2008
        %v2032 = vunpack.c.l.b16 %v2009
        %v2033 = vunpack.c.l.b16 %v2010
        %v2034 = vunpack.c.l.b16 %v2011
        %v2035 = vpack.c.b16 %v2028, %v2027
        %v2036 = vpack.c.b16 %v2030, %v2029
        %v2037 = vpack.c.b16 %v2032, %v2031
        %v2038 = vpack.c.b16 %v2034, %v2033
        %vm2043 = vcmask 523264
        %v2045 = vsel %vm2043, %v2003, 0
        %2047 = vmatprep.subr.bf16.mxu0 0
        %2048 = vmatpush1.bf16.msra.mxu0 0
        %2049 = vmatprep.subr.bf16.mxu0 0
        %2050 = vmatpush1.bf16.msra.mxu0 0
        %2051 = vmatprep.subr.bf16.mxu0 0
        %2052 = vmatpush1.bf16.msra.mxu0 0
        %2053 = vmatprep.subr.bf16.mxu0 0
        %2054 = vmatpush1.bf16.msra.mxu0 0
        %2055 = vmatprep.subr.bf16.mxu0 0
        %2056 = vmatpush1.bf16.msra.mxu0 %v2038
        %2057 = vmatprep.subr.bf16.mxu0 0
        %2058 = vmatpush1.bf16.msra.mxu0 %v2037
        %2059 = vmatprep.subr.bf16.mxu0 0
        %2060 = vmatpush1.bf16.msra.mxu0 %v2036
        %2061 = vmatprep.subr.bf16.mxu0 0
        %2062 = vmatpush1.bf16.msra.mxu0 %v2035
        %2063 = vmatprep.subr.bf16.mxu0 0
        %2064 = vmatpush2.bf16.msra.mxu0 0
        %2065 = vmatprep.subr.bf16.mxu0 0
        %2066 = vmatpush2.bf16.msra.mxu0 0
        %2067 = vmatprep.subr.bf16.mxu0 0
        %2068 = vmatpush2.bf16.msra.mxu0 0
        %2069 = vmatprep.subr.bf16.mxu0 0
        %2070 = vmatpush2.bf16.msra.mxu0 0
        %2071 = vmatprep.subr.bf16.mxu0 0
        %2072 = vmatpush2.bf16.msra.mxu0 0
        %2073 = vmatprep.subr.bf16.mxu0 0
        %2074 = vmatpush2.bf16.msra.mxu0 0
        %2075 = vmatprep.subr.bf16.mxu0 0
        %2076 = vmatpush2.bf16.msra.mxu0 0
        %2077 = vmatprep.subr.bf16.mxu0 0
        %2078 = vmatpush2.bf16.msra.mxu0 0
        %2079 = vmatprep.mubr.bf16.mxu0 0
        %2080 = vmatmul.mubr.bf16.gmra.mxu0 %v2045
        %v2081 = vpop.f32.mrf.mxu0
        %v2082 = vadd.f32 %v2017, %v2081
        %v2083 = vpop.f32.mrf.mxu0
        %v2084 = vpop.f32.mrf.mxu0
        %v2085 = vpop.f32.mrf.mxu0
        %2086 = vdwg.mxu0
        %v2087 = vadd.f32 %v1934, %v2082
        %v2088 = vld [vmem:[%s14] sm:$0x1]
        %v2089 = vld [vmem:[%s15] sm:$0x1]
        %v2090 = vsel %vm1064, %v2087, 0.0
        %2091 = vadd.xlane.f32.xlu0 %v2090
        %v2092 = vpop.xlane.xlu0 %2091
        %v2093 = vmul.f32 %v2092, %v1910
        %v2094 = vsub.f32 %v2087, %v2093
        %v2095 = vmul.f32 %v2094, %v2094
        %v2096 = vsel %vm1064, %v2095, 0.0
        %2097 = vadd.xlane.f32.xlu0 %v2096
        %v2098 = vpop.xlane.xlu0 %2097
        %v2099 = vmul.f32 %v2098, %v1910
        %v2100 = vadd.f32 %v2099, 1e-06
        %v2101 = vrsqrt.pop %v2100
        %v2102 = vmul.f32 %v2094, %v2101
        %v2104 = vlaneseq
        %v2105 = vshrl.u32 %v2104, 7
        %v2106 = vsub.s32 0, %v2105
        %v2107 = vrot.slane %v2088, %v2106
        %v2109 = vmul.f32 %v2102, %v2107
        %v2111 = vlaneseq
        %v2112 = vshrl.u32 %v2111, 7
        %v2113 = vsub.s32 0, %v2112
        %v2114 = vrot.slane %v2089, %v2113
        %v2116 = vadd.f32 %v2109, %v2114
        %2117 = vst.msk [vmem:[%s639] sm:$0xff] %vm1064, %v2116
        %s2118 = sand.u32 %s404, 1
        %s2119 = scalar_lea.sflag [#allocation6], %s2118
        %s2120 = sand.u32 %s404, 1
        %s2121 = smul.addr %s2120, 8
        %s2122 = scalar_lea.vmem [#allocation16], %s2121
        // Predicated region
        $region117: #{tpu_custom_call.1} parent=83 // pred_check
          %p2123 = pneg %p414
        $region118: #{tpu_custom_call.1} parent=83 // pred_check_branch
          %2125 = sbr.rel (%p2123) target = $region120
        $region119: #{tpu_custom_call.1} parent=83 // pred_region
          %s2127 = ssub.s32 128, 128
          %2128 = vsyncadd %s2119, %s2127
          %s2129 = sadd.s32 %s39, %s38
          %s2130 = smul.addr %s2129, 128
          %s2131 = scalar_lea.hbm %s16, %s2130
          %s2133 = sshll.u32 %s2122, 4
          %s2134 = int_to_ptr.vmem [resolvable:$true] %s2133
          %2136 = dma.vmem_to_hbm [thread:$0]  %s2134, 128, %s2131, %s2119
        $region120: #{tpu_custom_call.1} parent=83 // pred_fallthru
          _
      $region84: #{tpu_custom_call.1} parent=5 // pred_fallthru
        _
      %p2137 = scmp.le.s32.totalorder 2, %s29
      // Predicated region
      $region121: #{tpu_custom_call.1} parent=5 // pred_check
        %p2138 = pneg %p2137
      $region122: #{tpu_custom_call.1} parent=5 // pred_check_branch
        %2140 = sbr.rel (%p2138) target = $region124
      $region123: #{tpu_custom_call.1} parent=5 // pred_region
        %s2141 = ssub.s32 %s29, 2
        // Predicated region
        $region125: #{tpu_custom_call.1} parent=123 // pred_check
          %p2142 = pneg %p420
        $region126: #{tpu_custom_call.1} parent=123 // pred_check_branch
          %2144 = sbr.rel (%p2142) target = $region128
        $region127: #{tpu_custom_call.1} parent=123 // pred_region
          %s2145 = sand.u32 %s405, 1
          %s2146 = scalar_lea.sflag [#allocation6], %s2145
          %s2147 = sand.u32 %s405, 1
          %s2148 = smul.addr %s2147, 8
          %s2149 = scalar_lea.vmem [#allocation16], %s2148
          %2150 = dma.done %s2146, 128
        $region128: #{tpu_custom_call.1} parent=123 // pred_fallthru
          _
      $region124: #{tpu_custom_call.1} parent=5 // pred_fallthru
        _
    $region6: #{tpu_custom_call.1} parent=1 // loop_footer
      %s33 = sadd.s32 1, %s29
    $region7: #{tpu_custom_call.1} parent=1 // loop_footer_branch
      %28 = sbr.rel target = $region3
    $region8: #{tpu_custom_call.1} parent=1 // loop_exit
      _
    %2151 = vsyncpa [#allocation5], 1
    %s2152 = scalar_lea.sflag [#allocation5], 1
    %2153 = vsyncpa %s2152, 1
    %2154 = vsyncpa [#allocation8], 1
    %2155 = vsyncpa [#allocation11], 1
    %2156 = vsyncpa [#allocation14], 1
    %2157 = vsyncpa [#allocation6], 1
    %s2158 = scalar_lea.sflag [#allocation6], 1
    %2159 = vsyncpa %s2158, 1

</llo_original>
